<compile_context>
chip_gen: v6e
topology: v6e:2x2x1
jax: 0.10.0
libtpu: 0.0.40
codegen_flags: <defaults>
</compile_context>

<pallas_src>
import math
import numpy as np
import jax
import jax.numpy as jnp
from jax.experimental import pallas as pl
from jax.experimental.pallas import tpu as pltpu  # noqa: F401  (kept for TPU-specific tuning hooks)

_BN_EPS = 1e-5


# ----------------------------------------------------------------------------
# Fused kernel: LSTM recurrence + MLP head, single invocation (no grid).
# ----------------------------------------------------------------------------
def fused_lstm_mlp_kernel(x_ref, wih_ref, whh_ref, lb_ref,
                          w1_ref, b1_ref, w2_ref, b2_ref, w3_ref, b3_ref,
                          out_ref):
    B, S, D = x_ref.shape
    H = whh_ref.shape[0]
    G = 4 * H

    # ---- Hoisted input projection: one MXU matmul over all timesteps. -------
    x2d = x_ref[...].reshape(B * S, D)                       # (B*S, D)
    gx = jnp.dot(x2d, wih_ref[...],
                 preferred_element_type=jnp.float32) + lb_ref[...]   # (B*S, 4H)
    gx = gx.reshape(B, S, G)                                 # (B, S, 4H)

    # ---- Sequential recurrence: only h @ W_hh on the serial path. -----------
    whh = whh_ref[...]                                       # (H, 4H), resident
    h = jnp.zeros((B, H), jnp.float32)
    c = jnp.zeros((B, H), jnp.float32)
    # S is a small static trip count -> fully unrolled (== fori_loop unroll=True),
    # so every slice below is static (no dynamic lane/sublane indexing).
    for t in range(S):
        gates = gx[:, t, :] + jnp.dot(h, whh,
                                      preferred_element_type=jnp.float32)  # (B, 4H)
        i = jax.nn.sigmoid(gates[:, 0:H])
        f = jax.nn.sigmoid(gates[:, H:2 * H])
        g = jnp.tanh(gates[:, 2 * H:3 * H])
        o = jax.nn.sigmoid(gates[:, 3 * H:4 * H])
        c = f * c + i * g
        h = o * jnp.tanh(c)

    # ---- MLP head: Linear(+folded BN) -> Tanh -> Linear(+folded BN) -> Tanh
    #      -> Linear.  bf16 weights / bf16 activations into the MXU, f32 accum,
    #      f32 elementwise.  Dropout(0.5) is identity in eval mode.
    # TODO(synk): training-mode dropout (pltpu.prng_*) and training-mode BN
    #             batch statistics are intentionally not implemented.
    y = jnp.dot(h.astype(jnp.bfloat16), w1_ref[...],
                preferred_element_type=jnp.float32) + b1_ref[...]
    y = jnp.tanh(y)
    y = jnp.dot(y.astype(jnp.bfloat16), w2_ref[...],
                preferred_element_type=jnp.float32) + b2_ref[...]
    y = jnp.tanh(y)
    y = jnp.dot(y.astype(jnp.bfloat16), w3_ref[...],
                preferred_element_type=jnp.float32) + b3_ref[...]
    out_ref[...] = y.astype(out_ref.dtype)


def lstm_mlp_forward(x, kp):
    """x: (B, S, D) float32.  Returns (B, output_dim) float32."""
    B = x.shape[0]
    out_dim = kp["w3"].shape[1]
    # No grid: full arrays become single VMEM-resident blocks (total footprint
    # ~2.5 MiB at these sizes -> far under any generation's scoped VMEM limit).
    # NOTE: for B >> 2 on v7x, add a leading "parallel" batch grid axis so both
    # TensorCores are used; not worth it at B=2.
    return pl.pallas_call(
        fused_lstm_mlp_kernel,
        out_shape=jax.ShapeDtypeStruct((B, out_dim), jnp.float32),
    )(x, kp["wih_t"], kp["whh_t"], kp["lstm_bias"],
      kp["w1"], kp["b1"], kp["w2"], kp["b2"], kp["w3"], kp["b3"])


# ----------------------------------------------------------------------------
# Parameter construction (mirrors the PyTorch __init__ inits) + kernel prep.
# ----------------------------------------------------------------------------
def xavier_uniform(key, shape):
    # shape is PyTorch (out_features, in_features)
    fan_out, fan_in = shape
    limit = math.sqrt(6.0 / (fan_in + fan_out))
    return jax.random.uniform(key, shape, jnp.float32, -limit, limit)


def orthogonal(key, shape):
    a = jax.random.normal(key, shape, jnp.float32)
    q, r = jnp.linalg.qr(a)
    d = jnp.diagonal(r)
    q = q * jnp.where(d >= 0, 1.0, -1.0)
    return q


def make_params(input_dim, output_dim, hidden_size, mlp_hidden=1024):
    """Raw f32 parameters in PyTorch semantics (transposed to (in, out))."""
    keys = jax.random.split(jax.random.PRNGKey(0), 6)
    H = hidden_size
    w_ih = xavier_uniform(keys[0], (4 * H, input_dim))
    w_hh = orthogonal(keys[1], (4 * H, H))
    bias = jnp.zeros((1, 4 * H), jnp.float32)       # bias_ih + bias_hh, both zero
    w1 = xavier_uniform(keys[2], (mlp_hidden, H))
    w2 = xavier_uniform(keys[3], (mlp_hidden, mlp_hidden))
    w3 = xavier_uniform(keys[4], (output_dim, mlp_hidden))
    return dict(
        wih_t=w_ih.T, whh_t=w_hh.T, lstm_bias=bias,
        w1_t=w1.T, b1=jnp.zeros((1, mlp_hidden), jnp.float32),
        bn1_g=jnp.ones((1, mlp_hidden), jnp.float32),
        bn1_b=jnp.zeros((1, mlp_hidden), jnp.float32),
        bn1_m=jnp.zeros((1, mlp_hidden), jnp.float32),
        bn1_v=jnp.ones((1, mlp_hidden), jnp.float32),
        w2_t=w2.T, b2=jnp.zeros((1, mlp_hidden), jnp.float32),
        bn2_g=jnp.ones((1, mlp_hidden), jnp.float32),
        bn2_b=jnp.zeros((1, mlp_hidden), jnp.float32),
        bn2_m=jnp.zeros((1, mlp_hidden), jnp.float32),
        bn2_v=jnp.ones((1, mlp_hidden), jnp.float32),
        w3_t=w3.T, b3=jnp.zeros((1, output_dim), jnp.float32),
    )


def _fold_bn(w_t, b, gamma, beta, mean, var, eps=_BN_EPS):
    """Fold eval-mode BatchNorm1d into the preceding Linear: y = x@W' + b'."""
    scale = gamma / jnp.sqrt(var + eps)              # (1, F)
    return w_t * scale, (b - mean) * scale + beta


def prepare_kernel_params(raw):
    """Kernel-ready params: BN folded, MLP weights bf16, LSTM weights f32."""
    w1f, b1f = _fold_bn(raw["w1_t"], raw["b1"], raw["bn1_g"], raw["bn1_b"],
                        raw["bn1_m"], raw["bn1_v"])
    w2f, b2f = _fold_bn(raw["w2_t"], raw["b2"], raw["bn2_g"], raw["bn2_b"],
                        raw["bn2_m"], raw["bn2_v"])
    return dict(
        wih_t=raw["wih_t"], whh_t=raw["whh_t"], lstm_bias=raw["lstm_bias"],
        w1=w1f.astype(jnp.bfloat16), b1=b1f,
        w2=w2f.astype(jnp.bfloat16), b2=b2f,
        w3=raw["w3_t"].astype(jnp.bfloat16), b3=raw["b3"],
    )


# ----------------------------------------------------------------------------
# Pure-JAX reference: original (un-folded) eval-mode math, all in f32.
# ----------------------------------------------------------------------------
def forward_ref(x, raw):
    B = x.shape[0]
    H = raw["whh_t"].shape[0]

    def step(carry, xt):
        h, c = carry
        gates = xt @ raw["wih_t"] + h @ raw["whh_t"] + raw["lstm_bias"]
        i, f, g, o = jnp.split(gates, 4, axis=-1)
        c = jax.nn.sigmoid(f) * c + jax.nn.sigmoid(i) * jnp.tanh(g)
        h = jax.nn.sigmoid(o) * jnp.tanh(c)
        return (h, c), None

    h0 = jnp.zeros((B, H), jnp.float32)
    c0 = jnp.zeros((B, H), jnp.float32)
    (hT, _), _ = jax.lax.scan(step, (h0, c0), jnp.transpose(x, (1, 0, 2)))

    y = hT @ raw["w1_t"] + raw["b1"]
    y = (y - raw["bn1_m"]) / jnp.sqrt(raw["bn1_v"] + _BN_EPS) * raw["bn1_g"] + raw["bn1_b"]
    y = jnp.tanh(y)
    y = y @ raw["w2_t"] + raw["b2"]
    y = (y - raw["bn2_m"]) / jnp.sqrt(raw["bn2_v"] + _BN_EPS) * raw["bn2_g"] + raw["bn2_b"]
    y = jnp.tanh(y)          # Dropout(0.5) is identity in eval mode
    y = y @ raw["w3_t"] + raw["b3"]
    return y


if __name__ == "__main__":
    batch, seq, input_dim = 2, 8, 16
    hidden_size, output_dim = 32, 4

    raw = make_params(input_dim, output_dim, hidden_size)
    kp = prepare_kernel_params(raw)
    x = jax.random.normal(jax.random.PRNGKey(0), (batch, seq, input_dim), jnp.float32)

    fwd = jax.jit(lstm_mlp_forward)
    out = jax.block_until_ready(fwd(x, kp))

    ref = forward_ref(x, raw)
    # Tolerance covers bf16 storage of the MLP weights / activations feeding the
    # MXU (everything accumulates in f32); observed error is ~1e-3.
    np.testing.assert_allclose(np.asarray(out), np.asarray(ref), rtol=2e-2, atol=2e-2)

    assert out.shape == (batch, output_dim)
    print("KERNEL_OK")
</pallas_src>

<mosaic_0001>
module attributes {stable_mosaic.version = 11 : i64} {
  func.func @fused_lstm_mlp_kernel(%arg0: memref<2x8x16xf32, #tpu.memory_space<vmem>>, %arg1: memref<16x128xf32, #tpu.memory_space<vmem>>, %arg2: memref<32x128xf32, #tpu.memory_space<vmem>>, %arg3: memref<1x128xf32, #tpu.memory_space<vmem>>, %arg4: memref<32x1024xbf16, #tpu.memory_space<vmem>>, %arg5: memref<1x1024xf32, #tpu.memory_space<vmem>>, %arg6: memref<1024x1024xbf16, #tpu.memory_space<vmem>>, %arg7: memref<1x1024xf32, #tpu.memory_space<vmem>>, %arg8: memref<1024x4xbf16, #tpu.memory_space<vmem>>, %arg9: memref<1x4xf32, #tpu.memory_space<vmem>>, %arg10: memref<2x4xf32, #tpu.memory_space<vmem>>) attributes {dimension_semantics = [], scalar_prefetch = 0 : i64, scratch_operands = 0 : i64, tpu.core_type = #tpu.core_type<tc>} {
    %c0 = arith.constant 0 : index
    %c0_0 = arith.constant 0 : index
    %c0_1 = arith.constant 0 : index
    %0 = vector.load %arg0[%c0, %c0_0, %c0_1] : memref<2x8x16xf32, #tpu.memory_space<vmem>>, vector<2x8x16xf32>
    %1 = vector.shape_cast %0 : vector<2x8x16xf32> to vector<16x16xf32>
    %c0_2 = arith.constant 0 : index
    %c0_3 = arith.constant 0 : index
    %2 = vector.load %arg1[%c0_2, %c0_3] : memref<16x128xf32, #tpu.memory_space<vmem>>, vector<16x128xf32>
    %cst = arith.constant dense<0.000000e+00> : vector<16x128xf32>
    %3 = tpu.matmul %1, %2, %cst {dimension_numbers = #tpu.dot_dimension_numbers<[1], [0], [0], [1], [0, 0, 1, 1], [], []>} : vector<16x16xf32>, vector<16x128xf32>, vector<16x128xf32> -> vector<16x128xf32>
    %c0_4 = arith.constant 0 : index
    %c0_5 = arith.constant 0 : index
    %4 = vector.load %arg3[%c0_4, %c0_5] : memref<1x128xf32, #tpu.memory_space<vmem>>, vector<1x128xf32>
    %5 = vector.broadcast %4 : vector<1x128xf32> to vector<16x128xf32>
    %6 = arith.addf %3, %5 : vector<16x128xf32>
    %7 = vector.shape_cast %6 : vector<16x128xf32> to vector<2x8x128xf32>
    %c0_6 = arith.constant 0 : index
    %c0_7 = arith.constant 0 : index
    %8 = vector.load %arg2[%c0_6, %c0_7] : memref<32x128xf32, #tpu.memory_space<vmem>>, vector<32x128xf32>
    %cst_8 = arith.constant 0.000000e+00 : f32
    %9 = vector.broadcast %cst_8 : f32 to vector<2x32xf32>
    %cst_9 = arith.constant 0.000000e+00 : f32
    %10 = vector.broadcast %cst_9 : f32 to vector<2x32xf32>
    %11 = vector.extract_strided_slice %7 {offsets = [0, 0, 0], sizes = [2, 1, 128], strides = [1, 1, 1]} : vector<2x8x128xf32> to vector<2x1x128xf32>
    %12 = vector.shape_cast %11 : vector<2x1x128xf32> to vector<2x128xf32>
    %cst_10 = arith.constant dense<0.000000e+00> : vector<2x128xf32>
    %13 = tpu.matmul %9, %8, %cst_10 {dimension_numbers = #tpu.dot_dimension_numbers<[1], [0], [0], [1], [0, 0, 1, 1], [], []>} : vector<2x32xf32>, vector<32x128xf32>, vector<2x128xf32> -> vector<2x128xf32>
    %14 = arith.addf %12, %13 : vector<2x128xf32>
    %15 = vector.extract_strided_slice %14 {offsets = [0, 0], sizes = [2, 32], strides = [1, 1]} : vector<2x128xf32> to vector<2x32xf32>
    %16 = arith.negf %15 : vector<2x32xf32>
    %17 = math.exp %16 : vector<2x32xf32>
    %cst_11 = arith.constant 1.000000e+00 : f32
    %18 = vector.broadcast %cst_11 : f32 to vector<2x32xf32>
    %19 = arith.addf %18, %17 : vector<2x32xf32>
    %20 = arith.divf %18, %19 : vector<2x32xf32>
    %21 = vector.extract_strided_slice %14 {offsets = [0, 32], sizes = [2, 32], strides = [1, 1]} : vector<2x128xf32> to vector<2x32xf32>
    %22 = arith.negf %21 : vector<2x32xf32>
    %23 = math.exp %22 : vector<2x32xf32>
    %cst_12 = arith.constant 1.000000e+00 : f32
    %24 = vector.broadcast %cst_12 : f32 to vector<2x32xf32>
    %25 = arith.addf %24, %23 : vector<2x32xf32>
    %26 = arith.divf %24, %25 : vector<2x32xf32>
    %27 = vector.extract_strided_slice %14 {offsets = [0, 64], sizes = [2, 32], strides = [1, 1]} : vector<2x128xf32> to vector<2x32xf32>
    %28 = math.tanh %27 : vector<2x32xf32>
    %29 = vector.extract_strided_slice %14 {offsets = [0, 96], sizes = [2, 32], strides = [1, 1]} : vector<2x128xf32> to vector<2x32xf32>
    %30 = arith.negf %29 : vector<2x32xf32>
    %31 = math.exp %30 : vector<2x32xf32>
    %cst_13 = arith.constant 1.000000e+00 : f32
    %32 = vector.broadcast %cst_13 : f32 to vector<2x32xf32>
    %33 = arith.addf %32, %31 : vector<2x32xf32>
    %34 = arith.divf %32, %33 : vector<2x32xf32>
    %35 = arith.mulf %26, %10 : vector<2x32xf32>
    %36 = arith.mulf %20, %28 : vector<2x32xf32>
    %37 = arith.addf %35, %36 : vector<2x32xf32>
    %38 = math.tanh %37 : vector<2x32xf32>
    %39 = arith.mulf %34, %38 : vector<2x32xf32>
    %40 = vector.extract_strided_slice %7 {offsets = [0, 1, 0], sizes = [2, 1, 128], strides = [1, 1, 1]} : vector<2x8x128xf32> to vector<2x1x128xf32>
    %41 = vector.shape_cast %40 : vector<2x1x128xf32> to vector<2x128xf32>
    %cst_14 = arith.constant dense<0.000000e+00> : vector<2x128xf32>
    %42 = tpu.matmul %39, %8, %cst_14 {dimension_numbers = #tpu.dot_dimension_numbers<[1], [0], [0], [1], [0, 0, 1, 1], [], []>} : vector<2x32xf32>, vector<32x128xf32>, vector<2x128xf32> -> vector<2x128xf32>
    %43 = arith.addf %41, %42 : vector<2x128xf32>
    %44 = vector.extract_strided_slice %43 {offsets = [0, 0], sizes = [2, 32], strides = [1, 1]} : vector<2x128xf32> to vector<2x32xf32>
    %45 = arith.negf %44 : vector<2x32xf32>
    %46 = math.exp %45 : vector<2x32xf32>
    %cst_15 = arith.constant 1.000000e+00 : f32
    %47 = vector.broadcast %cst_15 : f32 to vector<2x32xf32>
    %48 = arith.addf %47, %46 : vector<2x32xf32>
    %49 = arith.divf %47, %48 : vector<2x32xf32>
    %50 = vector.extract_strided_slice %43 {offsets = [0, 32], sizes = [2, 32], strides = [1, 1]} : vector<2x128xf32> to vector<2x32xf32>
    %51 = arith.negf %50 : vector<2x32xf32>
    %52 = math.exp %51 : vector<2x32xf32>
    %cst_16 = arith.constant 1.000000e+00 : f32
    %53 = vector.broadcast %cst_16 : f32 to vector<2x32xf32>
    %54 = arith.addf %53, %52 : vector<2x32xf32>
    %55 = arith.divf %53, %54 : vector<2x32xf32>
    %56 = vector.extract_strided_slice %43 {offsets = [0, 64], sizes = [2, 32], strides = [1, 1]} : vector<2x128xf32> to vector<2x32xf32>
    %57 = math.tanh %56 : vector<2x32xf32>
    %58 = vector.extract_strided_slice %43 {offsets = [0, 96], sizes = [2, 32], strides = [1, 1]} : vector<2x128xf32> to vector<2x32xf32>
    %59 = arith.negf %58 : vector<2x32xf32>
    %60 = math.exp %59 : vector<2x32xf32>
    %cst_17 = arith.constant 1.000000e+00 : f32
    %61 = vector.broadcast %cst_17 : f32 to vector<2x32xf32>
    %62 = arith.addf %61, %60 : vector<2x32xf32>
    %63 = arith.divf %61, %62 : vector<2x32xf32>
    %64 = arith.mulf %55, %37 : vector<2x32xf32>
    %65 = arith.mulf %49, %57 : vector<2x32xf32>
    %66 = arith.addf %64, %65 : vector<2x32xf32>
    %67 = math.tanh %66 : vector<2x32xf32>
    %68 = arith.mulf %63, %67 : vector<2x32xf32>
    %69 = vector.extract_strided_slice %7 {offsets = [0, 2, 0], sizes = [2, 1, 128], strides = [1, 1, 1]} : vector<2x8x128xf32> to vector<2x1x128xf32>
    %70 = vector.shape_cast %69 : vector<2x1x128xf32> to vector<2x128xf32>
    %cst_18 = arith.constant dense<0.000000e+00> : vector<2x128xf32>
    %71 = tpu.matmul %68, %8, %cst_18 {dimension_numbers = #tpu.dot_dimension_numbers<[1], [0], [0], [1], [0, 0, 1, 1], [], []>} : vector<2x32xf32>, vector<32x128xf32>, vector<2x128xf32> -> vector<2x128xf32>
    %72 = arith.addf %70, %71 : vector<2x128xf32>
    %73 = vector.extract_strided_slice %72 {offsets = [0, 0], sizes = [2, 32], strides = [1, 1]} : vector<2x128xf32> to vector<2x32xf32>
    %74 = arith.negf %73 : vector<2x32xf32>
    %75 = math.exp %74 : vector<2x32xf32>
    %cst_19 = arith.constant 1.000000e+00 : f32
    %76 = vector.broadcast %cst_19 : f32 to vector<2x32xf32>
    %77 = arith.addf %76, %75 : vector<2x32xf32>
    %78 = arith.divf %76, %77 : vector<2x32xf32>
    %79 = vector.extract_strided_slice %72 {offsets = [0, 32], sizes = [2, 32], strides = [1, 1]} : vector<2x128xf32> to vector<2x32xf32>
    %80 = arith.negf %79 : vector<2x32xf32>
    %81 = math.exp %80 : vector<2x32xf32>
    %cst_20 = arith.constant 1.000000e+00 : f32
    %82 = vector.broadcast %cst_20 : f32 to vector<2x32xf32>
    %83 = arith.addf %82, %81 : vector<2x32xf32>
    %84 = arith.divf %82, %83 : vector<2x32xf32>
    %85 = vector.extract_strided_slice %72 {offsets = [0, 64], sizes = [2, 32], strides = [1, 1]} : vector<2x128xf32> to vector<2x32xf32>
    %86 = math.tanh %85 : vector<2x32xf32>
    %87 = vector.extract_strided_slice %72 {offsets = [0, 96], sizes = [2, 32], strides = [1, 1]} : vector<2x128xf32> to vector<2x32xf32>
    %88 = arith.negf %87 : vector<2x32xf32>
    %89 = math.exp %88 : vector<2x32xf32>
    %cst_21 = arith.constant 1.000000e+00 : f32
    %90 = vector.broadcast %cst_21 : f32 to vector<2x32xf32>
    %91 = arith.addf %90, %89 : vector<2x32xf32>
    %92 = arith.divf %90, %91 : vector<2x32xf32>
    %93 = arith.mulf %84, %66 : vector<2x32xf32>
    %94 = arith.mulf %78, %86 : vector<2x32xf32>
    %95 = arith.addf %93, %94 : vector<2x32xf32>
    %96 = math.tanh %95 : vector<2x32xf32>
    %97 = arith.mulf %92, %96 : vector<2x32xf32>
    %98 = vector.extract_strided_slice %7 {offsets = [0, 3, 0], sizes = [2, 1, 128], strides = [1, 1, 1]} : vector<2x8x128xf32> to vector<2x1x128xf32>
    %99 = vector.shape_cast %98 : vector<2x1x128xf32> to vector<2x128xf32>
    %cst_22 = arith.constant dense<0.000000e+00> : vector<2x128xf32>
    %100 = tpu.matmul %97, %8, %cst_22 {dimension_numbers = #tpu.dot_dimension_numbers<[1], [0], [0], [1], [0, 0, 1, 1], [], []>} : vector<2x32xf32>, vector<32x128xf32>, vector<2x128xf32> -> vector<2x128xf32>
    %101 = arith.addf %99, %100 : vector<2x128xf32>
    %102 = vector.extract_strided_slice %101 {offsets = [0, 0], sizes = [2, 32], strides = [1, 1]} : vector<2x128xf32> to vector<2x32xf32>
    %103 = arith.negf %102 : vector<2x32xf32>
    %104 = math.exp %103 : vector<2x32xf32>
    %cst_23 = arith.constant 1.000000e+00 : f32
    %105 = vector.broadcast %cst_23 : f32 to vector<2x32xf32>
    %106 = arith.addf %105, %104 : vector<2x32xf32>
    %107 = arith.divf %105, %106 : vector<2x32xf32>
    %108 = vector.extract_strided_slice %101 {offsets = [0, 32], sizes = [2, 32], strides = [1, 1]} : vector<2x128xf32> to vector<2x32xf32>
    %109 = arith.negf %108 : vector<2x32xf32>
    %110 = math.exp %109 : vector<2x32xf32>
    %cst_24 = arith.constant 1.000000e+00 : f32
    %111 = vector.broadcast %cst_24 : f32 to vector<2x32xf32>
    %112 = arith.addf %111, %110 : vector<2x32xf32>
    %113 = arith.divf %111, %112 : vector<2x32xf32>
    %114 = vector.extract_strided_slice %101 {offsets = [0, 64], sizes = [2, 32], strides = [1, 1]} : vector<2x128xf32> to vector<2x32xf32>
    %115 = math.tanh %114 : vector<2x32xf32>
    %116 = vector.extract_strided_slice %101 {offsets = [0, 96], sizes = [2, 32], strides = [1, 1]} : vector<2x128xf32> to vector<2x32xf32>
    %117 = arith.negf %116 : vector<2x32xf32>
    %118 = math.exp %117 : vector<2x32xf32>
    %cst_25 = arith.constant 1.000000e+00 : f32
    %119 = vector.broadcast %cst_25 : f32 to vector<2x32xf32>
    %120 = arith.addf %119, %118 : vector<2x32xf32>
    %121 = arith.divf %119, %120 : vector<2x32xf32>
    %122 = arith.mulf %113, %95 : vector<2x32xf32>
    %123 = arith.mulf %107, %115 : vector<2x32xf32>
    %124 = arith.addf %122, %123 : vector<2x32xf32>
    %125 = math.tanh %124 : vector<2x32xf32>
    %126 = arith.mulf %121, %125 : vector<2x32xf32>
    %127 = vector.extract_strided_slice %7 {offsets = [0, 4, 0], sizes = [2, 1, 128], strides = [1, 1, 1]} : vector<2x8x128xf32> to vector<2x1x128xf32>
    %128 = vector.shape_cast %127 : vector<2x1x128xf32> to vector<2x128xf32>
    %cst_26 = arith.constant dense<0.000000e+00> : vector<2x128xf32>
    %129 = tpu.matmul %126, %8, %cst_26 {dimension_numbers = #tpu.dot_dimension_numbers<[1], [0], [0], [1], [0, 0, 1, 1], [], []>} : vector<2x32xf32>, vector<32x128xf32>, vector<2x128xf32> -> vector<2x128xf32>
    %130 = arith.addf %128, %129 : vector<2x128xf32>
    %131 = vector.extract_strided_slice %130 {offsets = [0, 0], sizes = [2, 32], strides = [1, 1]} : vector<2x128xf32> to vector<2x32xf32>
    %132 = arith.negf %131 : vector<2x32xf32>
    %133 = math.exp %132 : vector<2x32xf32>
    %cst_27 = arith.constant 1.000000e+00 : f32
    %134 = vector.broadcast %cst_27 : f32 to vector<2x32xf32>
    %135 = arith.addf %134, %133 : vector<2x32xf32>
    %136 = arith.divf %134, %135 : vector<2x32xf32>
    %137 = vector.extract_strided_slice %130 {offsets = [0, 32], sizes = [2, 32], strides = [1, 1]} : vector<2x128xf32> to vector<2x32xf32>
    %138 = arith.negf %137 : vector<2x32xf32>
    %139 = math.exp %138 : vector<2x32xf32>
    %cst_28 = arith.constant 1.000000e+00 : f32
    %140 = vector.broadcast %cst_28 : f32 to vector<2x32xf32>
    %141 = arith.addf %140, %139 : vector<2x32xf32>
    %142 = arith.divf %140, %141 : vector<2x32xf32>
    %143 = vector.extract_strided_slice %130 {offsets = [0, 64], sizes = [2, 32], strides = [1, 1]} : vector<2x128xf32> to vector<2x32xf32>
    %144 = math.tanh %143 : vector<2x32xf32>
    %145 = vector.extract_strided_slice %130 {offsets = [0, 96], sizes = [2, 32], strides = [1, 1]} : vector<2x128xf32> to vector<2x32xf32>
    %146 = arith.negf %145 : vector<2x32xf32>
    %147 = math.exp %146 : vector<2x32xf32>
    %cst_29 = arith.constant 1.000000e+00 : f32
    %148 = vector.broadcast %cst_29 : f32 to vector<2x32xf32>
    %149 = arith.addf %148, %147 : vector<2x32xf32>
    %150 = arith.divf %148, %149 : vector<2x32xf32>
    %151 = arith.mulf %142, %124 : vector<2x32xf32>
    %152 = arith.mulf %136, %144 : vector<2x32xf32>
    %153 = arith.addf %151, %152 : vector<2x32xf32>
    %154 = math.tanh %153 : vector<2x32xf32>
    %155 = arith.mulf %150, %154 : vector<2x32xf32>
    %156 = vector.extract_strided_slice %7 {offsets = [0, 5, 0], sizes = [2, 1, 128], strides = [1, 1, 1]} : vector<2x8x128xf32> to vector<2x1x128xf32>
    %157 = vector.shape_cast %156 : vector<2x1x128xf32> to vector<2x128xf32>
    %cst_30 = arith.constant dense<0.000000e+00> : vector<2x128xf32>
    %158 = tpu.matmul %155, %8, %cst_30 {dimension_numbers = #tpu.dot_dimension_numbers<[1], [0], [0], [1], [0, 0, 1, 1], [], []>} : vector<2x32xf32>, vector<32x128xf32>, vector<2x128xf32> -> vector<2x128xf32>
    %159 = arith.addf %157, %158 : vector<2x128xf32>
    %160 = vector.extract_strided_slice %159 {offsets = [0, 0], sizes = [2, 32], strides = [1, 1]} : vector<2x128xf32> to vector<2x32xf32>
    %161 = arith.negf %160 : vector<2x32xf32>
    %162 = math.exp %161 : vector<2x32xf32>
    %cst_31 = arith.constant 1.000000e+00 : f32
    %163 = vector.broadcast %cst_31 : f32 to vector<2x32xf32>
    %164 = arith.addf %163, %162 : vector<2x32xf32>
    %165 = arith.divf %163, %164 : vector<2x32xf32>
    %166 = vector.extract_strided_slice %159 {offsets = [0, 32], sizes = [2, 32], strides = [1, 1]} : vector<2x128xf32> to vector<2x32xf32>
    %167 = arith.negf %166 : vector<2x32xf32>
    %168 = math.exp %167 : vector<2x32xf32>
    %cst_32 = arith.constant 1.000000e+00 : f32
    %169 = vector.broadcast %cst_32 : f32 to vector<2x32xf32>
    %170 = arith.addf %169, %168 : vector<2x32xf32>
    %171 = arith.divf %169, %170 : vector<2x32xf32>
    %172 = vector.extract_strided_slice %159 {offsets = [0, 64], sizes = [2, 32], strides = [1, 1]} : vector<2x128xf32> to vector<2x32xf32>
    %173 = math.tanh %172 : vector<2x32xf32>
    %174 = vector.extract_strided_slice %159 {offsets = [0, 96], sizes = [2, 32], strides = [1, 1]} : vector<2x128xf32> to vector<2x32xf32>
    %175 = arith.negf %174 : vector<2x32xf32>
    %176 = math.exp %175 : vector<2x32xf32>
    %cst_33 = arith.constant 1.000000e+00 : f32
    %177 = vector.broadcast %cst_33 : f32 to vector<2x32xf32>
    %178 = arith.addf %177, %176 : vector<2x32xf32>
    %179 = arith.divf %177, %178 : vector<2x32xf32>
    %180 = arith.mulf %171, %153 : vector<2x32xf32>
    %181 = arith.mulf %165, %173 : vector<2x32xf32>
    %182 = arith.addf %180, %181 : vector<2x32xf32>
    %183 = math.tanh %182 : vector<2x32xf32>
    %184 = arith.mulf %179, %183 : vector<2x32xf32>
    %185 = vector.extract_strided_slice %7 {offsets = [0, 6, 0], sizes = [2, 1, 128], strides = [1, 1, 1]} : vector<2x8x128xf32> to vector<2x1x128xf32>
    %186 = vector.shape_cast %185 : vector<2x1x128xf32> to vector<2x128xf32>
    %cst_34 = arith.constant dense<0.000000e+00> : vector<2x128xf32>
    %187 = tpu.matmul %184, %8, %cst_34 {dimension_numbers = #tpu.dot_dimension_numbers<[1], [0], [0], [1], [0, 0, 1, 1], [], []>} : vector<2x32xf32>, vector<32x128xf32>, vector<2x128xf32> -> vector<2x128xf32>
    %188 = arith.addf %186, %187 : vector<2x128xf32>
    %189 = vector.extract_strided_slice %188 {offsets = [0, 0], sizes = [2, 32], strides = [1, 1]} : vector<2x128xf32> to vector<2x32xf32>
    %190 = arith.negf %189 : vector<2x32xf32>
    %191 = math.exp %190 : vector<2x32xf32>
    %cst_35 = arith.constant 1.000000e+00 : f32
    %192 = vector.broadcast %cst_35 : f32 to vector<2x32xf32>
    %193 = arith.addf %192, %191 : vector<2x32xf32>
    %194 = arith.divf %192, %193 : vector<2x32xf32>
    %195 = vector.extract_strided_slice %188 {offsets = [0, 32], sizes = [2, 32], strides = [1, 1]} : vector<2x128xf32> to vector<2x32xf32>
    %196 = arith.negf %195 : vector<2x32xf32>
    %197 = math.exp %196 : vector<2x32xf32>
    %cst_36 = arith.constant 1.000000e+00 : f32
    %198 = vector.broadcast %cst_36 : f32 to vector<2x32xf32>
    %199 = arith.addf %198, %197 : vector<2x32xf32>
    %200 = arith.divf %198, %199 : vector<2x32xf32>
    %201 = vector.extract_strided_slice %188 {offsets = [0, 64], sizes = [2, 32], strides = [1, 1]} : vector<2x128xf32> to vector<2x32xf32>
    %202 = math.tanh %201 : vector<2x32xf32>
    %203 = vector.extract_strided_slice %188 {offsets = [0, 96], sizes = [2, 32], strides = [1, 1]} : vector<2x128xf32> to vector<2x32xf32>
    %204 = arith.negf %203 : vector<2x32xf32>
    %205 = math.exp %204 : vector<2x32xf32>
    %cst_37 = arith.constant 1.000000e+00 : f32
    %206 = vector.broadcast %cst_37 : f32 to vector<2x32xf32>
    %207 = arith.addf %206, %205 : vector<2x32xf32>
    %208 = arith.divf %206, %207 : vector<2x32xf32>
    %209 = arith.mulf %200, %182 : vector<2x32xf32>
    %210 = arith.mulf %194, %202 : vector<2x32xf32>
    %211 = arith.addf %209, %210 : vector<2x32xf32>
    %212 = math.tanh %211 : vector<2x32xf32>
    %213 = arith.mulf %208, %212 : vector<2x32xf32>
    %214 = vector.extract_strided_slice %7 {offsets = [0, 7, 0], sizes = [2, 1, 128], strides = [1, 1, 1]} : vector<2x8x128xf32> to vector<2x1x128xf32>
    %215 = vector.shape_cast %214 : vector<2x1x128xf32> to vector<2x128xf32>
    %cst_38 = arith.constant dense<0.000000e+00> : vector<2x128xf32>
    %216 = tpu.matmul %213, %8, %cst_38 {dimension_numbers = #tpu.dot_dimension_numbers<[1], [0], [0], [1], [0, 0, 1, 1], [], []>} : vector<2x32xf32>, vector<32x128xf32>, vector<2x128xf32> -> vector<2x128xf32>
    %217 = arith.addf %215, %216 : vector<2x128xf32>
    %218 = vector.extract_strided_slice %217 {offsets = [0, 0], sizes = [2, 32], strides = [1, 1]} : vector<2x128xf32> to vector<2x32xf32>
    %219 = arith.negf %218 : vector<2x32xf32>
    %220 = math.exp %219 : vector<2x32xf32>
    %cst_39 = arith.constant 1.000000e+00 : f32
    %221 = vector.broadcast %cst_39 : f32 to vector<2x32xf32>
    %222 = arith.addf %221, %220 : vector<2x32xf32>
    %223 = arith.divf %221, %222 : vector<2x32xf32>
    %224 = vector.extract_strided_slice %217 {offsets = [0, 32], sizes = [2, 32], strides = [1, 1]} : vector<2x128xf32> to vector<2x32xf32>
    %225 = arith.negf %224 : vector<2x32xf32>
    %226 = math.exp %225 : vector<2x32xf32>
    %cst_40 = arith.constant 1.000000e+00 : f32
    %227 = vector.broadcast %cst_40 : f32 to vector<2x32xf32>
    %228 = arith.addf %227, %226 : vector<2x32xf32>
    %229 = arith.divf %227, %228 : vector<2x32xf32>
    %230 = vector.extract_strided_slice %217 {offsets = [0, 64], sizes = [2, 32], strides = [1, 1]} : vector<2x128xf32> to vector<2x32xf32>
    %231 = math.tanh %230 : vector<2x32xf32>
    %232 = vector.extract_strided_slice %217 {offsets = [0, 96], sizes = [2, 32], strides = [1, 1]} : vector<2x128xf32> to vector<2x32xf32>
    %233 = arith.negf %232 : vector<2x32xf32>
    %234 = math.exp %233 : vector<2x32xf32>
    %cst_41 = arith.constant 1.000000e+00 : f32
    %235 = vector.broadcast %cst_41 : f32 to vector<2x32xf32>
    %236 = arith.addf %235, %234 : vector<2x32xf32>
    %237 = arith.divf %235, %236 : vector<2x32xf32>
    %238 = arith.mulf %229, %211 : vector<2x32xf32>
    %239 = arith.mulf %223, %231 : vector<2x32xf32>
    %240 = arith.addf %238, %239 : vector<2x32xf32>
    %241 = math.tanh %240 : vector<2x32xf32>
    %242 = arith.mulf %237, %241 : vector<2x32xf32>
    %243 = arith.truncf %242 : vector<2x32xf32> to vector<2x32xbf16>
    %c0_42 = arith.constant 0 : index
    %c0_43 = arith.constant 0 : index
    %244 = vector.load %arg4[%c0_42, %c0_43] : memref<32x1024xbf16, #tpu.memory_space<vmem>>, vector<32x1024xbf16>
    %cst_44 = arith.constant dense<0.000000e+00> : vector<2x1024xf32>
    %245 = tpu.matmul %243, %244, %cst_44 {dimension_numbers = #tpu.dot_dimension_numbers<[1], [0], [0], [1], [0, 0, 1, 1], [], []>} : vector<2x32xbf16>, vector<32x1024xbf16>, vector<2x1024xf32> -> vector<2x1024xf32>
    %c0_45 = arith.constant 0 : index
    %c0_46 = arith.constant 0 : index
    %246 = vector.load %arg5[%c0_45, %c0_46] : memref<1x1024xf32, #tpu.memory_space<vmem>>, vector<1x1024xf32>
    %247 = vector.broadcast %246 : vector<1x1024xf32> to vector<2x1024xf32>
    %248 = arith.addf %245, %247 : vector<2x1024xf32>
    %249 = math.tanh %248 : vector<2x1024xf32>
    %250 = arith.truncf %249 : vector<2x1024xf32> to vector<2x1024xbf16>
    %c0_47 = arith.constant 0 : index
    %c0_48 = arith.constant 0 : index
    %251 = vector.load %arg6[%c0_47, %c0_48] : memref<1024x1024xbf16, #tpu.memory_space<vmem>>, vector<1024x1024xbf16>
    %cst_49 = arith.constant dense<0.000000e+00> : vector<2x1024xf32>
    %252 = tpu.matmul %250, %251, %cst_49 {dimension_numbers = #tpu.dot_dimension_numbers<[1], [0], [0], [1], [0, 0, 1, 1], [], []>} : vector<2x1024xbf16>, vector<1024x1024xbf16>, vector<2x1024xf32> -> vector<2x1024xf32>
    %c0_50 = arith.constant 0 : index
    %c0_51 = arith.constant 0 : index
    %253 = vector.load %arg7[%c0_50, %c0_51] : memref<1x1024xf32, #tpu.memory_space<vmem>>, vector<1x1024xf32>
    %254 = vector.broadcast %253 : vector<1x1024xf32> to vector<2x1024xf32>
    %255 = arith.addf %252, %254 : vector<2x1024xf32>
    %256 = math.tanh %255 : vector<2x1024xf32>
    %257 = arith.truncf %256 : vector<2x1024xf32> to vector<2x1024xbf16>
    %c0_52 = arith.constant 0 : index
    %c0_53 = arith.constant 0 : index
    %258 = vector.load %arg8[%c0_52, %c0_53] : memref<1024x4xbf16, #tpu.memory_space<vmem>>, vector<1024x4xbf16>
    %cst_54 = arith.constant dense<0.000000e+00> : vector<2x4xf32>
    %259 = tpu.matmul %257, %258, %cst_54 {dimension_numbers = #tpu.dot_dimension_numbers<[1], [0], [0], [1], [0, 0, 1, 1], [], []>} : vector<2x1024xbf16>, vector<1024x4xbf16>, vector<2x4xf32> -> vector<2x4xf32>
    %c0_55 = arith.constant 0 : index
    %c0_56 = arith.constant 0 : index
    %260 = vector.load %arg9[%c0_55, %c0_56] : memref<1x4xf32, #tpu.memory_space<vmem>>, vector<1x4xf32>
    %261 = vector.broadcast %260 : vector<1x4xf32> to vector<2x4xf32>
    %262 = arith.addf %259, %261 : vector<2x4xf32>
    %c0_57 = arith.constant 0 : index
    %c0_58 = arith.constant 0 : index
    %263 = vector.load %arg10[%c0_57, %c0_58] : memref<2x4xf32, #tpu.memory_space<vmem>>, vector<2x4xf32>
    tpu.vector_store %arg10[%c0_57, %c0_58], %262 {strides = array<i32>} : memref<2x4xf32, #tpu.memory_space<vmem>>, vector<2x4xf32>,
    return
  }
}

</mosaic_0001>

<llo_original>
// kernel: lstm_mlp_forward.1
$region0: #{lstm_mlp_forward.1}
  #allocation0 [shape = 'u32[]', space=smem, size = 0x4, offset = 0x4, fixed_abs, tag = 'smem constant byte address 0x4 - core index']
  #allocation1 [shape = 'u32[144,128]{1,0:T(1,128)}', space=vmem, size = 0x12000, scoped, tag = 'internal scratch']
  %s0 = inlined_call_operand.hbm [shape: f32[2,8,16], index: 0, kind: input, shape index: {}]
  %s1 = inlined_call_operand.hbm [shape: f32[16,128], index: 1, kind: input, shape index: {}]
  %s2 = inlined_call_operand.hbm [shape: f32[32,128], index: 2, kind: input, shape index: {}]
  %s3 = inlined_call_operand.hbm [shape: f32[1,128], index: 3, kind: input, shape index: {}]
  %s4 = inlined_call_operand.hbm [shape: bf16[32,1024], index: 4, kind: input, shape index: {}]
  %s5 = inlined_call_operand.hbm [shape: f32[1,1024], index: 5, kind: input, shape index: {}]
  %s6 = inlined_call_operand.hbm [shape: bf16[1024,1024], index: 6, kind: input, shape index: {}]
  %s7 = inlined_call_operand.hbm [shape: f32[1,1024], index: 7, kind: input, shape index: {}]
  %s8 = inlined_call_operand.vmem [shape: bf16[1024,4], index: 8, kind: input, shape index: {}]
  %s9 = inlined_call_operand.hbm [shape: f32[1,4], index: 9, kind: input, shape index: {}]
  %s10 = inlined_call_operand.hbm [shape: f32[2,4], index: 10, kind: output, shape index: {}]
  %s11 = sld [smem:[#allocation0]]
  $region86: #{lstm_mlp_forward.1} parent=0
    _
  %s13 = ssub.s32 1, %s11
  %s14 = scalar_select 0, %s13, %s11
  $region1: #{lstm_mlp_forward.1} parent=0
    #allocation2 [shape = 'u8[8192]{0}', space=vmem, size = 0x2000, scoped, tag = 'input window, operand 0, single buffered']
    #allocation3 [shape = 's32[1]{0}', space=sflag, size = 0x4, scoped, tag = 'scoped memory for lstm_mlp_forward.1']
    #allocation4 [shape = 's32[1]{0}', space=sflag, size = 0x4, scoped, tag = 'scoped memory for lstm_mlp_forward.1']
    #allocation5 [shape = 'u8[8192]{0}', space=vmem, size = 0x2000, scoped, tag = 'input window, operand 1, single buffered']
    #allocation6 [shape = 's32[1]{0}', space=sflag, size = 0x4, scoped, tag = 'scoped memory for lstm_mlp_forward.1']
    #allocation7 [shape = 'u8[16384]{0}', space=vmem, size = 0x4000, scoped, tag = 'input window, operand 2, single buffered']
    #allocation8 [shape = 'u8[512]{0}', space=vmem, size = 0x400, scoped, tag = 'input window, operand 3, single buffered']
    #allocation9 [shape = 's32[1]{0}', space=sflag, size = 0x4, scoped, tag = 'scoped memory for lstm_mlp_forward.1']
    #allocation10 [shape = 'u8[65536]{0}', space=vmem, size = 0x10000, scoped, tag = 'input window, operand 4, single buffered']
    #allocation11 [shape = 'u8[4096]{0}', space=vmem, size = 0x1000, scoped, tag = 'input window, operand 5, single buffered']
    #allocation12 [shape = 's32[1]{0}', space=sflag, size = 0x4, scoped, tag = 'scoped memory for lstm_mlp_forward.1']
    #allocation13 [shape = 'u8[2097152]{0}', space=vmem, size = 0x200000, scoped, tag = 'input window, operand 6, single buffered']
    #allocation14 [shape = 'u8[4096]{0}', space=vmem, size = 0x1000, scoped, tag = 'input window, operand 7, single buffered']
    #allocation15 [shape = 's32[1]{0}', space=sflag, size = 0x4, scoped, tag = 'scoped memory for lstm_mlp_forward.1']
    #allocation16 [shape = 'u8[512]{0}', space=vmem, size = 0x400, scoped, tag = 'input window, operand 9, single buffered']
    #allocation17 [shape = 'u8[1024]{0}', space=vmem, size = 0x400, scoped, tag = 'output window, operand 0, single buffered']
    %15 = vsyncpa [#allocation3], 0
    %16 = vsyncpa [#allocation6], 0
    %17 = vsyncpa [#allocation9], 0
    %18 = vsyncpa [#allocation12], 0
    %19 = vsyncpa [#allocation15], 0
    %20 = vsyncpa [#allocation4], 0
    // Predicated region
    $region2: #{lstm_mlp_forward.1} parent=1 // pred_check
      _
    $region3: #{lstm_mlp_forward.1} parent=1 // pred_check_branch
      %22 = sbr.rel (0) target = $region5
    $region4: #{lstm_mlp_forward.1} parent=1 // pred_region
      %s24 = ssub.s32 256, 256
      %25 = vsyncadd [#allocation3], %s24
      %s26 = sshll.u32 [#allocation2], 4
      %s27 = int_to_ptr.vmem [resolvable:$true] %s26
      %32 = dma.hbm_to_vmem [thread:$0]  %s0, 256, %s27, [#allocation3], 128, 128, 8
    $region5: #{lstm_mlp_forward.1} parent=1 // pred_fallthru
      _
    // Predicated region
    $region6: #{lstm_mlp_forward.1} parent=1 // pred_check
      _
    $region7: #{lstm_mlp_forward.1} parent=1 // pred_check_branch
      %34 = sbr.rel (0) target = $region9
    $region8: #{lstm_mlp_forward.1} parent=1 // pred_region
      %s36 = ssub.s32 256, 256
      %37 = vsyncadd [#allocation6], %s36
      %s38 = sshll.u32 [#allocation5], 4
      %s39 = int_to_ptr.vmem [resolvable:$true] %s38
      %44 = dma.hbm_to_vmem [thread:$0]  %s1, 256, %s39, [#allocation6], 128, 128, 8
    $region9: #{lstm_mlp_forward.1} parent=1 // pred_fallthru
      _
    // Predicated region
    $region10: #{lstm_mlp_forward.1} parent=1 // pred_check
      _
    $region11: #{lstm_mlp_forward.1} parent=1 // pred_check_branch
      %46 = sbr.rel (0) target = $region13
    $region12: #{lstm_mlp_forward.1} parent=1 // pred_region
      %s48 = ssub.s32 512, 512
      %49 = vsyncadd [#allocation6], %s48
      %s50 = sshll.u32 [#allocation7], 4
      %s51 = int_to_ptr.vmem [resolvable:$true] %s50
      %56 = dma.hbm_to_vmem [thread:$0]  %s2, 512, %s51, [#allocation6], 128, 128, 8
    $region13: #{lstm_mlp_forward.1} parent=1 // pred_fallthru
      _
    // Predicated region
    $region14: #{lstm_mlp_forward.1} parent=1 // pred_check
      _
    $region15: #{lstm_mlp_forward.1} parent=1 // pred_check_branch
      %58 = sbr.rel (0) target = $region17
    $region16: #{lstm_mlp_forward.1} parent=1 // pred_region
      %s60 = ssub.s32 16, 16
      %61 = vsyncadd [#allocation9], %s60
      %s63 = sshll.u32 [#allocation8], 4
      %s64 = int_to_ptr.vmem [resolvable:$true] %s63
      %66 = dma.hbm_to_vmem [thread:$0]  %s3, 16, %s64, [#allocation9]
    $region17: #{lstm_mlp_forward.1} parent=1 // pred_fallthru
      _
    // Predicated region
    $region18: #{lstm_mlp_forward.1} parent=1 // pred_check
      _
    $region19: #{lstm_mlp_forward.1} parent=1 // pred_check_branch
      %68 = sbr.rel (0) target = $region21
    $region20: #{lstm_mlp_forward.1} parent=1 // pred_region
      %s70 = ssub.s32 2048, 2048
      %71 = vsyncadd [#allocation9], %s70
      %s72 = sshll.u32 [#allocation10], 4
      %s73 = int_to_ptr.vmem [resolvable:$true] %s72
      %78 = dma.hbm_to_vmem [thread:$0]  %s4, 2048, %s73, [#allocation9], 512, 512, 32
    $region21: #{lstm_mlp_forward.1} parent=1 // pred_fallthru
      _
    // Predicated region
    $region22: #{lstm_mlp_forward.1} parent=1 // pred_check
      _
    $region23: #{lstm_mlp_forward.1} parent=1 // pred_check_branch
      %80 = sbr.rel (0) target = $region25
    $region24: #{lstm_mlp_forward.1} parent=1 // pred_region
      %s82 = ssub.s32 128, 128
      %83 = vsyncadd [#allocation12], %s82
      %s85 = sshll.u32 [#allocation11], 4
      %s86 = int_to_ptr.vmem [resolvable:$true] %s85
      %88 = dma.hbm_to_vmem [thread:$0]  %s5, 128, %s86, [#allocation12]
    $region25: #{lstm_mlp_forward.1} parent=1 // pred_fallthru
      _
    // Predicated region
    $region26: #{lstm_mlp_forward.1} parent=1 // pred_check
      _
    $region27: #{lstm_mlp_forward.1} parent=1 // pred_check_branch
      %90 = sbr.rel (0) target = $region29
    $region28: #{lstm_mlp_forward.1} parent=1 // pred_region
      %s92 = ssub.s32 65536, 65536
      %93 = vsyncadd [#allocation12], %s92
      %s94 = sshll.u32 [#allocation13], 4
      %s95 = int_to_ptr.vmem [resolvable:$true] %s94
      %100 = dma.hbm_to_vmem [thread:$0]  %s6, 65536, %s95, [#allocation12], 512, 512, 32
    $region29: #{lstm_mlp_forward.1} parent=1 // pred_fallthru
      _
    // Predicated region
    $region30: #{lstm_mlp_forward.1} parent=1 // pred_check
      _
    $region31: #{lstm_mlp_forward.1} parent=1 // pred_check_branch
      %102 = sbr.rel (0) target = $region33
    $region32: #{lstm_mlp_forward.1} parent=1 // pred_region
      %s104 = ssub.s32 128, 128
      %105 = vsyncadd [#allocation15], %s104
      %s107 = sshll.u32 [#allocation14], 4
      %s108 = int_to_ptr.vmem [resolvable:$true] %s107
      %110 = dma.hbm_to_vmem [thread:$0]  %s7, 128, %s108, [#allocation15]
    $region33: #{lstm_mlp_forward.1} parent=1 // pred_fallthru
      _
    // Predicated region
    $region34: #{lstm_mlp_forward.1} parent=1 // pred_check
      _
    $region35: #{lstm_mlp_forward.1} parent=1 // pred_check_branch
      %112 = sbr.rel (0) target = $region37
    $region36: #{lstm_mlp_forward.1} parent=1 // pred_region
      _
    $region37: #{lstm_mlp_forward.1} parent=1 // pred_fallthru
      _
    // Predicated region
    $region38: #{lstm_mlp_forward.1} parent=1 // pred_check
      _
    $region39: #{lstm_mlp_forward.1} parent=1 // pred_check_branch
      %114 = sbr.rel (0) target = $region41
    $region40: #{lstm_mlp_forward.1} parent=1 // pred_region
      %s116 = ssub.s32 16, 16
      %117 = vsyncadd [#allocation15], %s116
      %s119 = sshll.u32 [#allocation16], 4
      %s120 = int_to_ptr.vmem [resolvable:$true] %s119
      %122 = dma.hbm_to_vmem [thread:$0]  %s9, 16, %s120, [#allocation15]
    $region41: #{lstm_mlp_forward.1} parent=1 // pred_fallthru
      _
    // Predicated region
    $region42: #{lstm_mlp_forward.1} parent=1 // pred_check
      _
    $region43: #{lstm_mlp_forward.1} parent=1 // pred_check_branch
      %124 = sbr.rel (0) target = $region45
    $region44: #{lstm_mlp_forward.1} parent=1 // pred_region
      %125 = dma.done [#allocation3], 256
    $region45: #{lstm_mlp_forward.1} parent=1 // pred_fallthru
      _
    // Predicated region
    $region46: #{lstm_mlp_forward.1} parent=1 // pred_check
      _
    $region47: #{lstm_mlp_forward.1} parent=1 // pred_check_branch
      %127 = sbr.rel (0) target = $region49
    $region48: #{lstm_mlp_forward.1} parent=1 // pred_region
      %128 = dma.done [#allocation6], 256
    $region49: #{lstm_mlp_forward.1} parent=1 // pred_fallthru
      _
    // Predicated region
    $region50: #{lstm_mlp_forward.1} parent=1 // pred_check
      _
    $region51: #{lstm_mlp_forward.1} parent=1 // pred_check_branch
      %130 = sbr.rel (0) target = $region53
    $region52: #{lstm_mlp_forward.1} parent=1 // pred_region
      %131 = dma.done [#allocation6], 512
    $region53: #{lstm_mlp_forward.1} parent=1 // pred_fallthru
      _
    // Predicated region
    $region54: #{lstm_mlp_forward.1} parent=1 // pred_check
      _
    $region55: #{lstm_mlp_forward.1} parent=1 // pred_check_branch
      %133 = sbr.rel (0) target = $region57
    $region56: #{lstm_mlp_forward.1} parent=1 // pred_region
      %134 = dma.done [#allocation9], 16
    $region57: #{lstm_mlp_forward.1} parent=1 // pred_fallthru
      _
    // Predicated region
    $region58: #{lstm_mlp_forward.1} parent=1 // pred_check
      _
    $region59: #{lstm_mlp_forward.1} parent=1 // pred_check_branch
      %136 = sbr.rel (0) target = $region61
    $region60: #{lstm_mlp_forward.1} parent=1 // pred_region
      %137 = dma.done [#allocation9], 2048
    $region61: #{lstm_mlp_forward.1} parent=1 // pred_fallthru
      _
    // Predicated region
    $region62: #{lstm_mlp_forward.1} parent=1 // pred_check
      _
    $region63: #{lstm_mlp_forward.1} parent=1 // pred_check_branch
      %139 = sbr.rel (0) target = $region65
    $region64: #{lstm_mlp_forward.1} parent=1 // pred_region
      %140 = dma.done [#allocation12], 128
    $region65: #{lstm_mlp_forward.1} parent=1 // pred_fallthru
      _
    // Predicated region
    $region66: #{lstm_mlp_forward.1} parent=1 // pred_check
      _
    $region67: #{lstm_mlp_forward.1} parent=1 // pred_check_branch
      %142 = sbr.rel (0) target = $region69
    $region68: #{lstm_mlp_forward.1} parent=1 // pred_region
      %143 = dma.done [#allocation12], 65536
    $region69: #{lstm_mlp_forward.1} parent=1 // pred_fallthru
      _
    // Predicated region
    $region70: #{lstm_mlp_forward.1} parent=1 // pred_check
      _
    $region71: #{lstm_mlp_forward.1} parent=1 // pred_check_branch
      %145 = sbr.rel (0) target = $region73
    $region72: #{lstm_mlp_forward.1} parent=1 // pred_region
      %146 = dma.done [#allocation15], 128
    $region73: #{lstm_mlp_forward.1} parent=1 // pred_fallthru
      _
    // Predicated region
    $region74: #{lstm_mlp_forward.1} parent=1 // pred_check
      _
    $region75: #{lstm_mlp_forward.1} parent=1 // pred_check_branch
      %148 = sbr.rel (0) target = $region77
    $region76: #{lstm_mlp_forward.1} parent=1 // pred_region
      %149 = dma.done [#allocation15], 16
    $region77: #{lstm_mlp_forward.1} parent=1 // pred_fallthru
      _
    %v151 = vld [vmem:[#allocation2] sm:$0xff]
    %v152 = vld [vmem:[#allocation2 + $0x8] sm:$0xff]
    %v153 = vld [vmem:[#allocation5] sm:$0xff]
    %v154 = vld [vmem:[#allocation5 + $0x8] sm:$0xff]
    %v155 = vld [vmem:[#allocation8] sm:$0x1]
    %v157 = vlaneseq
    %v158 = vshrl.u32 %v157, 7
    %v159 = vsub.s32 0, %v158
    %v160 = vrot.slane %v155, %v159
    %vm162 = vcmask 130048
    %v164 = vsel %vm162, %v151, 0
    %v167 = vsel %vm162, %v152, 0
    %169 = vmatprep.subr.mxu0 0.0
    %170 = vmatpush1.msra.mxu0 0.0
    %171 = vmatprep.subr.mxu0 0.0
    %172 = vmatpush1.msra.mxu0 0.0
    %173 = vmatprep.subr.mxu0 0.0
    %174 = vmatpush1.msra.mxu0 0.0
    %175 = vmatprep.subr.mxu0 0.0
    %176 = vmatpush1.msra.mxu0 0.0
    %177 = vmatprep.subr.mxu0 0.0
    %178 = vmatpush1.msra.mxu0 0.0
    %179 = vmatprep.subr.mxu0 0.0
    %180 = vmatpush1.msra.mxu0 0.0
    %181 = vmatprep.subr.mxu0 0.0
    %182 = vmatpush1.msra.mxu0 0.0
    %183 = vmatprep.subr.mxu0 0.0
    %184 = vmatpush1.msra.mxu0 0.0
    %185 = vmatprep.subr.mxu0 0.0
    %186 = vmatpush1.msra.mxu0 0.0
    %187 = vmatprep.subr.mxu0 0.0
    %188 = vmatpush1.msra.mxu0 0.0
    %189 = vmatprep.subr.mxu0 0.0
    %190 = vmatpush1.msra.mxu0 0.0
    %191 = vmatprep.subr.mxu0 0.0
    %192 = vmatpush1.msra.mxu0 0.0
    %193 = vmatprep.subr.mxu0 0.0
    %194 = vmatpush1.msra.mxu0 0.0
    %195 = vmatprep.subr.mxu0 0.0
    %196 = vmatpush1.msra.mxu0 0.0
    %197 = vmatprep.subr.mxu0 0.0
    %198 = vmatpush1.msra.mxu0 %v154
    %199 = vmatprep.subr.mxu0 0.0
    %200 = vmatpush1.msra.mxu0 %v153
    %201 = vmatprep.subr.mxu0 0.0
    %202 = vmatpush2.msra.mxu0 0.0
    %203 = vmatprep.subr.mxu0 0.0
    %204 = vmatpush2.msra.mxu0 0.0
    %205 = vmatprep.subr.mxu0 0.0
    %206 = vmatpush2.msra.mxu0 0.0
    %207 = vmatprep.subr.mxu0 0.0
    %208 = vmatpush2.msra.mxu0 0.0
    %209 = vmatprep.subr.mxu0 0.0
    %210 = vmatpush2.msra.mxu0 0.0
    %211 = vmatprep.subr.mxu0 0.0
    %212 = vmatpush2.msra.mxu0 0.0
    %213 = vmatprep.subr.mxu0 0.0
    %214 = vmatpush2.msra.mxu0 0.0
    %215 = vmatprep.subr.mxu0 0.0
    %216 = vmatpush2.msra.mxu0 0.0
    %217 = vmatprep.subr.mxu0 0.0
    %218 = vmatpush2.msra.mxu0 0.0
    %219 = vmatprep.subr.mxu0 0.0
    %220 = vmatpush2.msra.mxu0 0.0
    %221 = vmatprep.subr.mxu0 0.0
    %222 = vmatpush2.msra.mxu0 0.0
    %223 = vmatprep.subr.mxu0 0.0
    %224 = vmatpush2.msra.mxu0 0.0
    %225 = vmatprep.subr.mxu0 0.0
    %226 = vmatpush2.msra.mxu0 0.0
    %227 = vmatprep.subr.mxu0 0.0
    %228 = vmatpush2.msra.mxu0 0.0
    %229 = vmatprep.subr.mxu0 0.0
    %230 = vmatpush2.msra.mxu0 0.0
    %231 = vmatprep.subr.mxu0 0.0
    %232 = vmatpush2.msra.mxu0 0.0
    %233 = vmatprep.mubr.f32.mxu0 0.0
    %234 = vmatmul.mubr.f32.gmra.mxu0 %v164
    %v235 = vpop.f32.mrf.mxu0
    %v236 = vadd.f32 %v160, %v235
    %v237 = vpop.f32.mrf.mxu0
    %238 = vmatprep.mubr.f32.mxu0 0.0
    %239 = vmatmul.mubr.f32.gmra.mxu0 %v167
    %v240 = vpop.f32.mrf.mxu0
    %v241 = vadd.f32 %v160, %v240
    %v242 = vpop.f32.mrf.mxu0
    %243 = vdwg.mxu0
    %v244 = vld [vmem:[#allocation7] sm:$0xff]
    %v245 = vld [vmem:[#allocation7 + $0x8] sm:$0xff]
    %v246 = vld [vmem:[#allocation7 + $0x10] sm:$0xff]
    %v247 = vld [vmem:[#allocation7 + $0x18] sm:$0xff]
    %vm248 = vcmask 261120
    %v250 = vsel %vm248, 0.0, 0
    %252 = vmatprep.subr.mxu0 0.0
    %253 = vmatpush1.msra.mxu0 0.0
    %254 = vmatprep.subr.mxu0 0.0
    %255 = vmatpush1.msra.mxu0 0.0
    %256 = vmatprep.subr.mxu0 0.0
    %257 = vmatpush1.msra.mxu0 0.0
    %258 = vmatprep.subr.mxu0 0.0
    %259 = vmatpush1.msra.mxu0 0.0
    %260 = vmatprep.subr.mxu0 0.0
    %261 = vmatpush1.msra.mxu0 0.0
    %262 = vmatprep.subr.mxu0 0.0
    %263 = vmatpush1.msra.mxu0 0.0
    %264 = vmatprep.subr.mxu0 0.0
    %265 = vmatpush1.msra.mxu0 0.0
    %266 = vmatprep.subr.mxu0 0.0
    %267 = vmatpush1.msra.mxu0 0.0
    %268 = vmatprep.subr.mxu0 0.0
    %269 = vmatpush1.msra.mxu0 0.0
    %270 = vmatprep.subr.mxu0 0.0
    %271 = vmatpush1.msra.mxu0 0.0
    %272 = vmatprep.subr.mxu0 0.0
    %273 = vmatpush1.msra.mxu0 0.0
    %274 = vmatprep.subr.mxu0 0.0
    %275 = vmatpush1.msra.mxu0 0.0
    %276 = vmatprep.subr.mxu0 0.0
    %277 = vmatpush1.msra.mxu0 %v247
    %278 = vmatprep.subr.mxu0 0.0
    %279 = vmatpush1.msra.mxu0 %v246
    %280 = vmatprep.subr.mxu0 0.0
    %281 = vmatpush1.msra.mxu0 %v245
    %282 = vmatprep.subr.mxu0 0.0
    %283 = vmatpush1.msra.mxu0 %v244
    %284 = vmatprep.subr.mxu0 0.0
    %285 = vmatpush2.msra.mxu0 0.0
    %286 = vmatprep.subr.mxu0 0.0
    %287 = vmatpush2.msra.mxu0 0.0
    %288 = vmatprep.subr.mxu0 0.0
    %289 = vmatpush2.msra.mxu0 0.0
    %290 = vmatprep.subr.mxu0 0.0
    %291 = vmatpush2.msra.mxu0 0.0
    %292 = vmatprep.subr.mxu0 0.0
    %293 = vmatpush2.msra.mxu0 0.0
    %294 = vmatprep.subr.mxu0 0.0
    %295 = vmatpush2.msra.mxu0 0.0
    %296 = vmatprep.subr.mxu0 0.0
    %297 = vmatpush2.msra.mxu0 0.0
    %298 = vmatprep.subr.mxu0 0.0
    %299 = vmatpush2.msra.mxu0 0.0
    %300 = vmatprep.subr.mxu0 0.0
    %301 = vmatpush2.msra.mxu0 0.0
    %302 = vmatprep.subr.mxu0 0.0
    %303 = vmatpush2.msra.mxu0 0.0
    %304 = vmatprep.subr.mxu0 0.0
    %305 = vmatpush2.msra.mxu0 0.0
    %306 = vmatprep.subr.mxu0 0.0
    %307 = vmatpush2.msra.mxu0 0.0
    %308 = vmatprep.subr.mxu0 0.0
    %309 = vmatpush2.msra.mxu0 0.0
    %310 = vmatprep.subr.mxu0 0.0
    %311 = vmatpush2.msra.mxu0 0.0
    %312 = vmatprep.subr.mxu0 0.0
    %313 = vmatpush2.msra.mxu0 0.0
    %314 = vmatprep.subr.mxu0 0.0
    %315 = vmatpush2.msra.mxu0 0.0
    %316 = vmatprep.mubr.f32.mxu0 0.0
    %317 = vmatmul.mubr.f32.gmra.mxu0 %v250
    %v318 = vpop.f32.mrf.mxu0
    %v319 = vadd.f32 0.0, %v318
    %v320 = vpop.f32.mrf.mxu0
    %321 = vdwg.mxu0
    %v323 = vrot.slane %v319, 1
    %v326 = vadd.f32 %v236, %v319
    %v327 = vadd.f32 %v241, %v323
    %v328 = vxor.u32 %v326, 2147483648
    %v329 = vxor.u32 %v327, 2147483648
    %v330 = vmul.f32 %v328, 1.442695
    %v331 = vpow.pop %v330
    %v332 = vmul.f32 %v329, 1.442695
    %v333 = vpow.pop %v332
    %v334 = vadd.f32 %v331, 1.0
    %v335 = vadd.f32 %v333, 1.0
    %v336 = vrcp.pop %v334
    %v337 = vmul.f32 1.0, %v336
    %v338 = vrcp.pop %v335
    %v339 = vmul.f32 1.0, %v338
    %v340 = vtanh.pop %v326
    %v341 = vtanh.pop %v327
    %v342 = vmul.f32 %v337, 0.0
    %v343 = vmul.f32 %v339, 0.0
    %346 = vrot.lane.b32.xlu0 %v340, 64
    %v347 = vpop.permute.xlu0 %346
    %348 = vrot.lane.b32.xlu0 %v341, 64
    %v349 = vpop.permute.xlu0 %348
    %v352 = vmul.f32 %v337, %v347
    %v353 = vmul.f32 %v339, %v349
    %356 = vrot.lane.b32.xlu0 %v352, 32
    %v357 = vpop.permute.xlu0 %356
    %358 = vrot.lane.b32.xlu0 %v353, 32
    %v359 = vpop.permute.xlu0 %358
    %v362 = vadd.f32 %v342, %v357
    %v363 = vadd.f32 %v343, %v359
    %v364 = vtanh.pop %v362
    %v365 = vtanh.pop %v363
    %368 = vrot.lane.b32.xlu0 %v364, 64
    %v369 = vpop.permute.xlu0 %368
    %370 = vrot.lane.b32.xlu0 %v365, 64
    %v371 = vpop.permute.xlu0 %370
    %v374 = vmul.f32 %v337, %v369
    %v375 = vmul.f32 %v339, %v371
    %v378 = vrot.slane %v375, 7
    %vm379 = vcmask 1041409
    %v380 = vsel %vm379, %v378, %v374
    %381 = vrot.lane.b32.xlu0 %v380, 32
    %v382 = vpop.permute.xlu0 %381
    %v383 = vsel %vm248, %v382, 0
    %385 = vmatprep.subr.mxu0 0.0
    %386 = vmatpush1.msra.mxu0 0.0
    %387 = vmatprep.subr.mxu0 0.0
    %388 = vmatpush1.msra.mxu0 0.0
    %389 = vmatprep.subr.mxu0 0.0
    %390 = vmatpush1.msra.mxu0 0.0
    %391 = vmatprep.subr.mxu0 0.0
    %392 = vmatpush1.msra.mxu0 0.0
    %393 = vmatprep.subr.mxu0 0.0
    %394 = vmatpush1.msra.mxu0 0.0
    %395 = vmatprep.subr.mxu0 0.0
    %396 = vmatpush1.msra.mxu0 0.0
    %397 = vmatprep.subr.mxu0 0.0
    %398 = vmatpush1.msra.mxu0 0.0
    %399 = vmatprep.subr.mxu0 0.0
    %400 = vmatpush1.msra.mxu0 0.0
    %401 = vmatprep.subr.mxu0 0.0
    %402 = vmatpush1.msra.mxu0 0.0
    %403 = vmatprep.subr.mxu0 0.0
    %404 = vmatpush1.msra.mxu0 0.0
    %405 = vmatprep.subr.mxu0 0.0
    %406 = vmatpush1.msra.mxu0 0.0
    %407 = vmatprep.subr.mxu0 0.0
    %408 = vmatpush1.msra.mxu0 0.0
    %409 = vmatprep.subr.mxu0 0.0
    %410 = vmatpush1.msra.mxu0 %v247
    %411 = vmatprep.subr.mxu0 0.0
    %412 = vmatpush1.msra.mxu0 %v246
    %413 = vmatprep.subr.mxu0 0.0
    %414 = vmatpush1.msra.mxu0 %v245
    %415 = vmatprep.subr.mxu0 0.0
    %416 = vmatpush1.msra.mxu0 %v244
    %417 = vmatprep.subr.mxu0 0.0
    %418 = vmatpush2.msra.mxu0 0.0
    %419 = vmatprep.subr.mxu0 0.0
    %420 = vmatpush2.msra.mxu0 0.0
    %421 = vmatprep.subr.mxu0 0.0
    %422 = vmatpush2.msra.mxu0 0.0
    %423 = vmatprep.subr.mxu0 0.0
    %424 = vmatpush2.msra.mxu0 0.0
    %425 = vmatprep.subr.mxu0 0.0
    %426 = vmatpush2.msra.mxu0 0.0
    %427 = vmatprep.subr.mxu0 0.0
    %428 = vmatpush2.msra.mxu0 0.0
    %429 = vmatprep.subr.mxu0 0.0
    %430 = vmatpush2.msra.mxu0 0.0
    %431 = vmatprep.subr.mxu0 0.0
    %432 = vmatpush2.msra.mxu0 0.0
    %433 = vmatprep.subr.mxu0 0.0
    %434 = vmatpush2.msra.mxu0 0.0
    %435 = vmatprep.subr.mxu0 0.0
    %436 = vmatpush2.msra.mxu0 0.0
    %437 = vmatprep.subr.mxu0 0.0
    %438 = vmatpush2.msra.mxu0 0.0
    %439 = vmatprep.subr.mxu0 0.0
    %440 = vmatpush2.msra.mxu0 0.0
    %441 = vmatprep.subr.mxu0 0.0
    %442 = vmatpush2.msra.mxu0 0.0
    %443 = vmatprep.subr.mxu0 0.0
    %444 = vmatpush2.msra.mxu0 0.0
    %445 = vmatprep.subr.mxu0 0.0
    %446 = vmatpush2.msra.mxu0 0.0
    %447 = vmatprep.subr.mxu0 0.0
    %448 = vmatpush2.msra.mxu0 0.0
    %449 = vmatprep.mubr.f32.mxu0 0.0
    %450 = vmatmul.mubr.f32.gmra.mxu0 %v383
    %v451 = vpop.f32.mrf.mxu0
    %v452 = vadd.f32 0.0, %v451
    %v453 = vpop.f32.mrf.mxu0
    %454 = vdwg.mxu0
    %v456 = vrot.slane %v452, 7
    %v459 = vadd.f32 %v236, %v456
    %v460 = vadd.f32 %v241, %v452
    %v461 = vxor.u32 %v459, 2147483648
    %v462 = vxor.u32 %v460, 2147483648
    %v463 = vmul.f32 %v461, 1.442695
    %v464 = vpow.pop %v463
    %v465 = vmul.f32 %v462, 1.442695
    %v466 = vpow.pop %v465
    %v467 = vadd.f32 %v464, 1.0
    %v468 = vadd.f32 %v466, 1.0
    %v469 = vrcp.pop %v467
    %v470 = vmul.f32 1.0, %v469
    %v471 = vrcp.pop %v468
    %v472 = vmul.f32 1.0, %v471
    %v473 = vtanh.pop %v459
    %v474 = vtanh.pop %v460
    %v477 = vrot.slane %v362, 7
    %v478 = vrot.slane %v363, 7
    %v481 = vmul.f32 %v470, %v477
    %v482 = vmul.f32 %v472, %v478
    %485 = vrot.lane.b32.xlu0 %v473, 64
    %v486 = vpop.permute.xlu0 %485
    %487 = vrot.lane.b32.xlu0 %v474, 64
    %v488 = vpop.permute.xlu0 %487
    %v491 = vmul.f32 %v470, %v486
    %v492 = vmul.f32 %v472, %v488
    %495 = vrot.lane.b32.xlu0 %v491, 32
    %v496 = vpop.permute.xlu0 %495
    %497 = vrot.lane.b32.xlu0 %v492, 32
    %v498 = vpop.permute.xlu0 %497
    %v501 = vadd.f32 %v481, %v496
    %v502 = vadd.f32 %v482, %v498
    %v503 = vtanh.pop %v501
    %v504 = vtanh.pop %v502
    %507 = vrot.lane.b32.xlu0 %v503, 64
    %v508 = vpop.permute.xlu0 %507
    %509 = vrot.lane.b32.xlu0 %v504, 64
    %v510 = vpop.permute.xlu0 %509
    %v513 = vmul.f32 %v470, %v508
    %v514 = vmul.f32 %v472, %v510
    %v517 = vrot.slane %v513, 1
    %v518 = vsel %vm379, %v514, %v517
    %519 = vrot.lane.b32.xlu0 %v518, 32
    %v520 = vpop.permute.xlu0 %519
    %v521 = vsel %vm248, %v520, 0
    %523 = vmatprep.subr.mxu0 0.0
    %524 = vmatpush1.msra.mxu0 0.0
    %525 = vmatprep.subr.mxu0 0.0
    %526 = vmatpush1.msra.mxu0 0.0
    %527 = vmatprep.subr.mxu0 0.0
    %528 = vmatpush1.msra.mxu0 0.0
    %529 = vmatprep.subr.mxu0 0.0
    %530 = vmatpush1.msra.mxu0 0.0
    %531 = vmatprep.subr.mxu0 0.0
    %532 = vmatpush1.msra.mxu0 0.0
    %533 = vmatprep.subr.mxu0 0.0
    %534 = vmatpush1.msra.mxu0 0.0
    %535 = vmatprep.subr.mxu0 0.0
    %536 = vmatpush1.msra.mxu0 0.0
    %537 = vmatprep.subr.mxu0 0.0
    %538 = vmatpush1.msra.mxu0 0.0
    %539 = vmatprep.subr.mxu0 0.0
    %540 = vmatpush1.msra.mxu0 0.0
    %541 = vmatprep.subr.mxu0 0.0
    %542 = vmatpush1.msra.mxu0 0.0
    %543 = vmatprep.subr.mxu0 0.0
    %544 = vmatpush1.msra.mxu0 0.0
    %545 = vmatprep.subr.mxu0 0.0
    %546 = vmatpush1.msra.mxu0 0.0
    %547 = vmatprep.subr.mxu0 0.0
    %548 = vmatpush1.msra.mxu0 %v247
    %549 = vmatprep.subr.mxu0 0.0
    %550 = vmatpush1.msra.mxu0 %v246
    %551 = vmatprep.subr.mxu0 0.0
    %552 = vmatpush1.msra.mxu0 %v245
    %553 = vmatprep.subr.mxu0 0.0
    %554 = vmatpush1.msra.mxu0 %v244
    %555 = vmatprep.subr.mxu0 0.0
    %556 = vmatpush2.msra.mxu0 0.0
    %557 = vmatprep.subr.mxu0 0.0
    %558 = vmatpush2.msra.mxu0 0.0
    %559 = vmatprep.subr.mxu0 0.0
    %560 = vmatpush2.msra.mxu0 0.0
    %561 = vmatprep.subr.mxu0 0.0
    %562 = vmatpush2.msra.mxu0 0.0
    %563 = vmatprep.subr.mxu0 0.0
    %564 = vmatpush2.msra.mxu0 0.0
    %565 = vmatprep.subr.mxu0 0.0
    %566 = vmatpush2.msra.mxu0 0.0
    %567 = vmatprep.subr.mxu0 0.0
    %568 = vmatpush2.msra.mxu0 0.0
    %569 = vmatprep.subr.mxu0 0.0
    %570 = vmatpush2.msra.mxu0 0.0
    %571 = vmatprep.subr.mxu0 0.0
    %572 = vmatpush2.msra.mxu0 0.0
    %573 = vmatprep.subr.mxu0 0.0
    %574 = vmatpush2.msra.mxu0 0.0
    %575 = vmatprep.subr.mxu0 0.0
    %576 = vmatpush2.msra.mxu0 0.0
    %577 = vmatprep.subr.mxu0 0.0
    %578 = vmatpush2.msra.mxu0 0.0
    %579 = vmatprep.subr.mxu0 0.0
    %580 = vmatpush2.msra.mxu0 0.0
    %581 = vmatprep.subr.mxu0 0.0
    %582 = vmatpush2.msra.mxu0 0.0
    %583 = vmatprep.subr.mxu0 0.0
    %584 = vmatpush2.msra.mxu0 0.0
    %585 = vmatprep.subr.mxu0 0.0
    %586 = vmatpush2.msra.mxu0 0.0
    %587 = vmatprep.mubr.f32.mxu0 0.0
    %588 = vmatmul.mubr.f32.gmra.mxu0 %v521
    %v589 = vpop.f32.mrf.mxu0
    %v590 = vadd.f32 0.0, %v589
    %v591 = vpop.f32.mrf.mxu0
    %592 = vdwg.mxu0
    %v594 = vrot.slane %v590, 6
    %v595 = vrot.slane %v590, 7
    %v598 = vadd.f32 %v236, %v594
    %v599 = vadd.f32 %v241, %v595
    %v600 = vxor.u32 %v598, 2147483648
    %v601 = vxor.u32 %v599, 2147483648
    %v602 = vmul.f32 %v600, 1.442695
    %v603 = vpow.pop %v602
    %v604 = vmul.f32 %v601, 1.442695
    %v605 = vpow.pop %v604
    %v606 = vadd.f32 %v603, 1.0
    %v607 = vadd.f32 %v605, 1.0
    %v608 = vrcp.pop %v606
    %v609 = vmul.f32 1.0, %v608
    %v610 = vrcp.pop %v607
    %v611 = vmul.f32 1.0, %v610
    %v612 = vtanh.pop %v598
    %v613 = vtanh.pop %v599
    %v616 = vrot.slane %v501, 7
    %v617 = vrot.slane %v502, 7
    %v620 = vmul.f32 %v609, %v616
    %v621 = vmul.f32 %v611, %v617
    %624 = vrot.lane.b32.xlu0 %v612, 64
    %v625 = vpop.permute.xlu0 %624
    %626 = vrot.lane.b32.xlu0 %v613, 64
    %v627 = vpop.permute.xlu0 %626
    %v630 = vmul.f32 %v609, %v625
    %v631 = vmul.f32 %v611, %v627
    %634 = vrot.lane.b32.xlu0 %v630, 32
    %v635 = vpop.permute.xlu0 %634
    %636 = vrot.lane.b32.xlu0 %v631, 32
    %v637 = vpop.permute.xlu0 %636
    %v640 = vadd.f32 %v620, %v635
    %v641 = vadd.f32 %v621, %v637
    %v642 = vtanh.pop %v640
    %v643 = vtanh.pop %v641
    %646 = vrot.lane.b32.xlu0 %v642, 64
    %v647 = vpop.permute.xlu0 %646
    %648 = vrot.lane.b32.xlu0 %v643, 64
    %v649 = vpop.permute.xlu0 %648
    %v652 = vmul.f32 %v609, %v647
    %v653 = vmul.f32 %v611, %v649
    %v656 = vrot.slane %v652, 2
    %v657 = vrot.slane %v653, 1
    %v658 = vsel %vm379, %v657, %v656
    %659 = vrot.lane.b32.xlu0 %v658, 32
    %v660 = vpop.permute.xlu0 %659
    %v661 = vsel %vm248, %v660, 0
    %663 = vmatprep.subr.mxu0 0.0
    %664 = vmatpush1.msra.mxu0 0.0
    %665 = vmatprep.subr.mxu0 0.0
    %666 = vmatpush1.msra.mxu0 0.0
    %667 = vmatprep.subr.mxu0 0.0
    %668 = vmatpush1.msra.mxu0 0.0
    %669 = vmatprep.subr.mxu0 0.0
    %670 = vmatpush1.msra.mxu0 0.0
    %671 = vmatprep.subr.mxu0 0.0
    %672 = vmatpush1.msra.mxu0 0.0
    %673 = vmatprep.subr.mxu0 0.0
    %674 = vmatpush1.msra.mxu0 0.0
    %675 = vmatprep.subr.mxu0 0.0
    %676 = vmatpush1.msra.mxu0 0.0
    %677 = vmatprep.subr.mxu0 0.0
    %678 = vmatpush1.msra.mxu0 0.0
    %679 = vmatprep.subr.mxu0 0.0
    %680 = vmatpush1.msra.mxu0 0.0
    %681 = vmatprep.subr.mxu0 0.0
    %682 = vmatpush1.msra.mxu0 0.0
    %683 = vmatprep.subr.mxu0 0.0
    %684 = vmatpush1.msra.mxu0 0.0
    %685 = vmatprep.subr.mxu0 0.0
    %686 = vmatpush1.msra.mxu0 0.0
    %687 = vmatprep.subr.mxu0 0.0
    %688 = vmatpush1.msra.mxu0 %v247
    %689 = vmatprep.subr.mxu0 0.0
    %690 = vmatpush1.msra.mxu0 %v246
    %691 = vmatprep.subr.mxu0 0.0
    %692 = vmatpush1.msra.mxu0 %v245
    %693 = vmatprep.subr.mxu0 0.0
    %694 = vmatpush1.msra.mxu0 %v244
    %695 = vmatprep.subr.mxu0 0.0
    %696 = vmatpush2.msra.mxu0 0.0
    %697 = vmatprep.subr.mxu0 0.0
    %698 = vmatpush2.msra.mxu0 0.0
    %699 = vmatprep.subr.mxu0 0.0
    %700 = vmatpush2.msra.mxu0 0.0
    %701 = vmatprep.subr.mxu0 0.0
    %702 = vmatpush2.msra.mxu0 0.0
    %703 = vmatprep.subr.mxu0 0.0
    %704 = vmatpush2.msra.mxu0 0.0
    %705 = vmatprep.subr.mxu0 0.0
    %706 = vmatpush2.msra.mxu0 0.0
    %707 = vmatprep.subr.mxu0 0.0
    %708 = vmatpush2.msra.mxu0 0.0
    %709 = vmatprep.subr.mxu0 0.0
    %710 = vmatpush2.msra.mxu0 0.0
    %711 = vmatprep.subr.mxu0 0.0
    %712 = vmatpush2.msra.mxu0 0.0
    %713 = vmatprep.subr.mxu0 0.0
    %714 = vmatpush2.msra.mxu0 0.0
    %715 = vmatprep.subr.mxu0 0.0
    %716 = vmatpush2.msra.mxu0 0.0
    %717 = vmatprep.subr.mxu0 0.0
    %718 = vmatpush2.msra.mxu0 0.0
    %719 = vmatprep.subr.mxu0 0.0
    %720 = vmatpush2.msra.mxu0 0.0
    %721 = vmatprep.subr.mxu0 0.0
    %722 = vmatpush2.msra.mxu0 0.0
    %723 = vmatprep.subr.mxu0 0.0
    %724 = vmatpush2.msra.mxu0 0.0
    %725 = vmatprep.subr.mxu0 0.0
    %726 = vmatpush2.msra.mxu0 0.0
    %727 = vmatprep.mubr.f32.mxu0 0.0
    %728 = vmatmul.mubr.f32.gmra.mxu0 %v661
    %v729 = vpop.f32.mrf.mxu0
    %v730 = vadd.f32 0.0, %v729
    %v731 = vpop.f32.mrf.mxu0
    %732 = vdwg.mxu0
    %v734 = vrot.slane %v730, 5
    %v735 = vrot.slane %v730, 6
    %v738 = vadd.f32 %v236, %v734
    %v739 = vadd.f32 %v241, %v735
    %v740 = vxor.u32 %v738, 2147483648
    %v741 = vxor.u32 %v739, 2147483648
    %v742 = vmul.f32 %v740, 1.442695
    %v743 = vpow.pop %v742
    %v744 = vmul.f32 %v741, 1.442695
    %v745 = vpow.pop %v744
    %v746 = vadd.f32 %v743, 1.0
    %v747 = vadd.f32 %v745, 1.0
    %v748 = vrcp.pop %v746
    %v749 = vmul.f32 1.0, %v748
    %v750 = vrcp.pop %v747
    %v751 = vmul.f32 1.0, %v750
    %v752 = vtanh.pop %v738
    %v753 = vtanh.pop %v739
    %v756 = vrot.slane %v640, 7
    %v757 = vrot.slane %v641, 7
    %v760 = vmul.f32 %v749, %v756
    %v761 = vmul.f32 %v751, %v757
    %764 = vrot.lane.b32.xlu0 %v752, 64
    %v765 = vpop.permute.xlu0 %764
    %766 = vrot.lane.b32.xlu0 %v753, 64
    %v767 = vpop.permute.xlu0 %766
    %v770 = vmul.f32 %v749, %v765
    %v771 = vmul.f32 %v751, %v767
    %774 = vrot.lane.b32.xlu0 %v770, 32
    %v775 = vpop.permute.xlu0 %774
    %776 = vrot.lane.b32.xlu0 %v771, 32
    %v777 = vpop.permute.xlu0 %776
    %v780 = vadd.f32 %v760, %v775
    %v781 = vadd.f32 %v761, %v777
    %v782 = vtanh.pop %v780
    %v783 = vtanh.pop %v781
    %786 = vrot.lane.b32.xlu0 %v782, 64
    %v787 = vpop.permute.xlu0 %786
    %788 = vrot.lane.b32.xlu0 %v783, 64
    %v789 = vpop.permute.xlu0 %788
    %v792 = vmul.f32 %v749, %v787
    %v793 = vmul.f32 %v751, %v789
    %v796 = vrot.slane %v792, 3
    %v797 = vrot.slane %v793, 2
    %v798 = vsel %vm379, %v797, %v796
    %799 = vrot.lane.b32.xlu0 %v798, 32
    %v800 = vpop.permute.xlu0 %799
    %v801 = vsel %vm248, %v800, 0
    %803 = vmatprep.subr.mxu0 0.0
    %804 = vmatpush1.msra.mxu0 0.0
    %805 = vmatprep.subr.mxu0 0.0
    %806 = vmatpush1.msra.mxu0 0.0
    %807 = vmatprep.subr.mxu0 0.0
    %808 = vmatpush1.msra.mxu0 0.0
    %809 = vmatprep.subr.mxu0 0.0
    %810 = vmatpush1.msra.mxu0 0.0
    %811 = vmatprep.subr.mxu0 0.0
    %812 = vmatpush1.msra.mxu0 0.0
    %813 = vmatprep.subr.mxu0 0.0
    %814 = vmatpush1.msra.mxu0 0.0
    %815 = vmatprep.subr.mxu0 0.0
    %816 = vmatpush1.msra.mxu0 0.0
    %817 = vmatprep.subr.mxu0 0.0
    %818 = vmatpush1.msra.mxu0 0.0
    %819 = vmatprep.subr.mxu0 0.0
    %820 = vmatpush1.msra.mxu0 0.0
    %821 = vmatprep.subr.mxu0 0.0
    %822 = vmatpush1.msra.mxu0 0.0
    %823 = vmatprep.subr.mxu0 0.0
    %824 = vmatpush1.msra.mxu0 0.0
    %825 = vmatprep.subr.mxu0 0.0
    %826 = vmatpush1.msra.mxu0 0.0
    %827 = vmatprep.subr.mxu0 0.0
    %828 = vmatpush1.msra.mxu0 %v247
    %829 = vmatprep.subr.mxu0 0.0
    %830 = vmatpush1.msra.mxu0 %v246
    %831 = vmatprep.subr.mxu0 0.0
    %832 = vmatpush1.msra.mxu0 %v245
    %833 = vmatprep.subr.mxu0 0.0
    %834 = vmatpush1.msra.mxu0 %v244
    %835 = vmatprep.subr.mxu0 0.0
    %836 = vmatpush2.msra.mxu0 0.0
    %837 = vmatprep.subr.mxu0 0.0
    %838 = vmatpush2.msra.mxu0 0.0
    %839 = vmatprep.subr.mxu0 0.0
    %840 = vmatpush2.msra.mxu0 0.0
    %841 = vmatprep.subr.mxu0 0.0
    %842 = vmatpush2.msra.mxu0 0.0
    %843 = vmatprep.subr.mxu0 0.0
    %844 = vmatpush2.msra.mxu0 0.0
    %845 = vmatprep.subr.mxu0 0.0
    %846 = vmatpush2.msra.mxu0 0.0
    %847 = vmatprep.subr.mxu0 0.0
    %848 = vmatpush2.msra.mxu0 0.0
    %849 = vmatprep.subr.mxu0 0.0
    %850 = vmatpush2.msra.mxu0 0.0
    %851 = vmatprep.subr.mxu0 0.0
    %852 = vmatpush2.msra.mxu0 0.0
    %853 = vmatprep.subr.mxu0 0.0
    %854 = vmatpush2.msra.mxu0 0.0
    %855 = vmatprep.subr.mxu0 0.0
    %856 = vmatpush2.msra.mxu0 0.0
    %857 = vmatprep.subr.mxu0 0.0
    %858 = vmatpush2.msra.mxu0 0.0
    %859 = vmatprep.subr.mxu0 0.0
    %860 = vmatpush2.msra.mxu0 0.0
    %861 = vmatprep.subr.mxu0 0.0
    %862 = vmatpush2.msra.mxu0 0.0
    %863 = vmatprep.subr.mxu0 0.0
    %864 = vmatpush2.msra.mxu0 0.0
    %865 = vmatprep.subr.mxu0 0.0
    %866 = vmatpush2.msra.mxu0 0.0
    %867 = vmatprep.mubr.f32.mxu0 0.0
    %868 = vmatmul.mubr.f32.gmra.mxu0 %v801
    %v869 = vpop.f32.mrf.mxu0
    %v870 = vadd.f32 0.0, %v869
    %v871 = vpop.f32.mrf.mxu0
    %872 = vdwg.mxu0
    %v874 = vrot.slane %v870, 4
    %v875 = vrot.slane %v870, 5
    %v878 = vadd.f32 %v236, %v874
    %v879 = vadd.f32 %v241, %v875
    %v880 = vxor.u32 %v878, 2147483648
    %v881 = vxor.u32 %v879, 2147483648
    %v882 = vmul.f32 %v880, 1.442695
    %v883 = vpow.pop %v882
    %v884 = vmul.f32 %v881, 1.442695
    %v885 = vpow.pop %v884
    %v886 = vadd.f32 %v883, 1.0
    %v887 = vadd.f32 %v885, 1.0
    %v888 = vrcp.pop %v886
    %v889 = vmul.f32 1.0, %v888
    %v890 = vrcp.pop %v887
    %v891 = vmul.f32 1.0, %v890
    %v892 = vtanh.pop %v878
    %v893 = vtanh.pop %v879
    %v896 = vrot.slane %v780, 7
    %v897 = vrot.slane %v781, 7
    %v900 = vmul.f32 %v889, %v896
    %v901 = vmul.f32 %v891, %v897
    %904 = vrot.lane.b32.xlu0 %v892, 64
    %v905 = vpop.permute.xlu0 %904
    %906 = vrot.lane.b32.xlu0 %v893, 64
    %v907 = vpop.permute.xlu0 %906
    %v910 = vmul.f32 %v889, %v905
    %v911 = vmul.f32 %v891, %v907
    %914 = vrot.lane.b32.xlu0 %v910, 32
    %v915 = vpop.permute.xlu0 %914
    %916 = vrot.lane.b32.xlu0 %v911, 32
    %v917 = vpop.permute.xlu0 %916
    %v920 = vadd.f32 %v900, %v915
    %v921 = vadd.f32 %v901, %v917
    %v922 = vtanh.pop %v920
    %v923 = vtanh.pop %v921
    %926 = vrot.lane.b32.xlu0 %v922, 64
    %v927 = vpop.permute.xlu0 %926
    %928 = vrot.lane.b32.xlu0 %v923, 64
    %v929 = vpop.permute.xlu0 %928
    %v932 = vmul.f32 %v889, %v927
    %v933 = vmul.f32 %v891, %v929
    %v936 = vrot.slane %v932, 4
    %v937 = vrot.slane %v933, 3
    %v938 = vsel %vm379, %v937, %v936
    %939 = vrot.lane.b32.xlu0 %v938, 32
    %v940 = vpop.permute.xlu0 %939
    %v941 = vsel %vm248, %v940, 0
    %943 = vmatprep.subr.mxu0 0.0
    %944 = vmatpush1.msra.mxu0 0.0
    %945 = vmatprep.subr.mxu0 0.0
    %946 = vmatpush1.msra.mxu0 0.0
    %947 = vmatprep.subr.mxu0 0.0
    %948 = vmatpush1.msra.mxu0 0.0
    %949 = vmatprep.subr.mxu0 0.0
    %950 = vmatpush1.msra.mxu0 0.0
    %951 = vmatprep.subr.mxu0 0.0
    %952 = vmatpush1.msra.mxu0 0.0
    %953 = vmatprep.subr.mxu0 0.0
    %954 = vmatpush1.msra.mxu0 0.0
    %955 = vmatprep.subr.mxu0 0.0
    %956 = vmatpush1.msra.mxu0 0.0
    %957 = vmatprep.subr.mxu0 0.0
    %958 = vmatpush1.msra.mxu0 0.0
    %959 = vmatprep.subr.mxu0 0.0
    %960 = vmatpush1.msra.mxu0 0.0
    %961 = vmatprep.subr.mxu0 0.0
    %962 = vmatpush1.msra.mxu0 0.0
    %963 = vmatprep.subr.mxu0 0.0
    %964 = vmatpush1.msra.mxu0 0.0
    %965 = vmatprep.subr.mxu0 0.0
    %966 = vmatpush1.msra.mxu0 0.0
    %967 = vmatprep.subr.mxu0 0.0
    %968 = vmatpush1.msra.mxu0 %v247
    %969 = vmatprep.subr.mxu0 0.0
    %970 = vmatpush1.msra.mxu0 %v246
    %971 = vmatprep.subr.mxu0 0.0
    %972 = vmatpush1.msra.mxu0 %v245
    %973 = vmatprep.subr.mxu0 0.0
    %974 = vmatpush1.msra.mxu0 %v244
    %975 = vmatprep.subr.mxu0 0.0
    %976 = vmatpush2.msra.mxu0 0.0
    %977 = vmatprep.subr.mxu0 0.0
    %978 = vmatpush2.msra.mxu0 0.0
    %979 = vmatprep.subr.mxu0 0.0
    %980 = vmatpush2.msra.mxu0 0.0
    %981 = vmatprep.subr.mxu0 0.0
    %982 = vmatpush2.msra.mxu0 0.0
    %983 = vmatprep.subr.mxu0 0.0
    %984 = vmatpush2.msra.mxu0 0.0
    %985 = vmatprep.subr.mxu0 0.0
    %986 = vmatpush2.msra.mxu0 0.0
    %987 = vmatprep.subr.mxu0 0.0
    %988 = vmatpush2.msra.mxu0 0.0
    %989 = vmatprep.subr.mxu0 0.0
    %990 = vmatpush2.msra.mxu0 0.0
    %991 = vmatprep.subr.mxu0 0.0
    %992 = vmatpush2.msra.mxu0 0.0
    %993 = vmatprep.subr.mxu0 0.0
    %994 = vmatpush2.msra.mxu0 0.0
    %995 = vmatprep.subr.mxu0 0.0
    %996 = vmatpush2.msra.mxu0 0.0
    %997 = vmatprep.subr.mxu0 0.0
    %998 = vmatpush2.msra.mxu0 0.0
    %999 = vmatprep.subr.mxu0 0.0
    %1000 = vmatpush2.msra.mxu0 0.0
    %1001 = vmatprep.subr.mxu0 0.0
    %1002 = vmatpush2.msra.mxu0 0.0
    %1003 = vmatprep.subr.mxu0 0.0
    %1004 = vmatpush2.msra.mxu0 0.0
    %1005 = vmatprep.subr.mxu0 0.0
    %1006 = vmatpush2.msra.mxu0 0.0
    %1007 = vmatprep.mubr.f32.mxu0 0.0
    %1008 = vmatmul.mubr.f32.gmra.mxu0 %v941
    %v1009 = vpop.f32.mrf.mxu0
    %v1010 = vadd.f32 0.0, %v1009
    %v1011 = vpop.f32.mrf.mxu0
    %1012 = vdwg.mxu0
    %v1014 = vrot.slane %v1010, 3
    %v1015 = vrot.slane %v1010, 4
    %v1018 = vadd.f32 %v236, %v1014
    %v1019 = vadd.f32 %v241, %v1015
    %v1020 = vxor.u32 %v1018, 2147483648
    %v1021 = vxor.u32 %v1019, 2147483648
    %v1022 = vmul.f32 %v1020, 1.442695
    %v1023 = vpow.pop %v1022
    %v1024 = vmul.f32 %v1021, 1.442695
    %v1025 = vpow.pop %v1024
    %v1026 = vadd.f32 %v1023, 1.0
    %v1027 = vadd.f32 %v1025, 1.0
    %v1028 = vrcp.pop %v1026
    %v1029 = vmul.f32 1.0, %v1028
    %v1030 = vrcp.pop %v1027
    %v1031 = vmul.f32 1.0, %v1030
    %v1032 = vtanh.pop %v1018
    %v1033 = vtanh.pop %v1019
    %v1036 = vrot.slane %v920, 7
    %v1037 = vrot.slane %v921, 7
    %v1040 = vmul.f32 %v1029, %v1036
    %v1041 = vmul.f32 %v1031, %v1037
    %1044 = vrot.lane.b32.xlu0 %v1032, 64
    %v1045 = vpop.permute.xlu0 %1044
    %1046 = vrot.lane.b32.xlu0 %v1033, 64
    %v1047 = vpop.permute.xlu0 %1046
    %v1050 = vmul.f32 %v1029, %v1045
    %v1051 = vmul.f32 %v1031, %v1047
    %1054 = vrot.lane.b32.xlu0 %v1050, 32
    %v1055 = vpop.permute.xlu0 %1054
    %1056 = vrot.lane.b32.xlu0 %v1051, 32
    %v1057 = vpop.permute.xlu0 %1056
    %v1060 = vadd.f32 %v1040, %v1055
    %v1061 = vadd.f32 %v1041, %v1057
    %v1062 = vtanh.pop %v1060
    %v1063 = vtanh.pop %v1061
    %1066 = vrot.lane.b32.xlu0 %v1062, 64
    %v1067 = vpop.permute.xlu0 %1066
    %1068 = vrot.lane.b32.xlu0 %v1063, 64
    %v1069 = vpop.permute.xlu0 %1068
    %v1072 = vmul.f32 %v1029, %v1067
    %v1073 = vmul.f32 %v1031, %v1069
    %v1076 = vrot.slane %v1072, 5
    %v1077 = vrot.slane %v1073, 4
    %v1078 = vsel %vm379, %v1077, %v1076
    %1079 = vrot.lane.b32.xlu0 %v1078, 32
    %v1080 = vpop.permute.xlu0 %1079
    %v1081 = vsel %vm248, %v1080, 0
    %1083 = vmatprep.subr.mxu0 0.0
    %1084 = vmatpush1.msra.mxu0 0.0
    %1085 = vmatprep.subr.mxu0 0.0
    %1086 = vmatpush1.msra.mxu0 0.0
    %1087 = vmatprep.subr.mxu0 0.0
    %1088 = vmatpush1.msra.mxu0 0.0
    %1089 = vmatprep.subr.mxu0 0.0
    %1090 = vmatpush1.msra.mxu0 0.0
    %1091 = vmatprep.subr.mxu0 0.0
    %1092 = vmatpush1.msra.mxu0 0.0
    %1093 = vmatprep.subr.mxu0 0.0
    %1094 = vmatpush1.msra.mxu0 0.0
    %1095 = vmatprep.subr.mxu0 0.0
    %1096 = vmatpush1.msra.mxu0 0.0
    %1097 = vmatprep.subr.mxu0 0.0
    %1098 = vmatpush1.msra.mxu0 0.0
    %1099 = vmatprep.subr.mxu0 0.0
    %1100 = vmatpush1.msra.mxu0 0.0
    %1101 = vmatprep.subr.mxu0 0.0
    %1102 = vmatpush1.msra.mxu0 0.0
    %1103 = vmatprep.subr.mxu0 0.0
    %1104 = vmatpush1.msra.mxu0 0.0
    %1105 = vmatprep.subr.mxu0 0.0
    %1106 = vmatpush1.msra.mxu0 0.0
    %1107 = vmatprep.subr.mxu0 0.0
    %1108 = vmatpush1.msra.mxu0 %v247
    %1109 = vmatprep.subr.mxu0 0.0
    %1110 = vmatpush1.msra.mxu0 %v246
    %1111 = vmatprep.subr.mxu0 0.0
    %1112 = vmatpush1.msra.mxu0 %v245
    %1113 = vmatprep.subr.mxu0 0.0
    %1114 = vmatpush1.msra.mxu0 %v244
    %1115 = vmatprep.subr.mxu0 0.0
    %1116 = vmatpush2.msra.mxu0 0.0
    %1117 = vmatprep.subr.mxu0 0.0
    %1118 = vmatpush2.msra.mxu0 0.0
    %1119 = vmatprep.subr.mxu0 0.0
    %1120 = vmatpush2.msra.mxu0 0.0
    %1121 = vmatprep.subr.mxu0 0.0
    %1122 = vmatpush2.msra.mxu0 0.0
    %1123 = vmatprep.subr.mxu0 0.0
    %1124 = vmatpush2.msra.mxu0 0.0
    %1125 = vmatprep.subr.mxu0 0.0
    %1126 = vmatpush2.msra.mxu0 0.0
    %1127 = vmatprep.subr.mxu0 0.0
    %1128 = vmatpush2.msra.mxu0 0.0
    %1129 = vmatprep.subr.mxu0 0.0
    %1130 = vmatpush2.msra.mxu0 0.0
    %1131 = vmatprep.subr.mxu0 0.0
    %1132 = vmatpush2.msra.mxu0 0.0
    %1133 = vmatprep.subr.mxu0 0.0
    %1134 = vmatpush2.msra.mxu0 0.0
    %1135 = vmatprep.subr.mxu0 0.0
    %1136 = vmatpush2.msra.mxu0 0.0
    %1137 = vmatprep.subr.mxu0 0.0
    %1138 = vmatpush2.msra.mxu0 0.0
    %1139 = vmatprep.subr.mxu0 0.0
    %1140 = vmatpush2.msra.mxu0 0.0
    %1141 = vmatprep.subr.mxu0 0.0
    %1142 = vmatpush2.msra.mxu0 0.0
    %1143 = vmatprep.subr.mxu0 0.0
    %1144 = vmatpush2.msra.mxu0 0.0
    %1145 = vmatprep.subr.mxu0 0.0
    %1146 = vmatpush2.msra.mxu0 0.0
    %1147 = vmatprep.mubr.f32.mxu0 0.0
    %1148 = vmatmul.mubr.f32.gmra.mxu0 %v1081
    %v1149 = vpop.f32.mrf.mxu0
    %v1150 = vadd.f32 0.0, %v1149
    %v1151 = vpop.f32.mrf.mxu0
    %1152 = vdwg.mxu0
    %v1154 = vrot.slane %v1150, 2
    %v1155 = vrot.slane %v1150, 3
    %v1158 = vadd.f32 %v236, %v1154
    %v1159 = vadd.f32 %v241, %v1155
    %v1160 = vxor.u32 %v1158, 2147483648
    %v1161 = vxor.u32 %v1159, 2147483648
    %v1162 = vmul.f32 %v1160, 1.442695
    %v1163 = vpow.pop %v1162
    %v1164 = vmul.f32 %v1161, 1.442695
    %v1165 = vpow.pop %v1164
    %v1166 = vadd.f32 %v1163, 1.0
    %v1167 = vadd.f32 %v1165, 1.0
    %v1168 = vrcp.pop %v1166
    %v1169 = vmul.f32 1.0, %v1168
    %v1170 = vrcp.pop %v1167
    %v1171 = vmul.f32 1.0, %v1170
    %v1172 = vtanh.pop %v1158
    %v1173 = vtanh.pop %v1159
    %v1176 = vrot.slane %v1060, 7
    %v1177 = vrot.slane %v1061, 7
    %v1180 = vmul.f32 %v1169, %v1176
    %v1181 = vmul.f32 %v1171, %v1177
    %1184 = vrot.lane.b32.xlu0 %v1172, 64
    %v1185 = vpop.permute.xlu0 %1184
    %1186 = vrot.lane.b32.xlu0 %v1173, 64
    %v1187 = vpop.permute.xlu0 %1186
    %v1190 = vmul.f32 %v1169, %v1185
    %v1191 = vmul.f32 %v1171, %v1187
    %1194 = vrot.lane.b32.xlu0 %v1190, 32
    %v1195 = vpop.permute.xlu0 %1194
    %1196 = vrot.lane.b32.xlu0 %v1191, 32
    %v1197 = vpop.permute.xlu0 %1196
    %v1200 = vadd.f32 %v1180, %v1195
    %v1201 = vadd.f32 %v1181, %v1197
    %v1202 = vtanh.pop %v1200
    %v1203 = vtanh.pop %v1201
    %1206 = vrot.lane.b32.xlu0 %v1202, 64
    %v1207 = vpop.permute.xlu0 %1206
    %1208 = vrot.lane.b32.xlu0 %v1203, 64
    %v1209 = vpop.permute.xlu0 %1208
    %v1212 = vmul.f32 %v1169, %v1207
    %v1213 = vmul.f32 %v1171, %v1209
    %v1216 = vrot.slane %v1212, 6
    %v1217 = vrot.slane %v1213, 5
    %v1218 = vsel %vm379, %v1217, %v1216
    %1219 = vrot.lane.b32.xlu0 %v1218, 32
    %v1220 = vpop.permute.xlu0 %1219
    %v1221 = vsel %vm248, %v1220, 0
    %1223 = vmatprep.subr.mxu0 0.0
    %1224 = vmatpush1.msra.mxu0 0.0
    %1225 = vmatprep.subr.mxu0 0.0
    %1226 = vmatpush1.msra.mxu0 0.0
    %1227 = vmatprep.subr.mxu0 0.0
    %1228 = vmatpush1.msra.mxu0 0.0
    %1229 = vmatprep.subr.mxu0 0.0
    %1230 = vmatpush1.msra.mxu0 0.0
    %1231 = vmatprep.subr.mxu0 0.0
    %1232 = vmatpush1.msra.mxu0 0.0
    %1233 = vmatprep.subr.mxu0 0.0
    %1234 = vmatpush1.msra.mxu0 0.0
    %1235 = vmatprep.subr.mxu0 0.0
    %1236 = vmatpush1.msra.mxu0 0.0
    %1237 = vmatprep.subr.mxu0 0.0
    %1238 = vmatpush1.msra.mxu0 0.0
    %1239 = vmatprep.subr.mxu0 0.0
    %1240 = vmatpush1.msra.mxu0 0.0
    %1241 = vmatprep.subr.mxu0 0.0
    %1242 = vmatpush1.msra.mxu0 0.0
    %1243 = vmatprep.subr.mxu0 0.0
    %1244 = vmatpush1.msra.mxu0 0.0
    %1245 = vmatprep.subr.mxu0 0.0
    %1246 = vmatpush1.msra.mxu0 0.0
    %1247 = vmatprep.subr.mxu0 0.0
    %1248 = vmatpush1.msra.mxu0 %v247
    %1249 = vmatprep.subr.mxu0 0.0
    %1250 = vmatpush1.msra.mxu0 %v246
    %1251 = vmatprep.subr.mxu0 0.0
    %1252 = vmatpush1.msra.mxu0 %v245
    %1253 = vmatprep.subr.mxu0 0.0
    %1254 = vmatpush1.msra.mxu0 %v244
    %1255 = vmatprep.subr.mxu0 0.0
    %1256 = vmatpush2.msra.mxu0 0.0
    %1257 = vmatprep.subr.mxu0 0.0
    %1258 = vmatpush2.msra.mxu0 0.0
    %1259 = vmatprep.subr.mxu0 0.0
    %1260 = vmatpush2.msra.mxu0 0.0
    %1261 = vmatprep.subr.mxu0 0.0
    %1262 = vmatpush2.msra.mxu0 0.0
    %1263 = vmatprep.subr.mxu0 0.0
    %1264 = vmatpush2.msra.mxu0 0.0
    %1265 = vmatprep.subr.mxu0 0.0
    %1266 = vmatpush2.msra.mxu0 0.0
    %1267 = vmatprep.subr.mxu0 0.0
    %1268 = vmatpush2.msra.mxu0 0.0
    %1269 = vmatprep.subr.mxu0 0.0
    %1270 = vmatpush2.msra.mxu0 0.0
    %1271 = vmatprep.subr.mxu0 0.0
    %1272 = vmatpush2.msra.mxu0 0.0
    %1273 = vmatprep.subr.mxu0 0.0
    %1274 = vmatpush2.msra.mxu0 0.0
    %1275 = vmatprep.subr.mxu0 0.0
    %1276 = vmatpush2.msra.mxu0 0.0
    %1277 = vmatprep.subr.mxu0 0.0
    %1278 = vmatpush2.msra.mxu0 0.0
    %1279 = vmatprep.subr.mxu0 0.0
    %1280 = vmatpush2.msra.mxu0 0.0
    %1281 = vmatprep.subr.mxu0 0.0
    %1282 = vmatpush2.msra.mxu0 0.0
    %1283 = vmatprep.subr.mxu0 0.0
    %1284 = vmatpush2.msra.mxu0 0.0
    %1285 = vmatprep.subr.mxu0 0.0
    %1286 = vmatpush2.msra.mxu0 0.0
    %1287 = vmatprep.mubr.f32.mxu0 0.0
    %1288 = vmatmul.mubr.f32.gmra.mxu0 %v1221
    %v1289 = vpop.f32.mrf.mxu0
    %v1290 = vadd.f32 0.0, %v1289
    %v1291 = vpop.f32.mrf.mxu0
    %1292 = vdwg.mxu0
    %v1294 = vrot.slane %v1290, 1
    %v1295 = vrot.slane %v1290, 2
    %v1298 = vadd.f32 %v236, %v1294
    %v1299 = vadd.f32 %v241, %v1295
    %v1300 = vxor.u32 %v1298, 2147483648
    %v1301 = vxor.u32 %v1299, 2147483648
    %v1302 = vmul.f32 %v1300, 1.442695
    %v1303 = vpow.pop %v1302
    %v1304 = vmul.f32 %v1301, 1.442695
    %v1305 = vpow.pop %v1304
    %v1306 = vadd.f32 %v1303, 1.0
    %v1307 = vadd.f32 %v1305, 1.0
    %v1308 = vrcp.pop %v1306
    %v1309 = vmul.f32 1.0, %v1308
    %v1310 = vrcp.pop %v1307
    %v1311 = vmul.f32 1.0, %v1310
    %v1312 = vtanh.pop %v1298
    %v1313 = vtanh.pop %v1299
    %v1316 = vrot.slane %v1200, 7
    %v1317 = vrot.slane %v1201, 7
    %v1320 = vmul.f32 %v1309, %v1316
    %v1321 = vmul.f32 %v1311, %v1317
    %1324 = vrot.lane.b32.xlu0 %v1312, 64
    %v1325 = vpop.permute.xlu0 %1324
    %1326 = vrot.lane.b32.xlu0 %v1313, 64
    %v1327 = vpop.permute.xlu0 %1326
    %v1330 = vmul.f32 %v1309, %v1325
    %v1331 = vmul.f32 %v1311, %v1327
    %1334 = vrot.lane.b32.xlu0 %v1330, 32
    %v1335 = vpop.permute.xlu0 %1334
    %1336 = vrot.lane.b32.xlu0 %v1331, 32
    %v1337 = vpop.permute.xlu0 %1336
    %v1340 = vadd.f32 %v1320, %v1335
    %v1341 = vadd.f32 %v1321, %v1337
    %v1342 = vtanh.pop %v1340
    %v1343 = vtanh.pop %v1341
    %1346 = vrot.lane.b32.xlu0 %v1342, 64
    %v1347 = vpop.permute.xlu0 %1346
    %1348 = vrot.lane.b32.xlu0 %v1343, 64
    %v1349 = vpop.permute.xlu0 %1348
    %v1352 = vmul.f32 %v1309, %v1347
    %v1353 = vmul.f32 %v1311, %v1349
    %v1354 = vpack.c.bf16 %v1352, %v1352
    %v1355 = vpack.c.bf16 %v1353, %v1353
    %v1356 = vld [vmem:[#allocation10] sm:$0xff]
    %v1357 = vld [vmem:[#allocation10 + $0x8] sm:$0xff]
    %v1358 = vld [vmem:[#allocation10 + $0x10] sm:$0xff]
    %v1359 = vld [vmem:[#allocation10 + $0x18] sm:$0xff]
    %v1360 = vld [vmem:[#allocation10 + $0x20] sm:$0xff]
    %v1361 = vld [vmem:[#allocation10 + $0x28] sm:$0xff]
    %v1362 = vld [vmem:[#allocation10 + $0x30] sm:$0xff]
    %v1363 = vld [vmem:[#allocation10 + $0x38] sm:$0xff]
    %v1364 = vld [vmem:[#allocation10 + $0x40] sm:$0xff]
    %v1365 = vld [vmem:[#allocation10 + $0x48] sm:$0xff]
    %v1366 = vld [vmem:[#allocation10 + $0x50] sm:$0xff]
    %v1367 = vld [vmem:[#allocation10 + $0x58] sm:$0xff]
    %v1368 = vld [vmem:[#allocation10 + $0x60] sm:$0xff]
    %v1369 = vld [vmem:[#allocation10 + $0x68] sm:$0xff]
    %v1370 = vld [vmem:[#allocation10 + $0x70] sm:$0xff]
    %v1371 = vld [vmem:[#allocation10 + $0x78] sm:$0xff]
    %v1372 = vld [vmem:[#allocation11] sm:$0xff]
    %v1374 = vlaneseq
    %v1375 = vshrl.u32 %v1374, 7
    %v1376 = vsub.s32 0, %v1375
    %v1377 = vrot.slane %v1372, %v1376
    %v1378 = vlaneseq
    %v1379 = vshrl.u32 %v1378, 7
    %v1380 = vsub.s32 1, %v1379
    %v1381 = vrot.slane %v1372, %v1380
    %v1382 = vlaneseq
    %v1383 = vshrl.u32 %v1382, 7
    %v1384 = vsub.s32 2, %v1383
    %v1385 = vrot.slane %v1372, %v1384
    %v1386 = vlaneseq
    %v1387 = vshrl.u32 %v1386, 7
    %v1388 = vsub.s32 3, %v1387
    %v1389 = vrot.slane %v1372, %v1388
    %v1390 = vlaneseq
    %v1391 = vshrl.u32 %v1390, 7
    %v1392 = vsub.s32 4, %v1391
    %v1393 = vrot.slane %v1372, %v1392
    %v1394 = vlaneseq
    %v1395 = vshrl.u32 %v1394, 7
    %v1396 = vsub.s32 5, %v1395
    %v1397 = vrot.slane %v1372, %v1396
    %v1398 = vlaneseq
    %v1399 = vshrl.u32 %v1398, 7
    %v1400 = vsub.s32 6, %v1399
    %v1401 = vrot.slane %v1372, %v1400
    %v1402 = vlaneseq
    %v1403 = vshrl.u32 %v1402, 7
    %v1404 = vsub.s32 7, %v1403
    %v1405 = vrot.slane %v1372, %v1404
    %v1416 = vunpack.c.l.b16 %v1354
    %v1417 = vunpack.c.l.b16 %v1355
    %v1418 = vrot.slane %v1416, 7
    %v1419 = vrot.slane %v1417, 6
    %v1420 = vsel %vm379, %v1419, %v1418
    %v1421 = vpack.c.b16 %v1420, %v1420
    %1422 = vrot.lane.b32.xlu0 %v1421, 32
    %v1423 = vpop.permute.xlu0 %1422
    %v1440 = vunpack.c.l.b16 %v1356
    %v1441 = vunpack.c.h.b16 %v1356
    %v1442 = vunpack.c.l.b16 %v1357
    %v1443 = vunpack.c.h.b16 %v1357
    %v1444 = vunpack.c.l.b16 %v1358
    %v1445 = vunpack.c.h.b16 %v1358
    %v1446 = vunpack.c.l.b16 %v1359
    %v1447 = vunpack.c.h.b16 %v1359
    %v1448 = vunpack.c.l.b16 %v1360
    %v1449 = vunpack.c.h.b16 %v1360
    %v1450 = vunpack.c.l.b16 %v1361
    %v1451 = vunpack.c.h.b16 %v1361
    %v1452 = vunpack.c.l.b16 %v1362
    %v1453 = vunpack.c.h.b16 %v1362
    %v1454 = vunpack.c.l.b16 %v1363
    %v1455 = vunpack.c.h.b16 %v1363
    %v1456 = vunpack.c.l.b16 %v1364
    %v1457 = vunpack.c.h.b16 %v1364
    %v1458 = vunpack.c.l.b16 %v1365
    %v1459 = vunpack.c.h.b16 %v1365
    %v1460 = vunpack.c.l.b16 %v1366
    %v1461 = vunpack.c.h.b16 %v1366
    %v1462 = vunpack.c.l.b16 %v1367
    %v1463 = vunpack.c.h.b16 %v1367
    %v1464 = vunpack.c.l.b16 %v1368
    %v1465 = vunpack.c.h.b16 %v1368
    %v1466 = vunpack.c.l.b16 %v1369
    %v1467 = vunpack.c.h.b16 %v1369
    %v1468 = vunpack.c.l.b16 %v1370
    %v1469 = vunpack.c.h.b16 %v1370
    %v1470 = vunpack.c.l.b16 %v1371
    %v1471 = vunpack.c.h.b16 %v1371
    %v1472 = vpack.c.b16 %v1448, %v1440
    %v1473 = vpack.c.b16 %v1449, %v1441
    %v1474 = vpack.c.b16 %v1450, %v1442
    %v1475 = vpack.c.b16 %v1451, %v1443
    %v1476 = vpack.c.b16 %v1452, %v1444
    %v1477 = vpack.c.b16 %v1453, %v1445
    %v1478 = vpack.c.b16 %v1454, %v1446
    %v1479 = vpack.c.b16 %v1455, %v1447
    %v1480 = vpack.c.b16 %v1464, %v1456
    %v1481 = vpack.c.b16 %v1465, %v1457
    %v1482 = vpack.c.b16 %v1466, %v1458
    %v1483 = vpack.c.b16 %v1467, %v1459
    %v1484 = vpack.c.b16 %v1468, %v1460
    %v1485 = vpack.c.b16 %v1469, %v1461
    %v1486 = vpack.c.b16 %v1470, %v1462
    %v1487 = vpack.c.b16 %v1471, %v1463
    %v1505 = vsel %vm248, %v1423, 0
    %1507 = vmatprep.subr.bf16.mxu0 0
    %1508 = vmatpush1.bf16.msra.mxu0 0
    %1509 = vmatprep.subr.bf16.mxu0 0
    %1510 = vmatpush1.bf16.msra.mxu0 0
    %1511 = vmatprep.subr.bf16.mxu0 0
    %1512 = vmatpush1.bf16.msra.mxu0 0
    %1513 = vmatprep.subr.bf16.mxu0 0
    %1514 = vmatpush1.bf16.msra.mxu0 0
    %1515 = vmatprep.subr.bf16.mxu0 0
    %1516 = vmatpush1.bf16.msra.mxu0 0
    %1517 = vmatprep.subr.bf16.mxu0 0
    %1518 = vmatpush1.bf16.msra.mxu0 0
    %1519 = vmatprep.subr.bf16.mxu0 %v1481
    %1520 = vmatpush1.bf16.msra.mxu0 %v1480
    %1521 = vmatprep.subr.bf16.mxu0 %v1473
    %1522 = vmatpush1.bf16.msra.mxu0 %v1472
    %1523 = vmatprep.subr.bf16.mxu0 0
    %1524 = vmatpush2.bf16.msra.mxu0 0
    %1525 = vmatprep.subr.bf16.mxu0 0
    %1526 = vmatpush2.bf16.msra.mxu0 0
    %1527 = vmatprep.subr.bf16.mxu0 0
    %1528 = vmatpush2.bf16.msra.mxu0 0
    %1529 = vmatprep.subr.bf16.mxu0 0
    %1530 = vmatpush2.bf16.msra.mxu0 0
    %1531 = vmatprep.subr.bf16.mxu0 0
    %1532 = vmatpush2.bf16.msra.mxu0 0
    %1533 = vmatprep.subr.bf16.mxu0 0
    %1534 = vmatpush2.bf16.msra.mxu0 0
    %1535 = vmatprep.subr.bf16.mxu0 0
    %1536 = vmatpush2.bf16.msra.mxu0 0
    %1537 = vmatprep.subr.bf16.mxu0 0
    %1538 = vmatpush2.bf16.msra.mxu0 0
    %1539 = vmatprep.mubr.bf16.mxu0 0
    %1540 = vmatmul.mubr.bf16.gmra.mxu0 %v1505
    %v1541 = vpop.f32.mrf.mxu0
    %v1542 = vadd.f32 %v1377, %v1541
    %v1543 = vpop.f32.mrf.mxu0
    %v1544 = vadd.f32 %v1381, %v1543
    %v1545 = vpop.f32.mrf.mxu0
    %v1546 = vpop.f32.mrf.mxu0
    %1547 = vdwg.mxu0
    %1548 = vmatprep.subr.bf16.mxu0 0
    %1549 = vmatpush1.bf16.msra.mxu0 0
    %1550 = vmatprep.subr.bf16.mxu0 0
    %1551 = vmatpush1.bf16.msra.mxu0 0
    %1552 = vmatprep.subr.bf16.mxu0 0
    %1553 = vmatpush1.bf16.msra.mxu0 0
    %1554 = vmatprep.subr.bf16.mxu0 0
    %1555 = vmatpush1.bf16.msra.mxu0 0
    %1556 = vmatprep.subr.bf16.mxu0 0
    %1557 = vmatpush1.bf16.msra.mxu0 0
    %1558 = vmatprep.subr.bf16.mxu0 0
    %1559 = vmatpush1.bf16.msra.mxu0 0
    %1560 = vmatprep.subr.bf16.mxu0 %v1483
    %1561 = vmatpush1.bf16.msra.mxu0 %v1482
    %1562 = vmatprep.subr.bf16.mxu0 %v1475
    %1563 = vmatpush1.bf16.msra.mxu0 %v1474
    %1564 = vmatprep.subr.bf16.mxu0 0
    %1565 = vmatpush2.bf16.msra.mxu0 0
    %1566 = vmatprep.subr.bf16.mxu0 0
    %1567 = vmatpush2.bf16.msra.mxu0 0
    %1568 = vmatprep.subr.bf16.mxu0 0
    %1569 = vmatpush2.bf16.msra.mxu0 0
    %1570 = vmatprep.subr.bf16.mxu0 0
    %1571 = vmatpush2.bf16.msra.mxu0 0
    %1572 = vmatprep.subr.bf16.mxu0 0
    %1573 = vmatpush2.bf16.msra.mxu0 0
    %1574 = vmatprep.subr.bf16.mxu0 0
    %1575 = vmatpush2.bf16.msra.mxu0 0
    %1576 = vmatprep.subr.bf16.mxu0 0
    %1577 = vmatpush2.bf16.msra.mxu0 0
    %1578 = vmatprep.subr.bf16.mxu0 0
    %1579 = vmatpush2.bf16.msra.mxu0 0
    %1580 = vmatprep.mubr.bf16.mxu0 0
    %1581 = vmatmul.mubr.bf16.gmra.mxu0 %v1505
    %v1582 = vpop.f32.mrf.mxu0
    %v1583 = vadd.f32 %v1385, %v1582
    %v1584 = vpop.f32.mrf.mxu0
    %v1585 = vadd.f32 %v1389, %v1584
    %v1586 = vpop.f32.mrf.mxu0
    %v1587 = vpop.f32.mrf.mxu0
    %1588 = vdwg.mxu0
    %1589 = vmatprep.subr.bf16.mxu0 0
    %1590 = vmatpush1.bf16.msra.mxu0 0
    %1591 = vmatprep.subr.bf16.mxu0 0
    %1592 = vmatpush1.bf16.msra.mxu0 0
    %1593 = vmatprep.subr.bf16.mxu0 0
    %1594 = vmatpush1.bf16.msra.mxu0 0
    %1595 = vmatprep.subr.bf16.mxu0 0
    %1596 = vmatpush1.bf16.msra.mxu0 0
    %1597 = vmatprep.subr.bf16.mxu0 0
    %1598 = vmatpush1.bf16.msra.mxu0 0
    %1599 = vmatprep.subr.bf16.mxu0 0
    %1600 = vmatpush1.bf16.msra.mxu0 0
    %1601 = vmatprep.subr.bf16.mxu0 %v1485
    %1602 = vmatpush1.bf16.msra.mxu0 %v1484
    %1603 = vmatprep.subr.bf16.mxu0 %v1477
    %1604 = vmatpush1.bf16.msra.mxu0 %v1476
    %1605 = vmatprep.subr.bf16.mxu0 0
    %1606 = vmatpush2.bf16.msra.mxu0 0
    %1607 = vmatprep.subr.bf16.mxu0 0
    %1608 = vmatpush2.bf16.msra.mxu0 0
    %1609 = vmatprep.subr.bf16.mxu0 0
    %1610 = vmatpush2.bf16.msra.mxu0 0
    %1611 = vmatprep.subr.bf16.mxu0 0
    %1612 = vmatpush2.bf16.msra.mxu0 0
    %1613 = vmatprep.subr.bf16.mxu0 0
    %1614 = vmatpush2.bf16.msra.mxu0 0
    %1615 = vmatprep.subr.bf16.mxu0 0
    %1616 = vmatpush2.bf16.msra.mxu0 0
    %1617 = vmatprep.subr.bf16.mxu0 0
    %1618 = vmatpush2.bf16.msra.mxu0 0
    %1619 = vmatprep.subr.bf16.mxu0 0
    %1620 = vmatpush2.bf16.msra.mxu0 0
    %1621 = vmatprep.mubr.bf16.mxu0 0
    %1622 = vmatmul.mubr.bf16.gmra.mxu0 %v1505
    %v1623 = vpop.f32.mrf.mxu0
    %v1624 = vadd.f32 %v1393, %v1623
    %v1625 = vpop.f32.mrf.mxu0
    %v1626 = vadd.f32 %v1397, %v1625
    %v1627 = vpop.f32.mrf.mxu0
    %v1628 = vpop.f32.mrf.mxu0
    %1629 = vdwg.mxu0
    %1630 = vmatprep.subr.bf16.mxu0 0
    %1631 = vmatpush1.bf16.msra.mxu0 0
    %1632 = vmatprep.subr.bf16.mxu0 0
    %1633 = vmatpush1.bf16.msra.mxu0 0
    %1634 = vmatprep.subr.bf16.mxu0 0
    %1635 = vmatpush1.bf16.msra.mxu0 0
    %1636 = vmatprep.subr.bf16.mxu0 0
    %1637 = vmatpush1.bf16.msra.mxu0 0
    %1638 = vmatprep.subr.bf16.mxu0 0
    %1639 = vmatpush1.bf16.msra.mxu0 0
    %1640 = vmatprep.subr.bf16.mxu0 0
    %1641 = vmatpush1.bf16.msra.mxu0 0
    %1642 = vmatprep.subr.bf16.mxu0 %v1487
    %1643 = vmatpush1.bf16.msra.mxu0 %v1486
    %1644 = vmatprep.subr.bf16.mxu0 %v1479
    %1645 = vmatpush1.bf16.msra.mxu0 %v1478
    %1646 = vmatprep.subr.bf16.mxu0 0
    %1647 = vmatpush2.bf16.msra.mxu0 0
    %1648 = vmatprep.subr.bf16.mxu0 0
    %1649 = vmatpush2.bf16.msra.mxu0 0
    %1650 = vmatprep.subr.bf16.mxu0 0
    %1651 = vmatpush2.bf16.msra.mxu0 0
    %1652 = vmatprep.subr.bf16.mxu0 0
    %1653 = vmatpush2.bf16.msra.mxu0 0
    %1654 = vmatprep.subr.bf16.mxu0 0
    %1655 = vmatpush2.bf16.msra.mxu0 0
    %1656 = vmatprep.subr.bf16.mxu0 0
    %1657 = vmatpush2.bf16.msra.mxu0 0
    %1658 = vmatprep.subr.bf16.mxu0 0
    %1659 = vmatpush2.bf16.msra.mxu0 0
    %1660 = vmatprep.subr.bf16.mxu0 0
    %1661 = vmatpush2.bf16.msra.mxu0 0
    %1662 = vmatprep.mubr.bf16.mxu0 0
    %1663 = vmatmul.mubr.bf16.gmra.mxu0 %v1505
    %v1664 = vpop.f32.mrf.mxu0
    %v1665 = vadd.f32 %v1401, %v1664
    %v1666 = vpop.f32.mrf.mxu0
    %v1667 = vadd.f32 %v1405, %v1666
    %v1668 = vpop.f32.mrf.mxu0
    %v1669 = vpop.f32.mrf.mxu0
    %1670 = vdwg.mxu0
    %v1671 = vtanh.pop %v1542
    %v1672 = vtanh.pop %v1544
    %v1673 = vtanh.pop %v1583
    %v1674 = vtanh.pop %v1585
    %v1675 = vtanh.pop %v1624
    %v1676 = vtanh.pop %v1626
    %v1677 = vtanh.pop %v1665
    %v1678 = vtanh.pop %v1667
    %v1679 = vpack.c.bf16 %v1671, %v1671
    %v1680 = vpack.c.bf16 %v1672, %v1672
    %v1681 = vpack.c.bf16 %v1673, %v1673
    %v1682 = vpack.c.bf16 %v1674, %v1674
    %v1683 = vpack.c.bf16 %v1675, %v1675
    %v1684 = vpack.c.bf16 %v1676, %v1676
    %v1685 = vpack.c.bf16 %v1677, %v1677
    %v1686 = vpack.c.bf16 %v1678, %v1678
    %v1687 = vld [vmem:[#allocation13] sm:$0xff]
    %v1688 = vld [vmem:[#allocation13 + $0x8] sm:$0xff]
    %v1689 = vld [vmem:[#allocation13 + $0x10] sm:$0xff]
    %v1690 = vld [vmem:[#allocation13 + $0x18] sm:$0xff]
    %v1691 = vld [vmem:[#allocation13 + $0x20] sm:$0xff]
    %v1692 = vld [vmem:[#allocation13 + $0x28] sm:$0xff]
    %v1693 = vld [vmem:[#allocation13 + $0x30] sm:$0xff]
    %v1694 = vld [vmem:[#allocation13 + $0x38] sm:$0xff]
    %v1695 = vld [vmem:[#allocation13 + $0x40] sm:$0xff]
    %v1696 = vld [vmem:[#allocation13 + $0x48] sm:$0xff]
    %v1697 = vld [vmem:[#allocation13 + $0x50] sm:$0xff]
    %v1698 = vld [vmem:[#allocation13 + $0x58] sm:$0xff]
    %v1699 = vld [vmem:[#allocation13 + $0x60] sm:$0xff]
    %v1700 = vld [vmem:[#allocation13 + $0x68] sm:$0xff]
    %v1701 = vld [vmem:[#allocation13 + $0x70] sm:$0xff]
    %v1702 = vld [vmem:[#allocation13 + $0x78] sm:$0xff]
    %v1703 = vld [vmem:[#allocation13 + $0x80] sm:$0xff]
    %v1704 = vld [vmem:[#allocation13 + $0x88] sm:$0xff]
    %v1705 = vld [vmem:[#allocation13 + $0x90] sm:$0xff]
    %v1706 = vld [vmem:[#allocation13 + $0x98] sm:$0xff]
    %v1707 = vld [vmem:[#allocation13 + $0xa0] sm:$0xff]
    %v1708 = vld [vmem:[#allocation13 + $0xa8] sm:$0xff]
    %v1709 = vld [vmem:[#allocation13 + $0xb0] sm:$0xff]
    %v1710 = vld [vmem:[#allocation13 + $0xb8] sm:$0xff]
    %v1711 = vld [vmem:[#allocation13 + $0xc0] sm:$0xff]
    %v1712 = vld [vmem:[#allocation13 + $0xc8] sm:$0xff]
    %v1713 = vld [vmem:[#allocation13 + $0xd0] sm:$0xff]
    %v1714 = vld [vmem:[#allocation13 + $0xd8] sm:$0xff]
    %v1715 = vld [vmem:[#allocation13 + $0xe0] sm:$0xff]
    %v1716 = vld [vmem:[#allocation13 + $0xe8] sm:$0xff]
    %v1717 = vld [vmem:[#allocation13 + $0xf0] sm:$0xff]
    %v1718 = vld [vmem:[#allocation13 + $0xf8] sm:$0xff]
    %v1719 = vld [vmem:[#allocation13 + $0x100] sm:$0xff]
    %v1720 = vld [vmem:[#allocation13 + $0x108] sm:$0xff]
    %v1721 = vld [vmem:[#allocation13 + $0x110] sm:$0xff]
    %v1722 = vld [vmem:[#allocation13 + $0x118] sm:$0xff]
    %v1723 = vld [vmem:[#allocation13 + $0x120] sm:$0xff]
    %v1724 = vld [vmem:[#allocation13 + $0x128] sm:$0xff]
    %v1725 = vld [vmem:[#allocation13 + $0x130] sm:$0xff]
    %v1726 = vld [vmem:[#allocation13 + $0x138] sm:$0xff]
    %v1727 = vld [vmem:[#allocation13 + $0x140] sm:$0xff]
    %v1728 = vld [vmem:[#allocation13 + $0x148] sm:$0xff]
    %v1729 = vld [vmem:[#allocation13 + $0x150] sm:$0xff]
    %v1730 = vld [vmem:[#allocation13 + $0x158] sm:$0xff]
    %v1731 = vld [vmem:[#allocation13 + $0x160] sm:$0xff]
    %v1732 = vld [vmem:[#allocation13 + $0x168] sm:$0xff]
    %v1733 = vld [vmem:[#allocation13 + $0x170] sm:$0xff]
    %v1734 = vld [vmem:[#allocation13 + $0x178] sm:$0xff]
    %v1735 = vld [vmem:[#allocation13 + $0x180] sm:$0xff]
    %v1736 = vld [vmem:[#allocation13 + $0x188] sm:$0xff]
    %v1737 = vld [vmem:[#allocation13 + $0x190] sm:$0xff]
    %v1738 = vld [vmem:[#allocation13 + $0x198] sm:$0xff]
    %v1739 = vld [vmem:[#allocation13 + $0x1a0] sm:$0xff]
    %v1740 = vld [vmem:[#allocation13 + $0x1a8] sm:$0xff]
    %v1741 = vld [vmem:[#allocation13 + $0x1b0] sm:$0xff]
    %v1742 = vld [vmem:[#allocation13 + $0x1b8] sm:$0xff]
    %v1743 = vld [vmem:[#allocation13 + $0x1c0] sm:$0xff]
    %v1744 = vld [vmem:[#allocation13 + $0x1c8] sm:$0xff]
    %v1745 = vld [vmem:[#allocation13 + $0x1d0] sm:$0xff]
    %v1746 = vld [vmem:[#allocation13 + $0x1d8] sm:$0xff]
    %v1747 = vld [vmem:[#allocation13 + $0x1e0] sm:$0xff]
    %v1748 = vld [vmem:[#allocation13 + $0x1e8] sm:$0xff]
    %v1749 = vld [vmem:[#allocation13 + $0x1f0] sm:$0xff]
    %v1750 = vld [vmem:[#allocation13 + $0x1f8] sm:$0xff]
    %v1751 = vld [vmem:[#allocation13 + $0x200] sm:$0xff]
    %v1752 = vld [vmem:[#allocation13 + $0x208] sm:$0xff]
    %v1753 = vld [vmem:[#allocation13 + $0x210] sm:$0xff]
    %v1754 = vld [vmem:[#allocation13 + $0x218] sm:$0xff]
    %v1755 = vld [vmem:[#allocation13 + $0x220] sm:$0xff]
    %v1756 = vld [vmem:[#allocation13 + $0x228] sm:$0xff]
    %v1757 = vld [vmem:[#allocation13 + $0x230] sm:$0xff]
    %v1758 = vld [vmem:[#allocation13 + $0x238] sm:$0xff]
    %v1759 = vld [vmem:[#allocation13 + $0x240] sm:$0xff]
    %v1760 = vld [vmem:[#allocation13 + $0x248] sm:$0xff]
    %v1761 = vld [vmem:[#allocation13 + $0x250] sm:$0xff]
    %v1762 = vld [vmem:[#allocation13 + $0x258] sm:$0xff]
    %v1763 = vld [vmem:[#allocation13 + $0x260] sm:$0xff]
    %v1764 = vld [vmem:[#allocation13 + $0x268] sm:$0xff]
    %v1765 = vld [vmem:[#allocation13 + $0x270] sm:$0xff]
    %v1766 = vld [vmem:[#allocation13 + $0x278] sm:$0xff]
    %v1767 = vld [vmem:[#allocation13 + $0x280] sm:$0xff]
    %v1768 = vld [vmem:[#allocation13 + $0x288] sm:$0xff]
    %v1769 = vld [vmem:[#allocation13 + $0x290] sm:$0xff]
    %v1770 = vld [vmem:[#allocation13 + $0x298] sm:$0xff]
    %v1771 = vld [vmem:[#allocation13 + $0x2a0] sm:$0xff]
    %v1772 = vld [vmem:[#allocation13 + $0x2a8] sm:$0xff]
    %v1773 = vld [vmem:[#allocation13 + $0x2b0] sm:$0xff]
    %v1774 = vld [vmem:[#allocation13 + $0x2b8] sm:$0xff]
    %v1775 = vld [vmem:[#allocation13 + $0x2c0] sm:$0xff]
    %v1776 = vld [vmem:[#allocation13 + $0x2c8] sm:$0xff]
    %v1777 = vld [vmem:[#allocation13 + $0x2d0] sm:$0xff]
    %v1778 = vld [vmem:[#allocation13 + $0x2d8] sm:$0xff]
    %v1779 = vld [vmem:[#allocation13 + $0x2e0] sm:$0xff]
    %v1780 = vld [vmem:[#allocation13 + $0x2e8] sm:$0xff]
    %v1781 = vld [vmem:[#allocation13 + $0x2f0] sm:$0xff]
    %v1782 = vld [vmem:[#allocation13 + $0x2f8] sm:$0xff]
    %v1783 = vld [vmem:[#allocation13 + $0x300] sm:$0xff]
    %v1784 = vld [vmem:[#allocation13 + $0x308] sm:$0xff]
    %v1785 = vld [vmem:[#allocation13 + $0x310] sm:$0xff]
    %v1786 = vld [vmem:[#allocation13 + $0x318] sm:$0xff]
    %v1787 = vld [vmem:[#allocation13 + $0x320] sm:$0xff]
    %v1788 = vld [vmem:[#allocation13 + $0x328] sm:$0xff]
    %v1789 = vld [vmem:[#allocation13 + $0x330] sm:$0xff]
    %v1790 = vld [vmem:[#allocation13 + $0x338] sm:$0xff]
    %v1791 = vld [vmem:[#allocation13 + $0x340] sm:$0xff]
    %v1792 = vld [vmem:[#allocation13 + $0x348] sm:$0xff]
    %v1793 = vld [vmem:[#allocation13 + $0x350] sm:$0xff]
    %v1794 = vld [vmem:[#allocation13 + $0x358] sm:$0xff]
    %v1795 = vld [vmem:[#allocation13 + $0x360] sm:$0xff]
    %v1796 = vld [vmem:[#allocation13 + $0x368] sm:$0xff]
    %v1797 = vld [vmem:[#allocation13 + $0x370] sm:$0xff]
    %v1798 = vld [vmem:[#allocation13 + $0x378] sm:$0xff]
    %v1799 = vld [vmem:[#allocation13 + $0x380] sm:$0xff]
    %v1800 = vld [vmem:[#allocation13 + $0x388] sm:$0xff]
    %v1801 = vld [vmem:[#allocation13 + $0x390] sm:$0xff]
    %v1802 = vld [vmem:[#allocation13 + $0x398] sm:$0xff]
    %v1803 = vld [vmem:[#allocation13 + $0x3a0] sm:$0xff]
    %v1804 = vld [vmem:[#allocation13 + $0x3a8] sm:$0xff]
    %v1805 = vld [vmem:[#allocation13 + $0x3b0] sm:$0xff]
    %v1806 = vld [vmem:[#allocation13 + $0x3b8] sm:$0xff]
    %v1807 = vld [vmem:[#allocation13 + $0x3c0] sm:$0xff]
    %v1808 = vld [vmem:[#allocation13 + $0x3c8] sm:$0xff]
    %v1809 = vld [vmem:[#allocation13 + $0x3d0] sm:$0xff]
    %v1810 = vld [vmem:[#allocation13 + $0x3d8] sm:$0xff]
    %v1811 = vld [vmem:[#allocation13 + $0x3e0] sm:$0xff]
    %v1812 = vld [vmem:[#allocation13 + $0x3e8] sm:$0xff]
    %v1813 = vld [vmem:[#allocation13 + $0x3f0] sm:$0xff]
    %v1814 = vld [vmem:[#allocation13 + $0x3f8] sm:$0xff]
    %v1815 = vld [vmem:[#allocation13 + $0x400] sm:$0xff]
    %v1816 = vld [vmem:[#allocation13 + $0x408] sm:$0xff]
    %v1817 = vld [vmem:[#allocation13 + $0x410] sm:$0xff]
    %v1818 = vld [vmem:[#allocation13 + $0x418] sm:$0xff]
    %v1819 = vld [vmem:[#allocation13 + $0x420] sm:$0xff]
    %v1820 = vld [vmem:[#allocation13 + $0x428] sm:$0xff]
    %v1821 = vld [vmem:[#allocation13 + $0x430] sm:$0xff]
    %v1822 = vld [vmem:[#allocation13 + $0x438] sm:$0xff]
    %v1823 = vld [vmem:[#allocation13 + $0x440] sm:$0xff]
    %v1824 = vld [vmem:[#allocation13 + $0x448] sm:$0xff]
    %v1825 = vld [vmem:[#allocation13 + $0x450] sm:$0xff]
    %v1826 = vld [vmem:[#allocation13 + $0x458] sm:$0xff]
    %v1827 = vld [vmem:[#allocation13 + $0x460] sm:$0xff]
    %v1828 = vld [vmem:[#allocation13 + $0x468] sm:$0xff]
    %v1829 = vld [vmem:[#allocation13 + $0x470] sm:$0xff]
    %v1830 = vld [vmem:[#allocation13 + $0x478] sm:$0xff]
    %v1831 = vld [vmem:[#allocation13 + $0x480] sm:$0xff]
    %v1832 = vld [vmem:[#allocation13 + $0x488] sm:$0xff]
    %v1833 = vld [vmem:[#allocation13 + $0x490] sm:$0xff]
    %v1834 = vld [vmem:[#allocation13 + $0x498] sm:$0xff]
    %v1835 = vld [vmem:[#allocation13 + $0x4a0] sm:$0xff]
    %v1836 = vld [vmem:[#allocation13 + $0x4a8] sm:$0xff]
    %v1837 = vld [vmem:[#allocation13 + $0x4b0] sm:$0xff]
    %v1838 = vld [vmem:[#allocation13 + $0x4b8] sm:$0xff]
    %v1839 = vld [vmem:[#allocation13 + $0x4c0] sm:$0xff]
    %v1840 = vld [vmem:[#allocation13 + $0x4c8] sm:$0xff]
    %v1841 = vld [vmem:[#allocation13 + $0x4d0] sm:$0xff]
    %v1842 = vld [vmem:[#allocation13 + $0x4d8] sm:$0xff]
    %v1843 = vld [vmem:[#allocation13 + $0x4e0] sm:$0xff]
    %v1844 = vld [vmem:[#allocation13 + $0x4e8] sm:$0xff]
    %v1845 = vld [vmem:[#allocation13 + $0x4f0] sm:$0xff]
    %v1846 = vld [vmem:[#allocation13 + $0x4f8] sm:$0xff]
    %v1847 = vld [vmem:[#allocation13 + $0x500] sm:$0xff]
    %v1848 = vld [vmem:[#allocation13 + $0x508] sm:$0xff]
    %v1849 = vld [vmem:[#allocation13 + $0x510] sm:$0xff]
    %v1850 = vld [vmem:[#allocation13 + $0x518] sm:$0xff]
    %v1851 = vld [vmem:[#allocation13 + $0x520] sm:$0xff]
    %v1852 = vld [vmem:[#allocation13 + $0x528] sm:$0xff]
    %v1853 = vld [vmem:[#allocation13 + $0x530] sm:$0xff]
    %v1854 = vld [vmem:[#allocation13 + $0x538] sm:$0xff]
    %v1855 = vld [vmem:[#allocation13 + $0x540] sm:$0xff]
    %v1856 = vld [vmem:[#allocation13 + $0x548] sm:$0xff]
    %v1857 = vld [vmem:[#allocation13 + $0x550] sm:$0xff]
    %v1858 = vld [vmem:[#allocation13 + $0x558] sm:$0xff]
    %v1859 = vld [vmem:[#allocation13 + $0x560] sm:$0xff]
    %v1860 = vld [vmem:[#allocation13 + $0x568] sm:$0xff]
    %v1861 = vld [vmem:[#allocation13 + $0x570] sm:$0xff]
    %v1862 = vld [vmem:[#allocation13 + $0x578] sm:$0xff]
    %v1863 = vld [vmem:[#allocation13 + $0x580] sm:$0xff]
    %v1864 = vld [vmem:[#allocation13 + $0x588] sm:$0xff]
    %v1865 = vld [vmem:[#allocation13 + $0x590] sm:$0xff]
    %v1866 = vld [vmem:[#allocation13 + $0x598] sm:$0xff]
    %v1867 = vld [vmem:[#allocation13 + $0x5a0] sm:$0xff]
    %v1868 = vld [vmem:[#allocation13 + $0x5a8] sm:$0xff]
    %v1869 = vld [vmem:[#allocation13 + $0x5b0] sm:$0xff]
    %v1870 = vld [vmem:[#allocation13 + $0x5b8] sm:$0xff]
    %v1871 = vld [vmem:[#allocation13 + $0x5c0] sm:$0xff]
    %v1872 = vld [vmem:[#allocation13 + $0x5c8] sm:$0xff]
    %v1873 = vld [vmem:[#allocation13 + $0x5d0] sm:$0xff]
    %v1874 = vld [vmem:[#allocation13 + $0x5d8] sm:$0xff]
    %v1875 = vld [vmem:[#allocation13 + $0x5e0] sm:$0xff]
    %v1876 = vld [vmem:[#allocation13 + $0x5e8] sm:$0xff]
    %v1877 = vld [vmem:[#allocation13 + $0x5f0] sm:$0xff]
    %v1878 = vld [vmem:[#allocation13 + $0x5f8] sm:$0xff]
    %v1879 = vld [vmem:[#allocation13 + $0x600] sm:$0xff]
    %v1880 = vld [vmem:[#allocation13 + $0x608] sm:$0xff]
    %v1881 = vld [vmem:[#allocation13 + $0x610] sm:$0xff]
    %v1882 = vld [vmem:[#allocation13 + $0x618] sm:$0xff]
    %v1883 = vld [vmem:[#allocation13 + $0x620] sm:$0xff]
    %v1884 = vld [vmem:[#allocation13 + $0x628] sm:$0xff]
    %v1885 = vld [vmem:[#allocation13 + $0x630] sm:$0xff]
    %v1886 = vld [vmem:[#allocation13 + $0x638] sm:$0xff]
    %v1887 = vld [vmem:[#allocation13 + $0x640] sm:$0xff]
    %v1888 = vld [vmem:[#allocation13 + $0x648] sm:$0xff]
    %v1889 = vld [vmem:[#allocation13 + $0x650] sm:$0xff]
    %v1890 = vld [vmem:[#allocation13 + $0x658] sm:$0xff]
    %v1891 = vld [vmem:[#allocation13 + $0x660] sm:$0xff]
    %v1892 = vld [vmem:[#allocation13 + $0x668] sm:$0xff]
    %v1893 = vld [vmem:[#allocation13 + $0x670] sm:$0xff]
    %v1894 = vld [vmem:[#allocation13 + $0x678] sm:$0xff]
    %v1895 = vld [vmem:[#allocation13 + $0x680] sm:$0xff]
    %v1896 = vld [vmem:[#allocation13 + $0x688] sm:$0xff]
    %v1897 = vld [vmem:[#allocation13 + $0x690] sm:$0xff]
    %v1898 = vld [vmem:[#allocation13 + $0x698] sm:$0xff]
    %v1899 = vld [vmem:[#allocation13 + $0x6a0] sm:$0xff]
    %v1900 = vld [vmem:[#allocation13 + $0x6a8] sm:$0xff]
    %v1901 = vld [vmem:[#allocation13 + $0x6b0] sm:$0xff]
    %v1902 = vld [vmem:[#allocation13 + $0x6b8] sm:$0xff]
    %v1903 = vld [vmem:[#allocation13 + $0x6c0] sm:$0xff]
    %v1904 = vld [vmem:[#allocation13 + $0x6c8] sm:$0xff]
    %v1905 = vld [vmem:[#allocation13 + $0x6d0] sm:$0xff]
    %v1906 = vld [vmem:[#allocation13 + $0x6d8] sm:$0xff]
    %v1907 = vld [vmem:[#allocation13 + $0x6e0] sm:$0xff]
    %v1908 = vld [vmem:[#allocation13 + $0x6e8] sm:$0xff]
    %v1909 = vld [vmem:[#allocation13 + $0x6f0] sm:$0xff]
    %v1910 = vld [vmem:[#allocation13 + $0x6f8] sm:$0xff]
    %v1911 = vld [vmem:[#allocation13 + $0x700] sm:$0xff]
    %v1912 = vld [vmem:[#allocation13 + $0x708] sm:$0xff]
    %v1913 = vld [vmem:[#allocation13 + $0x710] sm:$0xff]
    %v1914 = vld [vmem:[#allocation13 + $0x718] sm:$0xff]
    %v1915 = vld [vmem:[#allocation13 + $0x720] sm:$0xff]
    %v1916 = vld [vmem:[#allocation13 + $0x728] sm:$0xff]
    %v1917 = vld [vmem:[#allocation13 + $0x730] sm:$0xff]
    %v1918 = vld [vmem:[#allocation13 + $0x738] sm:$0xff]
    %v1919 = vld [vmem:[#allocation13 + $0x740] sm:$0xff]
    %v1920 = vld [vmem:[#allocation13 + $0x748] sm:$0xff]
    %v1921 = vld [vmem:[#allocation13 + $0x750] sm:$0xff]
    %v1922 = vld [vmem:[#allocation13 + $0x758] sm:$0xff]
    %v1923 = vld [vmem:[#allocation13 + $0x760] sm:$0xff]
    %v1924 = vld [vmem:[#allocation13 + $0x768] sm:$0xff]
    %v1925 = vld [vmem:[#allocation13 + $0x770] sm:$0xff]
    %v1926 = vld [vmem:[#allocation13 + $0x778] sm:$0xff]
    %v1927 = vld [vmem:[#allocation13 + $0x780] sm:$0xff]
    %v1928 = vld [vmem:[#allocation13 + $0x788] sm:$0xff]
    %v1929 = vld [vmem:[#allocation13 + $0x790] sm:$0xff]
    %v1930 = vld [vmem:[#allocation13 + $0x798] sm:$0xff]
    %v1931 = vld [vmem:[#allocation13 + $0x7a0] sm:$0xff]
    %v1932 = vld [vmem:[#allocation13 + $0x7a8] sm:$0xff]
    %v1933 = vld [vmem:[#allocation13 + $0x7b0] sm:$0xff]
    %v1934 = vld [vmem:[#allocation13 + $0x7b8] sm:$0xff]
    %v1935 = vld [vmem:[#allocation13 + $0x7c0] sm:$0xff]
    %v1936 = vld [vmem:[#allocation13 + $0x7c8] sm:$0xff]
    %v1937 = vld [vmem:[#allocation13 + $0x7d0] sm:$0xff]
    %v1938 = vld [vmem:[#allocation13 + $0x7d8] sm:$0xff]
    %v1939 = vld [vmem:[#allocation13 + $0x7e0] sm:$0xff]
    %v1940 = vld [vmem:[#allocation13 + $0x7e8] sm:$0xff]
    %v1941 = vld [vmem:[#allocation13 + $0x7f0] sm:$0xff]
    %v1942 = vld [vmem:[#allocation13 + $0x7f8] sm:$0xff]
    %v1943 = vld [vmem:[#allocation13 + $0x800] sm:$0xff]
    %v1944 = vld [vmem:[#allocation13 + $0x808] sm:$0xff]
    %v1945 = vld [vmem:[#allocation13 + $0x810] sm:$0xff]
    %v1946 = vld [vmem:[#allocation13 + $0x818] sm:$0xff]
    %v1947 = vld [vmem:[#allocation13 + $0x820] sm:$0xff]
    %v1948 = vld [vmem:[#allocation13 + $0x828] sm:$0xff]
    %v1949 = vld [vmem:[#allocation13 + $0x830] sm:$0xff]
    %v1950 = vld [vmem:[#allocation13 + $0x838] sm:$0xff]
    %v1951 = vld [vmem:[#allocation13 + $0x840] sm:$0xff]
    %v1952 = vld [vmem:[#allocation13 + $0x848] sm:$0xff]
    %v1953 = vld [vmem:[#allocation13 + $0x850] sm:$0xff]
    %v1954 = vld [vmem:[#allocation13 + $0x858] sm:$0xff]
    %v1955 = vld [vmem:[#allocation13 + $0x860] sm:$0xff]
    %v1956 = vld [vmem:[#allocation13 + $0x868] sm:$0xff]
    %v1957 = vld [vmem:[#allocation13 + $0x870] sm:$0xff]
    %v1958 = vld [vmem:[#allocation13 + $0x878] sm:$0xff]
    %v1959 = vld [vmem:[#allocation13 + $0x880] sm:$0xff]
    %v1960 = vld [vmem:[#allocation13 + $0x888] sm:$0xff]
    %v1961 = vld [vmem:[#allocation13 + $0x890] sm:$0xff]
    %v1962 = vld [vmem:[#allocation13 + $0x898] sm:$0xff]
    %v1963 = vld [vmem:[#allocation13 + $0x8a0] sm:$0xff]
    %v1964 = vld [vmem:[#allocation13 + $0x8a8] sm:$0xff]
    %v1965 = vld [vmem:[#allocation13 + $0x8b0] sm:$0xff]
    %v1966 = vld [vmem:[#allocation13 + $0x8b8] sm:$0xff]
    %v1967 = vld [vmem:[#allocation13 + $0x8c0] sm:$0xff]
    %v1968 = vld [vmem:[#allocation13 + $0x8c8] sm:$0xff]
    %v1969 = vld [vmem:[#allocation13 + $0x8d0] sm:$0xff]
    %v1970 = vld [vmem:[#allocation13 + $0x8d8] sm:$0xff]
    %v1971 = vld [vmem:[#allocation13 + $0x8e0] sm:$0xff]
    %v1972 = vld [vmem:[#allocation13 + $0x8e8] sm:$0xff]
    %v1973 = vld [vmem:[#allocation13 + $0x8f0] sm:$0xff]
    %v1974 = vld [vmem:[#allocation13 + $0x8f8] sm:$0xff]
    %v1975 = vld [vmem:[#allocation13 + $0x900] sm:$0xff]
    %v1976 = vld [vmem:[#allocation13 + $0x908] sm:$0xff]
    %v1977 = vld [vmem:[#allocation13 + $0x910] sm:$0xff]
    %v1978 = vld [vmem:[#allocation13 + $0x918] sm:$0xff]
    %v1979 = vld [vmem:[#allocation13 + $0x920] sm:$0xff]
    %v1980 = vld [vmem:[#allocation13 + $0x928] sm:$0xff]
    %v1981 = vld [vmem:[#allocation13 + $0x930] sm:$0xff]
    %v1982 = vld [vmem:[#allocation13 + $0x938] sm:$0xff]
    %v1983 = vld [vmem:[#allocation13 + $0x940] sm:$0xff]
    %v1984 = vld [vmem:[#allocation13 + $0x948] sm:$0xff]
    %v1985 = vld [vmem:[#allocation13 + $0x950] sm:$0xff]
    %v1986 = vld [vmem:[#allocation13 + $0x958] sm:$0xff]
    %v1987 = vld [vmem:[#allocation13 + $0x960] sm:$0xff]
    %v1988 = vld [vmem:[#allocation13 + $0x968] sm:$0xff]
    %v1989 = vld [vmem:[#allocation13 + $0x970] sm:$0xff]
    %v1990 = vld [vmem:[#allocation13 + $0x978] sm:$0xff]
    %v1991 = vld [vmem:[#allocation13 + $0x980] sm:$0xff]
    %v1992 = vld [vmem:[#allocation13 + $0x988] sm:$0xff]
    %v1993 = vld [vmem:[#allocation13 + $0x990] sm:$0xff]
    %v1994 = vld [vmem:[#allocation13 + $0x998] sm:$0xff]
    %v1995 = vld [vmem:[#allocation13 + $0x9a0] sm:$0xff]
    %v1996 = vld [vmem:[#allocation13 + $0x9a8] sm:$0xff]
    %v1997 = vld [vmem:[#allocation13 + $0x9b0] sm:$0xff]
    %v1998 = vld [vmem:[#allocation13 + $0x9b8] sm:$0xff]
    %v1999 = vld [vmem:[#allocation13 + $0x9c0] sm:$0xff]
    %v2000 = vld [vmem:[#allocation13 + $0x9c8] sm:$0xff]
    %v2001 = vld [vmem:[#allocation13 + $0x9d0] sm:$0xff]
    %v2002 = vld [vmem:[#allocation13 + $0x9d8] sm:$0xff]
    %v2003 = vld [vmem:[#allocation13 + $0x9e0] sm:$0xff]
    %v2004 = vld [vmem:[#allocation13 + $0x9e8] sm:$0xff]
    %v2005 = vld [vmem:[#allocation13 + $0x9f0] sm:$0xff]
    %v2006 = vld [vmem:[#allocation13 + $0x9f8] sm:$0xff]
    %v2007 = vld [vmem:[#allocation13 + $0xa00] sm:$0xff]
    %v2008 = vld [vmem:[#allocation13 + $0xa08] sm:$0xff]
    %v2009 = vld [vmem:[#allocation13 + $0xa10] sm:$0xff]
    %v2010 = vld [vmem:[#allocation13 + $0xa18] sm:$0xff]
    %v2011 = vld [vmem:[#allocation13 + $0xa20] sm:$0xff]
    %v2012 = vld [vmem:[#allocation13 + $0xa28] sm:$0xff]
    %v2013 = vld [vmem:[#allocation13 + $0xa30] sm:$0xff]
    %v2014 = vld [vmem:[#allocation13 + $0xa38] sm:$0xff]
    %v2015 = vld [vmem:[#allocation13 + $0xa40] sm:$0xff]
    %v2016 = vld [vmem:[#allocation13 + $0xa48] sm:$0xff]
    %v2017 = vld [vmem:[#allocation13 + $0xa50] sm:$0xff]
    %v2018 = vld [vmem:[#allocation13 + $0xa58] sm:$0xff]
    %v2019 = vld [vmem:[#allocation13 + $0xa60] sm:$0xff]
    %v2020 = vld [vmem:[#allocation13 + $0xa68] sm:$0xff]
    %v2021 = vld [vmem:[#allocation13 + $0xa70] sm:$0xff]
    %v2022 = vld [vmem:[#allocation13 + $0xa78] sm:$0xff]
    %v2023 = vld [vmem:[#allocation13 + $0xa80] sm:$0xff]
    %v2024 = vld [vmem:[#allocation13 + $0xa88] sm:$0xff]
    %v2025 = vld [vmem:[#allocation13 + $0xa90] sm:$0xff]
    %v2026 = vld [vmem:[#allocation13 + $0xa98] sm:$0xff]
    %v2027 = vld [vmem:[#allocation13 + $0xaa0] sm:$0xff]
    %v2028 = vld [vmem:[#allocation13 + $0xaa8] sm:$0xff]
    %v2029 = vld [vmem:[#allocation13 + $0xab0] sm:$0xff]
    %v2030 = vld [vmem:[#allocation13 + $0xab8] sm:$0xff]
    %v2031 = vld [vmem:[#allocation13 + $0xac0] sm:$0xff]
    %v2032 = vld [vmem:[#allocation13 + $0xac8] sm:$0xff]
    %v2033 = vld [vmem:[#allocation13 + $0xad0] sm:$0xff]
    %v2034 = vld [vmem:[#allocation13 + $0xad8] sm:$0xff]
    %v2035 = vld [vmem:[#allocation13 + $0xae0] sm:$0xff]
    %v2036 = vld [vmem:[#allocation13 + $0xae8] sm:$0xff]
    %v2037 = vld [vmem:[#allocation13 + $0xaf0] sm:$0xff]
    %v2038 = vld [vmem:[#allocation13 + $0xaf8] sm:$0xff]
    %v2039 = vld [vmem:[#allocation13 + $0xb00] sm:$0xff]
    %v2040 = vld [vmem:[#allocation13 + $0xb08] sm:$0xff]
    %v2041 = vld [vmem:[#allocation13 + $0xb10] sm:$0xff]
    %v2042 = vld [vmem:[#allocation13 + $0xb18] sm:$0xff]
    %v2043 = vld [vmem:[#allocation13 + $0xb20] sm:$0xff]
    %v2044 = vld [vmem:[#allocation13 + $0xb28] sm:$0xff]
    %v2045 = vld [vmem:[#allocation13 + $0xb30] sm:$0xff]
    %v2046 = vld [vmem:[#allocation13 + $0xb38] sm:$0xff]
    %v2047 = vld [vmem:[#allocation13 + $0xb40] sm:$0xff]
    %v2048 = vld [vmem:[#allocation13 + $0xb48] sm:$0xff]
    %v2049 = vld [vmem:[#allocation13 + $0xb50] sm:$0xff]
    %v2050 = vld [vmem:[#allocation13 + $0xb58] sm:$0xff]
    %v2051 = vld [vmem:[#allocation13 + $0xb60] sm:$0xff]
    %v2052 = vld [vmem:[#allocation13 + $0xb68] sm:$0xff]
    %v2053 = vld [vmem:[#allocation13 + $0xb70] sm:$0xff]
    %v2054 = vld [vmem:[#allocation13 + $0xb78] sm:$0xff]
    %v2055 = vld [vmem:[#allocation13 + $0xb80] sm:$0xff]
    %v2056 = vld [vmem:[#allocation13 + $0xb88] sm:$0xff]
    %v2057 = vld [vmem:[#allocation13 + $0xb90] sm:$0xff]
    %v2058 = vld [vmem:[#allocation13 + $0xb98] sm:$0xff]
    %v2059 = vld [vmem:[#allocation13 + $0xba0] sm:$0xff]
    %v2060 = vld [vmem:[#allocation13 + $0xba8] sm:$0xff]
    %v2061 = vld [vmem:[#allocation13 + $0xbb0] sm:$0xff]
    %v2062 = vld [vmem:[#allocation13 + $0xbb8] sm:$0xff]
    %v2063 = vld [vmem:[#allocation13 + $0xbc0] sm:$0xff]
    %v2064 = vld [vmem:[#allocation13 + $0xbc8] sm:$0xff]
    %v2065 = vld [vmem:[#allocation13 + $0xbd0] sm:$0xff]
    %v2066 = vld [vmem:[#allocation13 + $0xbd8] sm:$0xff]
    %v2067 = vld [vmem:[#allocation13 + $0xbe0] sm:$0xff]
    %v2068 = vld [vmem:[#allocation13 + $0xbe8] sm:$0xff]
    %v2069 = vld [vmem:[#allocation13 + $0xbf0] sm:$0xff]
    %v2070 = vld [vmem:[#allocation13 + $0xbf8] sm:$0xff]
    %v2071 = vld [vmem:[#allocation13 + $0xc00] sm:$0xff]
    %v2072 = vld [vmem:[#allocation13 + $0xc08] sm:$0xff]
    %v2073 = vld [vmem:[#allocation13 + $0xc10] sm:$0xff]
    %v2074 = vld [vmem:[#allocation13 + $0xc18] sm:$0xff]
    %v2075 = vld [vmem:[#allocation13 + $0xc20] sm:$0xff]
    %v2076 = vld [vmem:[#allocation13 + $0xc28] sm:$0xff]
    %v2077 = vld [vmem:[#allocation13 + $0xc30] sm:$0xff]
    %v2078 = vld [vmem:[#allocation13 + $0xc38] sm:$0xff]
    %v2079 = vld [vmem:[#allocation13 + $0xc40] sm:$0xff]
    %v2080 = vld [vmem:[#allocation13 + $0xc48] sm:$0xff]
    %v2081 = vld [vmem:[#allocation13 + $0xc50] sm:$0xff]
    %v2082 = vld [vmem:[#allocation13 + $0xc58] sm:$0xff]
    %v2083 = vld [vmem:[#allocation13 + $0xc60] sm:$0xff]
    %v2084 = vld [vmem:[#allocation13 + $0xc68] sm:$0xff]
    %v2085 = vld [vmem:[#allocation13 + $0xc70] sm:$0xff]
    %v2086 = vld [vmem:[#allocation13 + $0xc78] sm:$0xff]
    %v2087 = vld [vmem:[#allocation13 + $0xc80] sm:$0xff]
    %v2088 = vld [vmem:[#allocation13 + $0xc88] sm:$0xff]
    %v2089 = vld [vmem:[#allocation13 + $0xc90] sm:$0xff]
    %v2090 = vld [vmem:[#allocation13 + $0xc98] sm:$0xff]
    %v2091 = vld [vmem:[#allocation13 + $0xca0] sm:$0xff]
    %v2092 = vld [vmem:[#allocation13 + $0xca8] sm:$0xff]
    %v2093 = vld [vmem:[#allocation13 + $0xcb0] sm:$0xff]
    %v2094 = vld [vmem:[#allocation13 + $0xcb8] sm:$0xff]
    %v2095 = vld [vmem:[#allocation13 + $0xcc0] sm:$0xff]
    %v2096 = vld [vmem:[#allocation13 + $0xcc8] sm:$0xff]
    %v2097 = vld [vmem:[#allocation13 + $0xcd0] sm:$0xff]
    %v2098 = vld [vmem:[#allocation13 + $0xcd8] sm:$0xff]
    %v2099 = vld [vmem:[#allocation13 + $0xce0] sm:$0xff]
    %v2100 = vld [vmem:[#allocation13 + $0xce8] sm:$0xff]
    %v2101 = vld [vmem:[#allocation13 + $0xcf0] sm:$0xff]
    %v2102 = vld [vmem:[#allocation13 + $0xcf8] sm:$0xff]
    %v2103 = vld [vmem:[#allocation13 + $0xd00] sm:$0xff]
    %v2104 = vld [vmem:[#allocation13 + $0xd08] sm:$0xff]
    %v2105 = vld [vmem:[#allocation13 + $0xd10] sm:$0xff]
    %v2106 = vld [vmem:[#allocation13 + $0xd18] sm:$0xff]
    %v2107 = vld [vmem:[#allocation13 + $0xd20] sm:$0xff]
    %v2108 = vld [vmem:[#allocation13 + $0xd28] sm:$0xff]
    %v2109 = vld [vmem:[#allocation13 + $0xd30] sm:$0xff]
    %v2110 = vld [vmem:[#allocation13 + $0xd38] sm:$0xff]
    %v2111 = vld [vmem:[#allocation13 + $0xd40] sm:$0xff]
    %v2112 = vld [vmem:[#allocation13 + $0xd48] sm:$0xff]
    %v2113 = vld [vmem:[#allocation13 + $0xd50] sm:$0xff]
    %v2114 = vld [vmem:[#allocation13 + $0xd58] sm:$0xff]
    %v2115 = vld [vmem:[#allocation13 + $0xd60] sm:$0xff]
    %v2116 = vld [vmem:[#allocation13 + $0xd68] sm:$0xff]
    %v2117 = vld [vmem:[#allocation13 + $0xd70] sm:$0xff]
    %v2118 = vld [vmem:[#allocation13 + $0xd78] sm:$0xff]
    %v2119 = vld [vmem:[#allocation13 + $0xd80] sm:$0xff]
    %v2120 = vld [vmem:[#allocation13 + $0xd88] sm:$0xff]
    %v2121 = vld [vmem:[#allocation13 + $0xd90] sm:$0xff]
    %v2122 = vld [vmem:[#allocation13 + $0xd98] sm:$0xff]
    %v2123 = vld [vmem:[#allocation13 + $0xda0] sm:$0xff]
    %v2124 = vld [vmem:[#allocation13 + $0xda8] sm:$0xff]
    %v2125 = vld [vmem:[#allocation13 + $0xdb0] sm:$0xff]
    %v2126 = vld [vmem:[#allocation13 + $0xdb8] sm:$0xff]
    %v2127 = vld [vmem:[#allocation13 + $0xdc0] sm:$0xff]
    %v2128 = vld [vmem:[#allocation13 + $0xdc8] sm:$0xff]
    %v2129 = vld [vmem:[#allocation13 + $0xdd0] sm:$0xff]
    %v2130 = vld [vmem:[#allocation13 + $0xdd8] sm:$0xff]
    %v2131 = vld [vmem:[#allocation13 + $0xde0] sm:$0xff]
    %v2132 = vld [vmem:[#allocation13 + $0xde8] sm:$0xff]
    %v2133 = vld [vmem:[#allocation13 + $0xdf0] sm:$0xff]
    %v2134 = vld [vmem:[#allocation13 + $0xdf8] sm:$0xff]
    %v2135 = vld [vmem:[#allocation13 + $0xe00] sm:$0xff]
    %v2136 = vld [vmem:[#allocation13 + $0xe08] sm:$0xff]
    %v2137 = vld [vmem:[#allocation13 + $0xe10] sm:$0xff]
    %v2138 = vld [vmem:[#allocation13 + $0xe18] sm:$0xff]
    %v2139 = vld [vmem:[#allocation13 + $0xe20] sm:$0xff]
    %v2140 = vld [vmem:[#allocation13 + $0xe28] sm:$0xff]
    %v2141 = vld [vmem:[#allocation13 + $0xe30] sm:$0xff]
    %v2142 = vld [vmem:[#allocation13 + $0xe38] sm:$0xff]
    %v2143 = vld [vmem:[#allocation13 + $0xe40] sm:$0xff]
    %v2144 = vld [vmem:[#allocation13 + $0xe48] sm:$0xff]
    %v2145 = vld [vmem:[#allocation13 + $0xe50] sm:$0xff]
    %v2146 = vld [vmem:[#allocation13 + $0xe58] sm:$0xff]
    %v2147 = vld [vmem:[#allocation13 + $0xe60] sm:$0xff]
    %v2148 = vld [vmem:[#allocation13 + $0xe68] sm:$0xff]
    %v2149 = vld [vmem:[#allocation13 + $0xe70] sm:$0xff]
    %v2150 = vld [vmem:[#allocation13 + $0xe78] sm:$0xff]
    %v2151 = vld [vmem:[#allocation13 + $0xe80] sm:$0xff]
    %v2152 = vld [vmem:[#allocation13 + $0xe88] sm:$0xff]
    %v2153 = vld [vmem:[#allocation13 + $0xe90] sm:$0xff]
    %v2154 = vld [vmem:[#allocation13 + $0xe98] sm:$0xff]
    %v2155 = vld [vmem:[#allocation13 + $0xea0] sm:$0xff]
    %v2156 = vld [vmem:[#allocation13 + $0xea8] sm:$0xff]
    %v2157 = vld [vmem:[#allocation13 + $0xeb0] sm:$0xff]
    %v2158 = vld [vmem:[#allocation13 + $0xeb8] sm:$0xff]
    %v2159 = vld [vmem:[#allocation13 + $0xec0] sm:$0xff]
    %v2160 = vld [vmem:[#allocation13 + $0xec8] sm:$0xff]
    %v2161 = vld [vmem:[#allocation13 + $0xed0] sm:$0xff]
    %v2162 = vld [vmem:[#allocation13 + $0xed8] sm:$0xff]
    %v2163 = vld [vmem:[#allocation13 + $0xee0] sm:$0xff]
    %v2164 = vld [vmem:[#allocation13 + $0xee8] sm:$0xff]
    %v2165 = vld [vmem:[#allocation13 + $0xef0] sm:$0xff]
    %v2166 = vld [vmem:[#allocation13 + $0xef8] sm:$0xff]
    %v2167 = vld [vmem:[#allocation13 + $0xf00] sm:$0xff]
    %v2168 = vld [vmem:[#allocation13 + $0xf08] sm:$0xff]
    %v2169 = vld [vmem:[#allocation13 + $0xf10] sm:$0xff]
    %v2170 = vld [vmem:[#allocation13 + $0xf18] sm:$0xff]
    %v2171 = vld [vmem:[#allocation13 + $0xf20] sm:$0xff]
    %v2172 = vld [vmem:[#allocation13 + $0xf28] sm:$0xff]
    %v2173 = vld [vmem:[#allocation13 + $0xf30] sm:$0xff]
    %v2174 = vld [vmem:[#allocation13 + $0xf38] sm:$0xff]
    %v2175 = vld [vmem:[#allocation13 + $0xf40] sm:$0xff]
    %v2176 = vld [vmem:[#allocation13 + $0xf48] sm:$0xff]
    %v2177 = vld [vmem:[#allocation13 + $0xf50] sm:$0xff]
    %v2178 = vld [vmem:[#allocation13 + $0xf58] sm:$0xff]
    %v2179 = vld [vmem:[#allocation13 + $0xf60] sm:$0xff]
    %v2180 = vld [vmem:[#allocation13 + $0xf68] sm:$0xff]
    %v2181 = vld [vmem:[#allocation13 + $0xf70] sm:$0xff]
    %v2182 = vld [vmem:[#allocation13 + $0xf78] sm:$0xff]
    %v2183 = vld [vmem:[#allocation13 + $0xf80] sm:$0xff]
    %v2184 = vld [vmem:[#allocation13 + $0xf88] sm:$0xff]
    %v2185 = vld [vmem:[#allocation13 + $0xf90] sm:$0xff]
    %v2186 = vld [vmem:[#allocation13 + $0xf98] sm:$0xff]
    %v2187 = vld [vmem:[#allocation13 + $0xfa0] sm:$0xff]
    %v2188 = vld [vmem:[#allocation13 + $0xfa8] sm:$0xff]
    %v2189 = vld [vmem:[#allocation13 + $0xfb0] sm:$0xff]
    %v2190 = vld [vmem:[#allocation13 + $0xfb8] sm:$0xff]
    %v2191 = vld [vmem:[#allocation13 + $0xfc0] sm:$0xff]
    %v2192 = vld [vmem:[#allocation13 + $0xfc8] sm:$0xff]
    %v2193 = vld [vmem:[#allocation13 + $0xfd0] sm:$0xff]
    %v2194 = vld [vmem:[#allocation13 + $0xfd8] sm:$0xff]
    %v2195 = vld [vmem:[#allocation13 + $0xfe0] sm:$0xff]
    %v2196 = vld [vmem:[#allocation13 + $0xfe8] sm:$0xff]
    %v2197 = vld [vmem:[#allocation13 + $0xff0] sm:$0xff]
    %v2198 = vld [vmem:[#allocation13 + $0xff8] sm:$0xff]
    %v2199 = vld [vmem:[#allocation14] sm:$0xff]
    %v2201 = vlaneseq
    %v2202 = vshrl.u32 %v2201, 7
    %v2203 = vsub.s32 0, %v2202
    %v2204 = vrot.slane %v2199, %v2203
    %v2205 = vlaneseq
    %v2206 = vshrl.u32 %v2205, 7
    %v2207 = vsub.s32 1, %v2206
    %v2208 = vrot.slane %v2199, %v2207
    %v2209 = vlaneseq
    %v2210 = vshrl.u32 %v2209, 7
    %v2211 = vsub.s32 2, %v2210
    %v2212 = vrot.slane %v2199, %v2211
    %v2213 = vlaneseq
    %v2214 = vshrl.u32 %v2213, 7
    %v2215 = vsub.s32 3, %v2214
    %v2216 = vrot.slane %v2199, %v2215
    %v2217 = vlaneseq
    %v2218 = vshrl.u32 %v2217, 7
    %v2219 = vsub.s32 4, %v2218
    %v2220 = vrot.slane %v2199, %v2219
    %v2221 = vlaneseq
    %v2222 = vshrl.u32 %v2221, 7
    %v2223 = vsub.s32 5, %v2222
    %v2224 = vrot.slane %v2199, %v2223
    %v2225 = vlaneseq
    %v2226 = vshrl.u32 %v2225, 7
    %v2227 = vsub.s32 6, %v2226
    %v2228 = vrot.slane %v2199, %v2227
    %v2229 = vlaneseq
    %v2230 = vshrl.u32 %v2229, 7
    %v2231 = vsub.s32 7, %v2230
    %v2232 = vrot.slane %v2199, %v2231
    %v2753 = vunpack.c.l.b16 %v1687
    %v2754 = vunpack.c.h.b16 %v1687
    %v2755 = vunpack.c.l.b16 %v1688
    %v2756 = vunpack.c.h.b16 %v1688
    %v2757 = vunpack.c.l.b16 %v1689
    %v2758 = vunpack.c.h.b16 %v1689
    %v2759 = vunpack.c.l.b16 %v1690
    %v2760 = vunpack.c.h.b16 %v1690
    %v2761 = vunpack.c.l.b16 %v1691
    %v2762 = vunpack.c.h.b16 %v1691
    %v2763 = vunpack.c.l.b16 %v1692
    %v2764 = vunpack.c.h.b16 %v1692
    %v2765 = vunpack.c.l.b16 %v1693
    %v2766 = vunpack.c.h.b16 %v1693
    %v2767 = vunpack.c.l.b16 %v1694
    %v2768 = vunpack.c.h.b16 %v1694
    %v2769 = vunpack.c.l.b16 %v1695
    %v2770 = vunpack.c.h.b16 %v1695
    %v2771 = vunpack.c.l.b16 %v1696
    %v2772 = vunpack.c.h.b16 %v1696
    %v2773 = vunpack.c.l.b16 %v1697
    %v2774 = vunpack.c.h.b16 %v1697
    %v2775 = vunpack.c.l.b16 %v1698
    %v2776 = vunpack.c.h.b16 %v1698
    %v2777 = vunpack.c.l.b16 %v1699
    %v2778 = vunpack.c.h.b16 %v1699
    %v2779 = vunpack.c.l.b16 %v1700
    %v2780 = vunpack.c.h.b16 %v1700
    %v2781 = vunpack.c.l.b16 %v1701
    %v2782 = vunpack.c.h.b16 %v1701
    %v2783 = vunpack.c.l.b16 %v1702
    %v2784 = vunpack.c.h.b16 %v1702
    %v2785 = vunpack.c.l.b16 %v1703
    %v2786 = vunpack.c.h.b16 %v1703
    %v2787 = vunpack.c.l.b16 %v1704
    %v2788 = vunpack.c.h.b16 %v1704
    %v2789 = vunpack.c.l.b16 %v1705
    %v2790 = vunpack.c.h.b16 %v1705
    %v2791 = vunpack.c.l.b16 %v1706
    %v2792 = vunpack.c.h.b16 %v1706
    %v2793 = vunpack.c.l.b16 %v1707
    %v2794 = vunpack.c.h.b16 %v1707
    %v2795 = vunpack.c.l.b16 %v1708
    %v2796 = vunpack.c.h.b16 %v1708
    %v2797 = vunpack.c.l.b16 %v1709
    %v2798 = vunpack.c.h.b16 %v1709
    %v2799 = vunpack.c.l.b16 %v1710
    %v2800 = vunpack.c.h.b16 %v1710
    %v2801 = vunpack.c.l.b16 %v1711
    %v2802 = vunpack.c.h.b16 %v1711
    %v2803 = vunpack.c.l.b16 %v1712
    %v2804 = vunpack.c.h.b16 %v1712
    %v2805 = vunpack.c.l.b16 %v1713
    %v2806 = vunpack.c.h.b16 %v1713
    %v2807 = vunpack.c.l.b16 %v1714
    %v2808 = vunpack.c.h.b16 %v1714
    %v2809 = vunpack.c.l.b16 %v1715
    %v2810 = vunpack.c.h.b16 %v1715
    %v2811 = vunpack.c.l.b16 %v1716
    %v2812 = vunpack.c.h.b16 %v1716
    %v2813 = vunpack.c.l.b16 %v1717
    %v2814 = vunpack.c.h.b16 %v1717
    %v2815 = vunpack.c.l.b16 %v1718
    %v2816 = vunpack.c.h.b16 %v1718
    %v2817 = vunpack.c.l.b16 %v1719
    %v2818 = vunpack.c.h.b16 %v1719
    %v2819 = vunpack.c.l.b16 %v1720
    %v2820 = vunpack.c.h.b16 %v1720
    %v2821 = vunpack.c.l.b16 %v1721
    %v2822 = vunpack.c.h.b16 %v1721
    %v2823 = vunpack.c.l.b16 %v1722
    %v2824 = vunpack.c.h.b16 %v1722
    %v2825 = vunpack.c.l.b16 %v1723
    %v2826 = vunpack.c.h.b16 %v1723
    %v2827 = vunpack.c.l.b16 %v1724
    %v2828 = vunpack.c.h.b16 %v1724
    %v2829 = vunpack.c.l.b16 %v1725
    %v2830 = vunpack.c.h.b16 %v1725
    %v2831 = vunpack.c.l.b16 %v1726
    %v2832 = vunpack.c.h.b16 %v1726
    %v2833 = vunpack.c.l.b16 %v1727
    %v2834 = vunpack.c.h.b16 %v1727
    %v2835 = vunpack.c.l.b16 %v1728
    %v2836 = vunpack.c.h.b16 %v1728
    %v2837 = vunpack.c.l.b16 %v1729
    %v2838 = vunpack.c.h.b16 %v1729
    %v2839 = vunpack.c.l.b16 %v1730
    %v2840 = vunpack.c.h.b16 %v1730
    %v2841 = vunpack.c.l.b16 %v1731
    %v2842 = vunpack.c.h.b16 %v1731
    %v2843 = vunpack.c.l.b16 %v1732
    %v2844 = vunpack.c.h.b16 %v1732
    %v2845 = vunpack.c.l.b16 %v1733
    %v2846 = vunpack.c.h.b16 %v1733
    %v2847 = vunpack.c.l.b16 %v1734
    %v2848 = vunpack.c.h.b16 %v1734
    %v2849 = vunpack.c.l.b16 %v1735
    %v2850 = vunpack.c.h.b16 %v1735
    %v2851 = vunpack.c.l.b16 %v1736
    %v2852 = vunpack.c.h.b16 %v1736
    %v2853 = vunpack.c.l.b16 %v1737
    %v2854 = vunpack.c.h.b16 %v1737
    %v2855 = vunpack.c.l.b16 %v1738
    %v2856 = vunpack.c.h.b16 %v1738
    %v2857 = vunpack.c.l.b16 %v1739
    %v2858 = vunpack.c.h.b16 %v1739
    %v2859 = vunpack.c.l.b16 %v1740
    %v2860 = vunpack.c.h.b16 %v1740
    %v2861 = vunpack.c.l.b16 %v1741
    %v2862 = vunpack.c.h.b16 %v1741
    %v2863 = vunpack.c.l.b16 %v1742
    %v2864 = vunpack.c.h.b16 %v1742
    %v2865 = vunpack.c.l.b16 %v1743
    %v2866 = vunpack.c.h.b16 %v1743
    %v2867 = vunpack.c.l.b16 %v1744
    %v2868 = vunpack.c.h.b16 %v1744
    %v2869 = vunpack.c.l.b16 %v1745
    %v2870 = vunpack.c.h.b16 %v1745
    %v2871 = vunpack.c.l.b16 %v1746
    %v2872 = vunpack.c.h.b16 %v1746
    %v2873 = vunpack.c.l.b16 %v1747
    %v2874 = vunpack.c.h.b16 %v1747
    %v2875 = vunpack.c.l.b16 %v1748
    %v2876 = vunpack.c.h.b16 %v1748
    %v2877 = vunpack.c.l.b16 %v1749
    %v2878 = vunpack.c.h.b16 %v1749
    %v2879 = vunpack.c.l.b16 %v1750
    %v2880 = vunpack.c.h.b16 %v1750
    %v2881 = vunpack.c.l.b16 %v1751
    %v2882 = vunpack.c.h.b16 %v1751
    %v2883 = vunpack.c.l.b16 %v1752
    %v2884 = vunpack.c.h.b16 %v1752
    %v2885 = vunpack.c.l.b16 %v1753
    %v2886 = vunpack.c.h.b16 %v1753
    %v2887 = vunpack.c.l.b16 %v1754
    %v2888 = vunpack.c.h.b16 %v1754
    %v2889 = vunpack.c.l.b16 %v1755
    %v2890 = vunpack.c.h.b16 %v1755
    %v2891 = vunpack.c.l.b16 %v1756
    %v2892 = vunpack.c.h.b16 %v1756
    %v2893 = vunpack.c.l.b16 %v1757
    %v2894 = vunpack.c.h.b16 %v1757
    %v2895 = vunpack.c.l.b16 %v1758
    %v2896 = vunpack.c.h.b16 %v1758
    %v2897 = vunpack.c.l.b16 %v1759
    %v2898 = vunpack.c.h.b16 %v1759
    %v2899 = vunpack.c.l.b16 %v1760
    %v2900 = vunpack.c.h.b16 %v1760
    %v2901 = vunpack.c.l.b16 %v1761
    %v2902 = vunpack.c.h.b16 %v1761
    %v2903 = vunpack.c.l.b16 %v1762
    %v2904 = vunpack.c.h.b16 %v1762
    %v2905 = vunpack.c.l.b16 %v1763
    %v2906 = vunpack.c.h.b16 %v1763
    %v2907 = vunpack.c.l.b16 %v1764
    %v2908 = vunpack.c.h.b16 %v1764
    %v2909 = vunpack.c.l.b16 %v1765
    %v2910 = vunpack.c.h.b16 %v1765
    %v2911 = vunpack.c.l.b16 %v1766
    %v2912 = vunpack.c.h.b16 %v1766
    %v2913 = vunpack.c.l.b16 %v1767
    %v2914 = vunpack.c.h.b16 %v1767
    %v2915 = vunpack.c.l.b16 %v1768
    %v2916 = vunpack.c.h.b16 %v1768
    %v2917 = vunpack.c.l.b16 %v1769
    %v2918 = vunpack.c.h.b16 %v1769
    %v2919 = vunpack.c.l.b16 %v1770
    %v2920 = vunpack.c.h.b16 %v1770
    %v2921 = vunpack.c.l.b16 %v1771
    %v2922 = vunpack.c.h.b16 %v1771
    %v2923 = vunpack.c.l.b16 %v1772
    %v2924 = vunpack.c.h.b16 %v1772
    %v2925 = vunpack.c.l.b16 %v1773
    %v2926 = vunpack.c.h.b16 %v1773
    %v2927 = vunpack.c.l.b16 %v1774
    %v2928 = vunpack.c.h.b16 %v1774
    %v2929 = vunpack.c.l.b16 %v1775
    %v2930 = vunpack.c.h.b16 %v1775
    %v2931 = vunpack.c.l.b16 %v1776
    %v2932 = vunpack.c.h.b16 %v1776
    %v2933 = vunpack.c.l.b16 %v1777
    %v2934 = vunpack.c.h.b16 %v1777
    %v2935 = vunpack.c.l.b16 %v1778
    %v2936 = vunpack.c.h.b16 %v1778
    %v2937 = vunpack.c.l.b16 %v1779
    %v2938 = vunpack.c.h.b16 %v1779
    %v2939 = vunpack.c.l.b16 %v1780
    %v2940 = vunpack.c.h.b16 %v1780
    %v2941 = vunpack.c.l.b16 %v1781
    %v2942 = vunpack.c.h.b16 %v1781
    %v2943 = vunpack.c.l.b16 %v1782
    %v2944 = vunpack.c.h.b16 %v1782
    %v2945 = vunpack.c.l.b16 %v1783
    %v2946 = vunpack.c.h.b16 %v1783
    %v2947 = vunpack.c.l.b16 %v1784
    %v2948 = vunpack.c.h.b16 %v1784
    %v2949 = vunpack.c.l.b16 %v1785
    %v2950 = vunpack.c.h.b16 %v1785
    %v2951 = vunpack.c.l.b16 %v1786
    %v2952 = vunpack.c.h.b16 %v1786
    %v2953 = vunpack.c.l.b16 %v1787
    %v2954 = vunpack.c.h.b16 %v1787
    %v2955 = vunpack.c.l.b16 %v1788
    %v2956 = vunpack.c.h.b16 %v1788
    %v2957 = vunpack.c.l.b16 %v1789
    %v2958 = vunpack.c.h.b16 %v1789
    %v2959 = vunpack.c.l.b16 %v1790
    %v2960 = vunpack.c.h.b16 %v1790
    %v2961 = vunpack.c.l.b16 %v1791
    %v2962 = vunpack.c.h.b16 %v1791
    %v2963 = vunpack.c.l.b16 %v1792
    %v2964 = vunpack.c.h.b16 %v1792
    %v2965 = vunpack.c.l.b16 %v1793
    %v2966 = vunpack.c.h.b16 %v1793
    %v2967 = vunpack.c.l.b16 %v1794
    %v2968 = vunpack.c.h.b16 %v1794
    %v2969 = vunpack.c.l.b16 %v1795
    %v2970 = vunpack.c.h.b16 %v1795
    %v2971 = vunpack.c.l.b16 %v1796
    %v2972 = vunpack.c.h.b16 %v1796
    %v2973 = vunpack.c.l.b16 %v1797
    %v2974 = vunpack.c.h.b16 %v1797
    %v2975 = vunpack.c.l.b16 %v1798
    %v2976 = vunpack.c.h.b16 %v1798
    %v2977 = vunpack.c.l.b16 %v1799
    %v2978 = vunpack.c.h.b16 %v1799
    %v2979 = vunpack.c.l.b16 %v1800
    %v2980 = vunpack.c.h.b16 %v1800
    %v2981 = vunpack.c.l.b16 %v1801
    %v2982 = vunpack.c.h.b16 %v1801
    %v2983 = vunpack.c.l.b16 %v1802
    %v2984 = vunpack.c.h.b16 %v1802
    %v2985 = vunpack.c.l.b16 %v1803
    %v2986 = vunpack.c.h.b16 %v1803
    %v2987 = vunpack.c.l.b16 %v1804
    %v2988 = vunpack.c.h.b16 %v1804
    %v2989 = vunpack.c.l.b16 %v1805
    %v2990 = vunpack.c.h.b16 %v1805
    %v2991 = vunpack.c.l.b16 %v1806
    %v2992 = vunpack.c.h.b16 %v1806
    %v2993 = vunpack.c.l.b16 %v1807
    %v2994 = vunpack.c.h.b16 %v1807
    %v2995 = vunpack.c.l.b16 %v1808
    %v2996 = vunpack.c.h.b16 %v1808
    %v2997 = vunpack.c.l.b16 %v1809
    %v2998 = vunpack.c.h.b16 %v1809
    %v2999 = vunpack.c.l.b16 %v1810
    %v3000 = vunpack.c.h.b16 %v1810
    %v3001 = vunpack.c.l.b16 %v1811
    %v3002 = vunpack.c.h.b16 %v1811
    %v3003 = vunpack.c.l.b16 %v1812
    %v3004 = vunpack.c.h.b16 %v1812
    %v3005 = vunpack.c.l.b16 %v1813
    %v3006 = vunpack.c.h.b16 %v1813
    %v3007 = vunpack.c.l.b16 %v1814
    %v3008 = vunpack.c.h.b16 %v1814
    %v3009 = vunpack.c.l.b16 %v1815
    %v3010 = vunpack.c.h.b16 %v1815
    %v3011 = vunpack.c.l.b16 %v1816
    %v3012 = vunpack.c.h.b16 %v1816
    %v3013 = vunpack.c.l.b16 %v1817
    %v3014 = vunpack.c.h.b16 %v1817
    %v3015 = vunpack.c.l.b16 %v1818
    %v3016 = vunpack.c.h.b16 %v1818
    %v3017 = vunpack.c.l.b16 %v1819
    %v3018 = vunpack.c.h.b16 %v1819
    %v3019 = vunpack.c.l.b16 %v1820
    %v3020 = vunpack.c.h.b16 %v1820
    %v3021 = vunpack.c.l.b16 %v1821
    %v3022 = vunpack.c.h.b16 %v1821
    %v3023 = vunpack.c.l.b16 %v1822
    %v3024 = vunpack.c.h.b16 %v1822
    %v3025 = vunpack.c.l.b16 %v1823
    %v3026 = vunpack.c.h.b16 %v1823
    %v3027 = vunpack.c.l.b16 %v1824
    %v3028 = vunpack.c.h.b16 %v1824
    %v3029 = vunpack.c.l.b16 %v1825
    %v3030 = vunpack.c.h.b16 %v1825
    %v3031 = vunpack.c.l.b16 %v1826
    %v3032 = vunpack.c.h.b16 %v1826
    %v3033 = vunpack.c.l.b16 %v1827
    %v3034 = vunpack.c.h.b16 %v1827
    %v3035 = vunpack.c.l.b16 %v1828
    %v3036 = vunpack.c.h.b16 %v1828
    %v3037 = vunpack.c.l.b16 %v1829
    %v3038 = vunpack.c.h.b16 %v1829
    %v3039 = vunpack.c.l.b16 %v1830
    %v3040 = vunpack.c.h.b16 %v1830
    %v3041 = vunpack.c.l.b16 %v1831
    %v3042 = vunpack.c.h.b16 %v1831
    %v3043 = vunpack.c.l.b16 %v1832
    %v3044 = vunpack.c.h.b16 %v1832
    %v3045 = vunpack.c.l.b16 %v1833
    %v3046 = vunpack.c.h.b16 %v1833
    %v3047 = vunpack.c.l.b16 %v1834
    %v3048 = vunpack.c.h.b16 %v1834
    %v3049 = vunpack.c.l.b16 %v1835
    %v3050 = vunpack.c.h.b16 %v1835
    %v3051 = vunpack.c.l.b16 %v1836
    %v3052 = vunpack.c.h.b16 %v1836
    %v3053 = vunpack.c.l.b16 %v1837
    %v3054 = vunpack.c.h.b16 %v1837
    %v3055 = vunpack.c.l.b16 %v1838
    %v3056 = vunpack.c.h.b16 %v1838
    %v3057 = vunpack.c.l.b16 %v1839
    %v3058 = vunpack.c.h.b16 %v1839
    %v3059 = vunpack.c.l.b16 %v1840
    %v3060 = vunpack.c.h.b16 %v1840
    %v3061 = vunpack.c.l.b16 %v1841
    %v3062 = vunpack.c.h.b16 %v1841
    %v3063 = vunpack.c.l.b16 %v1842
    %v3064 = vunpack.c.h.b16 %v1842
    %v3065 = vunpack.c.l.b16 %v1843
    %v3066 = vunpack.c.h.b16 %v1843
    %v3067 = vunpack.c.l.b16 %v1844
    %v3068 = vunpack.c.h.b16 %v1844
    %v3069 = vunpack.c.l.b16 %v1845
    %v3070 = vunpack.c.h.b16 %v1845
    %v3071 = vunpack.c.l.b16 %v1846
    %v3072 = vunpack.c.h.b16 %v1846
    %v3073 = vunpack.c.l.b16 %v1847
    %v3074 = vunpack.c.h.b16 %v1847
    %v3075 = vunpack.c.l.b16 %v1848
    %v3076 = vunpack.c.h.b16 %v1848
    %v3077 = vunpack.c.l.b16 %v1849
    %v3078 = vunpack.c.h.b16 %v1849
    %v3079 = vunpack.c.l.b16 %v1850
    %v3080 = vunpack.c.h.b16 %v1850
    %v3081 = vunpack.c.l.b16 %v1851
    %v3082 = vunpack.c.h.b16 %v1851
    %v3083 = vunpack.c.l.b16 %v1852
    %v3084 = vunpack.c.h.b16 %v1852
    %v3085 = vunpack.c.l.b16 %v1853
    %v3086 = vunpack.c.h.b16 %v1853
    %v3087 = vunpack.c.l.b16 %v1854
    %v3088 = vunpack.c.h.b16 %v1854
    %v3089 = vunpack.c.l.b16 %v1855
    %v3090 = vunpack.c.h.b16 %v1855
    %v3091 = vunpack.c.l.b16 %v1856
    %v3092 = vunpack.c.h.b16 %v1856
    %v3093 = vunpack.c.l.b16 %v1857
    %v3094 = vunpack.c.h.b16 %v1857
    %v3095 = vunpack.c.l.b16 %v1858
    %v3096 = vunpack.c.h.b16 %v1858
    %v3097 = vunpack.c.l.b16 %v1859
    %v3098 = vunpack.c.h.b16 %v1859
    %v3099 = vunpack.c.l.b16 %v1860
    %v3100 = vunpack.c.h.b16 %v1860
    %v3101 = vunpack.c.l.b16 %v1861
    %v3102 = vunpack.c.h.b16 %v1861
    %v3103 = vunpack.c.l.b16 %v1862
    %v3104 = vunpack.c.h.b16 %v1862
    %v3105 = vunpack.c.l.b16 %v1863
    %v3106 = vunpack.c.h.b16 %v1863
    %v3107 = vunpack.c.l.b16 %v1864
    %v3108 = vunpack.c.h.b16 %v1864
    %v3109 = vunpack.c.l.b16 %v1865
    %v3110 = vunpack.c.h.b16 %v1865
    %v3111 = vunpack.c.l.b16 %v1866
    %v3112 = vunpack.c.h.b16 %v1866
    %v3113 = vunpack.c.l.b16 %v1867
    %v3114 = vunpack.c.h.b16 %v1867
    %v3115 = vunpack.c.l.b16 %v1868
    %v3116 = vunpack.c.h.b16 %v1868
    %v3117 = vunpack.c.l.b16 %v1869
    %v3118 = vunpack.c.h.b16 %v1869
    %v3119 = vunpack.c.l.b16 %v1870
    %v3120 = vunpack.c.h.b16 %v1870
    %v3121 = vunpack.c.l.b16 %v1871
    %v3122 = vunpack.c.h.b16 %v1871
    %v3123 = vunpack.c.l.b16 %v1872
    %v3124 = vunpack.c.h.b16 %v1872
    %v3125 = vunpack.c.l.b16 %v1873
    %v3126 = vunpack.c.h.b16 %v1873
    %v3127 = vunpack.c.l.b16 %v1874
    %v3128 = vunpack.c.h.b16 %v1874
    %v3129 = vunpack.c.l.b16 %v1875
    %v3130 = vunpack.c.h.b16 %v1875
    %v3131 = vunpack.c.l.b16 %v1876
    %v3132 = vunpack.c.h.b16 %v1876
    %v3133 = vunpack.c.l.b16 %v1877
    %v3134 = vunpack.c.h.b16 %v1877
    %v3135 = vunpack.c.l.b16 %v1878
    %v3136 = vunpack.c.h.b16 %v1878
    %v3137 = vunpack.c.l.b16 %v1879
    %v3138 = vunpack.c.h.b16 %v1879
    %v3139 = vunpack.c.l.b16 %v1880
    %v3140 = vunpack.c.h.b16 %v1880
    %v3141 = vunpack.c.l.b16 %v1881
    %v3142 = vunpack.c.h.b16 %v1881
    %v3143 = vunpack.c.l.b16 %v1882
    %v3144 = vunpack.c.h.b16 %v1882
    %v3145 = vunpack.c.l.b16 %v1883
    %v3146 = vunpack.c.h.b16 %v1883
    %v3147 = vunpack.c.l.b16 %v1884
    %v3148 = vunpack.c.h.b16 %v1884
    %v3149 = vunpack.c.l.b16 %v1885
    %v3150 = vunpack.c.h.b16 %v1885
    %v3151 = vunpack.c.l.b16 %v1886
    %v3152 = vunpack.c.h.b16 %v1886
    %v3153 = vunpack.c.l.b16 %v1887
    %v3154 = vunpack.c.h.b16 %v1887
    %v3155 = vunpack.c.l.b16 %v1888
    %v3156 = vunpack.c.h.b16 %v1888
    %v3157 = vunpack.c.l.b16 %v1889
    %v3158 = vunpack.c.h.b16 %v1889
    %v3159 = vunpack.c.l.b16 %v1890
    %v3160 = vunpack.c.h.b16 %v1890
    %v3161 = vunpack.c.l.b16 %v1891
    %v3162 = vunpack.c.h.b16 %v1891
    %v3163 = vunpack.c.l.b16 %v1892
    %v3164 = vunpack.c.h.b16 %v1892
    %v3165 = vunpack.c.l.b16 %v1893
    %v3166 = vunpack.c.h.b16 %v1893
    %v3167 = vunpack.c.l.b16 %v1894
    %v3168 = vunpack.c.h.b16 %v1894
    %v3169 = vunpack.c.l.b16 %v1895
    %v3170 = vunpack.c.h.b16 %v1895
    %v3171 = vunpack.c.l.b16 %v1896
    %v3172 = vunpack.c.h.b16 %v1896
    %v3173 = vunpack.c.l.b16 %v1897
    %v3174 = vunpack.c.h.b16 %v1897
    %v3175 = vunpack.c.l.b16 %v1898
    %v3176 = vunpack.c.h.b16 %v1898
    %v3177 = vunpack.c.l.b16 %v1899
    %v3178 = vunpack.c.h.b16 %v1899
    %v3179 = vunpack.c.l.b16 %v1900
    %v3180 = vunpack.c.h.b16 %v1900
    %v3181 = vunpack.c.l.b16 %v1901
    %v3182 = vunpack.c.h.b16 %v1901
    %v3183 = vunpack.c.l.b16 %v1902
    %v3184 = vunpack.c.h.b16 %v1902
    %v3185 = vunpack.c.l.b16 %v1903
    %v3186 = vunpack.c.h.b16 %v1903
    %v3187 = vunpack.c.l.b16 %v1904
    %v3188 = vunpack.c.h.b16 %v1904
    %v3189 = vunpack.c.l.b16 %v1905
    %v3190 = vunpack.c.h.b16 %v1905
    %v3191 = vunpack.c.l.b16 %v1906
    %v3192 = vunpack.c.h.b16 %v1906
    %v3193 = vunpack.c.l.b16 %v1907
    %v3194 = vunpack.c.h.b16 %v1907
    %v3195 = vunpack.c.l.b16 %v1908
    %v3196 = vunpack.c.h.b16 %v1908
    %v3197 = vunpack.c.l.b16 %v1909
    %v3198 = vunpack.c.h.b16 %v1909
    %v3199 = vunpack.c.l.b16 %v1910
    %v3200 = vunpack.c.h.b16 %v1910
    %v3201 = vunpack.c.l.b16 %v1911
    %v3202 = vunpack.c.h.b16 %v1911
    %v3203 = vunpack.c.l.b16 %v1912
    %v3204 = vunpack.c.h.b16 %v1912
    %v3205 = vunpack.c.l.b16 %v1913
    %v3206 = vunpack.c.h.b16 %v1913
    %v3207 = vunpack.c.l.b16 %v1914
    %v3208 = vunpack.c.h.b16 %v1914
    %v3209 = vunpack.c.l.b16 %v1915
    %v3210 = vunpack.c.h.b16 %v1915
    %v3211 = vunpack.c.l.b16 %v1916
    %v3212 = vunpack.c.h.b16 %v1916
    %v3213 = vunpack.c.l.b16 %v1917
    %v3214 = vunpack.c.h.b16 %v1917
    %v3215 = vunpack.c.l.b16 %v1918
    %v3216 = vunpack.c.h.b16 %v1918
    %v3217 = vunpack.c.l.b16 %v1919
    %v3218 = vunpack.c.h.b16 %v1919
    %v3219 = vunpack.c.l.b16 %v1920
    %v3220 = vunpack.c.h.b16 %v1920
    %v3221 = vunpack.c.l.b16 %v1921
    %v3222 = vunpack.c.h.b16 %v1921
    %v3223 = vunpack.c.l.b16 %v1922
    %v3224 = vunpack.c.h.b16 %v1922
    %v3225 = vunpack.c.l.b16 %v1923
    %v3226 = vunpack.c.h.b16 %v1923
    %v3227 = vunpack.c.l.b16 %v1924
    %v3228 = vunpack.c.h.b16 %v1924
    %v3229 = vunpack.c.l.b16 %v1925
    %v3230 = vunpack.c.h.b16 %v1925
    %v3231 = vunpack.c.l.b16 %v1926
    %v3232 = vunpack.c.h.b16 %v1926
    %v3233 = vunpack.c.l.b16 %v1927
    %v3234 = vunpack.c.h.b16 %v1927
    %v3235 = vunpack.c.l.b16 %v1928
    %v3236 = vunpack.c.h.b16 %v1928
    %v3237 = vunpack.c.l.b16 %v1929
    %v3238 = vunpack.c.h.b16 %v1929
    %v3239 = vunpack.c.l.b16 %v1930
    %v3240 = vunpack.c.h.b16 %v1930
    %v3241 = vunpack.c.l.b16 %v1931
    %v3242 = vunpack.c.h.b16 %v1931
    %v3243 = vunpack.c.l.b16 %v1932
    %v3244 = vunpack.c.h.b16 %v1932
    %v3245 = vunpack.c.l.b16 %v1933
    %v3246 = vunpack.c.h.b16 %v1933
    %v3247 = vunpack.c.l.b16 %v1934
    %v3248 = vunpack.c.h.b16 %v1934
    %v3249 = vunpack.c.l.b16 %v1935
    %v3250 = vunpack.c.h.b16 %v1935
    %v3251 = vunpack.c.l.b16 %v1936
    %v3252 = vunpack.c.h.b16 %v1936
    %v3253 = vunpack.c.l.b16 %v1937
    %v3254 = vunpack.c.h.b16 %v1937
    %v3255 = vunpack.c.l.b16 %v1938
    %v3256 = vunpack.c.h.b16 %v1938
    %v3257 = vunpack.c.l.b16 %v1939
    %v3258 = vunpack.c.h.b16 %v1939
    %v3259 = vunpack.c.l.b16 %v1940
    %v3260 = vunpack.c.h.b16 %v1940
    %v3261 = vunpack.c.l.b16 %v1941
    %v3262 = vunpack.c.h.b16 %v1941
    %v3263 = vunpack.c.l.b16 %v1942
    %v3264 = vunpack.c.h.b16 %v1942
    %v3265 = vunpack.c.l.b16 %v1943
    %v3266 = vunpack.c.h.b16 %v1943
    %v3267 = vunpack.c.l.b16 %v1944
    %v3268 = vunpack.c.h.b16 %v1944
    %v3269 = vunpack.c.l.b16 %v1945
    %v3270 = vunpack.c.h.b16 %v1945
    %v3271 = vunpack.c.l.b16 %v1946
    %v3272 = vunpack.c.h.b16 %v1946
    %v3273 = vunpack.c.l.b16 %v1947
    %v3274 = vunpack.c.h.b16 %v1947
    %v3275 = vunpack.c.l.b16 %v1948
    %v3276 = vunpack.c.h.b16 %v1948
    %v3277 = vunpack.c.l.b16 %v1949
    %v3278 = vunpack.c.h.b16 %v1949
    %v3279 = vunpack.c.l.b16 %v1950
    %v3280 = vunpack.c.h.b16 %v1950
    %v3281 = vunpack.c.l.b16 %v1951
    %v3282 = vunpack.c.h.b16 %v1951
    %v3283 = vunpack.c.l.b16 %v1952
    %v3284 = vunpack.c.h.b16 %v1952
    %v3285 = vunpack.c.l.b16 %v1953
    %v3286 = vunpack.c.h.b16 %v1953
    %v3287 = vunpack.c.l.b16 %v1954
    %v3288 = vunpack.c.h.b16 %v1954
    %v3289 = vunpack.c.l.b16 %v1955
    %v3290 = vunpack.c.h.b16 %v1955
    %v3291 = vunpack.c.l.b16 %v1956
    %v3292 = vunpack.c.h.b16 %v1956
    %v3293 = vunpack.c.l.b16 %v1957
    %v3294 = vunpack.c.h.b16 %v1957
    %v3295 = vunpack.c.l.b16 %v1958
    %v3296 = vunpack.c.h.b16 %v1958
    %v3297 = vunpack.c.l.b16 %v1959
    %v3298 = vunpack.c.h.b16 %v1959
    %v3299 = vunpack.c.l.b16 %v1960
    %v3300 = vunpack.c.h.b16 %v1960
    %v3301 = vunpack.c.l.b16 %v1961
    %v3302 = vunpack.c.h.b16 %v1961
    %v3303 = vunpack.c.l.b16 %v1962
    %v3304 = vunpack.c.h.b16 %v1962
    %v3305 = vunpack.c.l.b16 %v1963
    %v3306 = vunpack.c.h.b16 %v1963
    %v3307 = vunpack.c.l.b16 %v1964
    %v3308 = vunpack.c.h.b16 %v1964
    %v3309 = vunpack.c.l.b16 %v1965
    %v3310 = vunpack.c.h.b16 %v1965
    %v3311 = vunpack.c.l.b16 %v1966
    %v3312 = vunpack.c.h.b16 %v1966
    %v3313 = vunpack.c.l.b16 %v1967
    %v3314 = vunpack.c.h.b16 %v1967
    %v3315 = vunpack.c.l.b16 %v1968
    %v3316 = vunpack.c.h.b16 %v1968
    %v3317 = vunpack.c.l.b16 %v1969
    %v3318 = vunpack.c.h.b16 %v1969
    %v3319 = vunpack.c.l.b16 %v1970
    %v3320 = vunpack.c.h.b16 %v1970
    %v3321 = vunpack.c.l.b16 %v1971
    %v3322 = vunpack.c.h.b16 %v1971
    %v3323 = vunpack.c.l.b16 %v1972
    %v3324 = vunpack.c.h.b16 %v1972
    %v3325 = vunpack.c.l.b16 %v1973
    %v3326 = vunpack.c.h.b16 %v1973
    %v3327 = vunpack.c.l.b16 %v1974
    %v3328 = vunpack.c.h.b16 %v1974
    %v3329 = vunpack.c.l.b16 %v1975
    %v3330 = vunpack.c.h.b16 %v1975
    %v3331 = vunpack.c.l.b16 %v1976
    %v3332 = vunpack.c.h.b16 %v1976
    %v3333 = vunpack.c.l.b16 %v1977
    %v3334 = vunpack.c.h.b16 %v1977
    %v3335 = vunpack.c.l.b16 %v1978
    %v3336 = vunpack.c.h.b16 %v1978
    %v3337 = vunpack.c.l.b16 %v1979
    %v3338 = vunpack.c.h.b16 %v1979
    %v3339 = vunpack.c.l.b16 %v1980
    %v3340 = vunpack.c.h.b16 %v1980
    %v3341 = vunpack.c.l.b16 %v1981
    %v3342 = vunpack.c.h.b16 %v1981
    %v3343 = vunpack.c.l.b16 %v1982
    %v3344 = vunpack.c.h.b16 %v1982
    %v3345 = vunpack.c.l.b16 %v1983
    %v3346 = vunpack.c.h.b16 %v1983
    %v3347 = vunpack.c.l.b16 %v1984
    %v3348 = vunpack.c.h.b16 %v1984
    %v3349 = vunpack.c.l.b16 %v1985
    %v3350 = vunpack.c.h.b16 %v1985
    %v3351 = vunpack.c.l.b16 %v1986
    %v3352 = vunpack.c.h.b16 %v1986
    %v3353 = vunpack.c.l.b16 %v1987
    %v3354 = vunpack.c.h.b16 %v1987
    %v3355 = vunpack.c.l.b16 %v1988
    %v3356 = vunpack.c.h.b16 %v1988
    %v3357 = vunpack.c.l.b16 %v1989
    %v3358 = vunpack.c.h.b16 %v1989
    %v3359 = vunpack.c.l.b16 %v1990
    %v3360 = vunpack.c.h.b16 %v1990
    %v3361 = vunpack.c.l.b16 %v1991
    %v3362 = vunpack.c.h.b16 %v1991
    %v3363 = vunpack.c.l.b16 %v1992
    %v3364 = vunpack.c.h.b16 %v1992
    %v3365 = vunpack.c.l.b16 %v1993
    %v3366 = vunpack.c.h.b16 %v1993
    %v3367 = vunpack.c.l.b16 %v1994
    %v3368 = vunpack.c.h.b16 %v1994
    %v3369 = vunpack.c.l.b16 %v1995
    %v3370 = vunpack.c.h.b16 %v1995
    %v3371 = vunpack.c.l.b16 %v1996
    %v3372 = vunpack.c.h.b16 %v1996
    %v3373 = vunpack.c.l.b16 %v1997
    %v3374 = vunpack.c.h.b16 %v1997
    %v3375 = vunpack.c.l.b16 %v1998
    %v3376 = vunpack.c.h.b16 %v1998
    %v3377 = vunpack.c.l.b16 %v1999
    %v3378 = vunpack.c.h.b16 %v1999
    %v3379 = vunpack.c.l.b16 %v2000
    %v3380 = vunpack.c.h.b16 %v2000
    %v3381 = vunpack.c.l.b16 %v2001
    %v3382 = vunpack.c.h.b16 %v2001
    %v3383 = vunpack.c.l.b16 %v2002
    %v3384 = vunpack.c.h.b16 %v2002
    %v3385 = vunpack.c.l.b16 %v2003
    %v3386 = vunpack.c.h.b16 %v2003
    %v3387 = vunpack.c.l.b16 %v2004
    %v3388 = vunpack.c.h.b16 %v2004
    %v3389 = vunpack.c.l.b16 %v2005
    %v3390 = vunpack.c.h.b16 %v2005
    %v3391 = vunpack.c.l.b16 %v2006
    %v3392 = vunpack.c.h.b16 %v2006
    %v3393 = vunpack.c.l.b16 %v2007
    %v3394 = vunpack.c.h.b16 %v2007
    %v3395 = vunpack.c.l.b16 %v2008
    %v3396 = vunpack.c.h.b16 %v2008
    %v3397 = vunpack.c.l.b16 %v2009
    %v3398 = vunpack.c.h.b16 %v2009
    %v3399 = vunpack.c.l.b16 %v2010
    %v3400 = vunpack.c.h.b16 %v2010
    %v3401 = vunpack.c.l.b16 %v2011
    %v3402 = vunpack.c.h.b16 %v2011
    %v3403 = vunpack.c.l.b16 %v2012
    %v3404 = vunpack.c.h.b16 %v2012
    %v3405 = vunpack.c.l.b16 %v2013
    %v3406 = vunpack.c.h.b16 %v2013
    %v3407 = vunpack.c.l.b16 %v2014
    %v3408 = vunpack.c.h.b16 %v2014
    %v3409 = vunpack.c.l.b16 %v2015
    %v3410 = vunpack.c.h.b16 %v2015
    %v3411 = vunpack.c.l.b16 %v2016
    %v3412 = vunpack.c.h.b16 %v2016
    %v3413 = vunpack.c.l.b16 %v2017
    %v3414 = vunpack.c.h.b16 %v2017
    %v3415 = vunpack.c.l.b16 %v2018
    %v3416 = vunpack.c.h.b16 %v2018
    %v3417 = vunpack.c.l.b16 %v2019
    %v3418 = vunpack.c.h.b16 %v2019
    %v3419 = vunpack.c.l.b16 %v2020
    %v3420 = vunpack.c.h.b16 %v2020
    %v3421 = vunpack.c.l.b16 %v2021
    %v3422 = vunpack.c.h.b16 %v2021
    %v3423 = vunpack.c.l.b16 %v2022
    %v3424 = vunpack.c.h.b16 %v2022
    %v3425 = vunpack.c.l.b16 %v2023
    %v3426 = vunpack.c.h.b16 %v2023
    %v3427 = vunpack.c.l.b16 %v2024
    %v3428 = vunpack.c.h.b16 %v2024
    %v3429 = vunpack.c.l.b16 %v2025
    %v3430 = vunpack.c.h.b16 %v2025
    %v3431 = vunpack.c.l.b16 %v2026
    %v3432 = vunpack.c.h.b16 %v2026
    %v3433 = vunpack.c.l.b16 %v2027
    %v3434 = vunpack.c.h.b16 %v2027
    %v3435 = vunpack.c.l.b16 %v2028
    %v3436 = vunpack.c.h.b16 %v2028
    %v3437 = vunpack.c.l.b16 %v2029
    %v3438 = vunpack.c.h.b16 %v2029
    %v3439 = vunpack.c.l.b16 %v2030
    %v3440 = vunpack.c.h.b16 %v2030
    %v3441 = vunpack.c.l.b16 %v2031
    %v3442 = vunpack.c.h.b16 %v2031
    %v3443 = vunpack.c.l.b16 %v2032
    %v3444 = vunpack.c.h.b16 %v2032
    %v3445 = vunpack.c.l.b16 %v2033
    %v3446 = vunpack.c.h.b16 %v2033
    %v3447 = vunpack.c.l.b16 %v2034
    %v3448 = vunpack.c.h.b16 %v2034
    %v3449 = vunpack.c.l.b16 %v2035
    %v3450 = vunpack.c.h.b16 %v2035
    %v3451 = vunpack.c.l.b16 %v2036
    %v3452 = vunpack.c.h.b16 %v2036
    %v3453 = vunpack.c.l.b16 %v2037
    %v3454 = vunpack.c.h.b16 %v2037
    %v3455 = vunpack.c.l.b16 %v2038
    %v3456 = vunpack.c.h.b16 %v2038
    %v3457 = vunpack.c.l.b16 %v2039
    %v3458 = vunpack.c.h.b16 %v2039
    %v3459 = vunpack.c.l.b16 %v2040
    %v3460 = vunpack.c.h.b16 %v2040
    %v3461 = vunpack.c.l.b16 %v2041
    %v3462 = vunpack.c.h.b16 %v2041
    %v3463 = vunpack.c.l.b16 %v2042
    %v3464 = vunpack.c.h.b16 %v2042
    %v3465 = vunpack.c.l.b16 %v2043
    %v3466 = vunpack.c.h.b16 %v2043
    %v3467 = vunpack.c.l.b16 %v2044
    %v3468 = vunpack.c.h.b16 %v2044
    %v3469 = vunpack.c.l.b16 %v2045
    %v3470 = vunpack.c.h.b16 %v2045
    %v3471 = vunpack.c.l.b16 %v2046
    %v3472 = vunpack.c.h.b16 %v2046
    %v3473 = vunpack.c.l.b16 %v2047
    %v3474 = vunpack.c.h.b16 %v2047
    %v3475 = vunpack.c.l.b16 %v2048
    %v3476 = vunpack.c.h.b16 %v2048
    %v3477 = vunpack.c.l.b16 %v2049
    %v3478 = vunpack.c.h.b16 %v2049
    %v3479 = vunpack.c.l.b16 %v2050
    %v3480 = vunpack.c.h.b16 %v2050
    %v3481 = vunpack.c.l.b16 %v2051
    %v3482 = vunpack.c.h.b16 %v2051
    %v3483 = vunpack.c.l.b16 %v2052
    %v3484 = vunpack.c.h.b16 %v2052
    %v3485 = vunpack.c.l.b16 %v2053
    %v3486 = vunpack.c.h.b16 %v2053
    %v3487 = vunpack.c.l.b16 %v2054
    %v3488 = vunpack.c.h.b16 %v2054
    %v3489 = vunpack.c.l.b16 %v2055
    %v3490 = vunpack.c.h.b16 %v2055
    %v3491 = vunpack.c.l.b16 %v2056
    %v3492 = vunpack.c.h.b16 %v2056
    %v3493 = vunpack.c.l.b16 %v2057
    %v3494 = vunpack.c.h.b16 %v2057
    %v3495 = vunpack.c.l.b16 %v2058
    %v3496 = vunpack.c.h.b16 %v2058
    %v3497 = vunpack.c.l.b16 %v2059
    %v3498 = vunpack.c.h.b16 %v2059
    %v3499 = vunpack.c.l.b16 %v2060
    %v3500 = vunpack.c.h.b16 %v2060
    %v3501 = vunpack.c.l.b16 %v2061
    %v3502 = vunpack.c.h.b16 %v2061
    %v3503 = vunpack.c.l.b16 %v2062
    %v3504 = vunpack.c.h.b16 %v2062
    %v3505 = vunpack.c.l.b16 %v2063
    %v3506 = vunpack.c.h.b16 %v2063
    %v3507 = vunpack.c.l.b16 %v2064
    %v3508 = vunpack.c.h.b16 %v2064
    %v3509 = vunpack.c.l.b16 %v2065
    %v3510 = vunpack.c.h.b16 %v2065
    %v3511 = vunpack.c.l.b16 %v2066
    %v3512 = vunpack.c.h.b16 %v2066
    %v3513 = vunpack.c.l.b16 %v2067
    %v3514 = vunpack.c.h.b16 %v2067
    %v3515 = vunpack.c.l.b16 %v2068
    %v3516 = vunpack.c.h.b16 %v2068
    %v3517 = vunpack.c.l.b16 %v2069
    %v3518 = vunpack.c.h.b16 %v2069
    %v3519 = vunpack.c.l.b16 %v2070
    %v3520 = vunpack.c.h.b16 %v2070
    %v3521 = vunpack.c.l.b16 %v2071
    %v3522 = vunpack.c.h.b16 %v2071
    %v3523 = vunpack.c.l.b16 %v2072
    %v3524 = vunpack.c.h.b16 %v2072
    %v3525 = vunpack.c.l.b16 %v2073
    %v3526 = vunpack.c.h.b16 %v2073
    %v3527 = vunpack.c.l.b16 %v2074
    %v3528 = vunpack.c.h.b16 %v2074
    %v3529 = vunpack.c.l.b16 %v2075
    %v3530 = vunpack.c.h.b16 %v2075
    %v3531 = vunpack.c.l.b16 %v2076
    %v3532 = vunpack.c.h.b16 %v2076
    %v3533 = vunpack.c.l.b16 %v2077
    %v3534 = vunpack.c.h.b16 %v2077
    %v3535 = vunpack.c.l.b16 %v2078
    %v3536 = vunpack.c.h.b16 %v2078
    %v3537 = vunpack.c.l.b16 %v2079
    %v3538 = vunpack.c.h.b16 %v2079
    %v3539 = vunpack.c.l.b16 %v2080
    %v3540 = vunpack.c.h.b16 %v2080
    %v3541 = vunpack.c.l.b16 %v2081
    %v3542 = vunpack.c.h.b16 %v2081
    %v3543 = vunpack.c.l.b16 %v2082
    %v3544 = vunpack.c.h.b16 %v2082
    %v3545 = vunpack.c.l.b16 %v2083
    %v3546 = vunpack.c.h.b16 %v2083
    %v3547 = vunpack.c.l.b16 %v2084
    %v3548 = vunpack.c.h.b16 %v2084
    %v3549 = vunpack.c.l.b16 %v2085
    %v3550 = vunpack.c.h.b16 %v2085
    %v3551 = vunpack.c.l.b16 %v2086
    %v3552 = vunpack.c.h.b16 %v2086
    %v3553 = vunpack.c.l.b16 %v2087
    %v3554 = vunpack.c.h.b16 %v2087
    %v3555 = vunpack.c.l.b16 %v2088
    %v3556 = vunpack.c.h.b16 %v2088
    %v3557 = vunpack.c.l.b16 %v2089
    %v3558 = vunpack.c.h.b16 %v2089
    %v3559 = vunpack.c.l.b16 %v2090
    %v3560 = vunpack.c.h.b16 %v2090
    %v3561 = vunpack.c.l.b16 %v2091
    %v3562 = vunpack.c.h.b16 %v2091
    %v3563 = vunpack.c.l.b16 %v2092
    %v3564 = vunpack.c.h.b16 %v2092
    %v3565 = vunpack.c.l.b16 %v2093
    %v3566 = vunpack.c.h.b16 %v2093
    %v3567 = vunpack.c.l.b16 %v2094
    %v3568 = vunpack.c.h.b16 %v2094
    %v3569 = vunpack.c.l.b16 %v2095
    %v3570 = vunpack.c.h.b16 %v2095
    %v3571 = vunpack.c.l.b16 %v2096
    %v3572 = vunpack.c.h.b16 %v2096
    %v3573 = vunpack.c.l.b16 %v2097
    %v3574 = vunpack.c.h.b16 %v2097
    %v3575 = vunpack.c.l.b16 %v2098
    %v3576 = vunpack.c.h.b16 %v2098
    %v3577 = vunpack.c.l.b16 %v2099
    %v3578 = vunpack.c.h.b16 %v2099
    %v3579 = vunpack.c.l.b16 %v2100
    %v3580 = vunpack.c.h.b16 %v2100
    %v3581 = vunpack.c.l.b16 %v2101
    %v3582 = vunpack.c.h.b16 %v2101
    %v3583 = vunpack.c.l.b16 %v2102
    %v3584 = vunpack.c.h.b16 %v2102
    %v3585 = vunpack.c.l.b16 %v2103
    %v3586 = vunpack.c.h.b16 %v2103
    %v3587 = vunpack.c.l.b16 %v2104
    %v3588 = vunpack.c.h.b16 %v2104
    %v3589 = vunpack.c.l.b16 %v2105
    %v3590 = vunpack.c.h.b16 %v2105
    %v3591 = vunpack.c.l.b16 %v2106
    %v3592 = vunpack.c.h.b16 %v2106
    %v3593 = vunpack.c.l.b16 %v2107
    %v3594 = vunpack.c.h.b16 %v2107
    %v3595 = vunpack.c.l.b16 %v2108
    %v3596 = vunpack.c.h.b16 %v2108
    %v3597 = vunpack.c.l.b16 %v2109
    %v3598 = vunpack.c.h.b16 %v2109
    %v3599 = vunpack.c.l.b16 %v2110
    %v3600 = vunpack.c.h.b16 %v2110
    %v3601 = vunpack.c.l.b16 %v2111
    %v3602 = vunpack.c.h.b16 %v2111
    %v3603 = vunpack.c.l.b16 %v2112
    %v3604 = vunpack.c.h.b16 %v2112
    %v3605 = vunpack.c.l.b16 %v2113
    %v3606 = vunpack.c.h.b16 %v2113
    %v3607 = vunpack.c.l.b16 %v2114
    %v3608 = vunpack.c.h.b16 %v2114
    %v3609 = vunpack.c.l.b16 %v2115
    %v3610 = vunpack.c.h.b16 %v2115
    %v3611 = vunpack.c.l.b16 %v2116
    %v3612 = vunpack.c.h.b16 %v2116
    %v3613 = vunpack.c.l.b16 %v2117
    %v3614 = vunpack.c.h.b16 %v2117
    %v3615 = vunpack.c.l.b16 %v2118
    %v3616 = vunpack.c.h.b16 %v2118
    %v3617 = vunpack.c.l.b16 %v2119
    %v3618 = vunpack.c.h.b16 %v2119
    %v3619 = vunpack.c.l.b16 %v2120
    %v3620 = vunpack.c.h.b16 %v2120
    %v3621 = vunpack.c.l.b16 %v2121
    %v3622 = vunpack.c.h.b16 %v2121
    %v3623 = vunpack.c.l.b16 %v2122
    %v3624 = vunpack.c.h.b16 %v2122
    %v3625 = vunpack.c.l.b16 %v2123
    %v3626 = vunpack.c.h.b16 %v2123
    %v3627 = vunpack.c.l.b16 %v2124
    %v3628 = vunpack.c.h.b16 %v2124
    %v3629 = vunpack.c.l.b16 %v2125
    %v3630 = vunpack.c.h.b16 %v2125
    %v3631 = vunpack.c.l.b16 %v2126
    %v3632 = vunpack.c.h.b16 %v2126
    %v3633 = vunpack.c.l.b16 %v2127
    %v3634 = vunpack.c.h.b16 %v2127
    %v3635 = vunpack.c.l.b16 %v2128
    %v3636 = vunpack.c.h.b16 %v2128
    %v3637 = vunpack.c.l.b16 %v2129
    %v3638 = vunpack.c.h.b16 %v2129
    %v3639 = vunpack.c.l.b16 %v2130
    %v3640 = vunpack.c.h.b16 %v2130
    %v3641 = vunpack.c.l.b16 %v2131
    %v3642 = vunpack.c.h.b16 %v2131
    %v3643 = vunpack.c.l.b16 %v2132
    %v3644 = vunpack.c.h.b16 %v2132
    %v3645 = vunpack.c.l.b16 %v2133
    %v3646 = vunpack.c.h.b16 %v2133
    %v3647 = vunpack.c.l.b16 %v2134
    %v3648 = vunpack.c.h.b16 %v2134
    %v3649 = vunpack.c.l.b16 %v2135
    %v3650 = vunpack.c.h.b16 %v2135
    %v3651 = vunpack.c.l.b16 %v2136
    %v3652 = vunpack.c.h.b16 %v2136
    %v3653 = vunpack.c.l.b16 %v2137
    %v3654 = vunpack.c.h.b16 %v2137
    %v3655 = vunpack.c.l.b16 %v2138
    %v3656 = vunpack.c.h.b16 %v2138
    %v3657 = vunpack.c.l.b16 %v2139
    %v3658 = vunpack.c.h.b16 %v2139
    %v3659 = vunpack.c.l.b16 %v2140
    %v3660 = vunpack.c.h.b16 %v2140
    %v3661 = vunpack.c.l.b16 %v2141
    %v3662 = vunpack.c.h.b16 %v2141
    %v3663 = vunpack.c.l.b16 %v2142
    %v3664 = vunpack.c.h.b16 %v2142
    %v3665 = vunpack.c.l.b16 %v2143
    %v3666 = vunpack.c.h.b16 %v2143
    %v3667 = vunpack.c.l.b16 %v2144
    %v3668 = vunpack.c.h.b16 %v2144
    %v3669 = vunpack.c.l.b16 %v2145
    %v3670 = vunpack.c.h.b16 %v2145
    %v3671 = vunpack.c.l.b16 %v2146
    %v3672 = vunpack.c.h.b16 %v2146
    %v3673 = vunpack.c.l.b16 %v2147
    %v3674 = vunpack.c.h.b16 %v2147
    %v3675 = vunpack.c.l.b16 %v2148
    %v3676 = vunpack.c.h.b16 %v2148
    %v3677 = vunpack.c.l.b16 %v2149
    %v3678 = vunpack.c.h.b16 %v2149
    %v3679 = vunpack.c.l.b16 %v2150
    %v3680 = vunpack.c.h.b16 %v2150
    %v3681 = vunpack.c.l.b16 %v2151
    %v3682 = vunpack.c.h.b16 %v2151
    %v3683 = vunpack.c.l.b16 %v2152
    %v3684 = vunpack.c.h.b16 %v2152
    %v3685 = vunpack.c.l.b16 %v2153
    %v3686 = vunpack.c.h.b16 %v2153
    %v3687 = vunpack.c.l.b16 %v2154
    %v3688 = vunpack.c.h.b16 %v2154
    %v3689 = vunpack.c.l.b16 %v2155
    %v3690 = vunpack.c.h.b16 %v2155
    %v3691 = vunpack.c.l.b16 %v2156
    %v3692 = vunpack.c.h.b16 %v2156
    %v3693 = vunpack.c.l.b16 %v2157
    %v3694 = vunpack.c.h.b16 %v2157
    %v3695 = vunpack.c.l.b16 %v2158
    %v3696 = vunpack.c.h.b16 %v2158
    %v3697 = vunpack.c.l.b16 %v2159
    %v3698 = vunpack.c.h.b16 %v2159
    %v3699 = vunpack.c.l.b16 %v2160
    %v3700 = vunpack.c.h.b16 %v2160
    %v3701 = vunpack.c.l.b16 %v2161
    %v3702 = vunpack.c.h.b16 %v2161
    %v3703 = vunpack.c.l.b16 %v2162
    %v3704 = vunpack.c.h.b16 %v2162
    %v3705 = vunpack.c.l.b16 %v2163
    %v3706 = vunpack.c.h.b16 %v2163
    %v3707 = vunpack.c.l.b16 %v2164
    %v3708 = vunpack.c.h.b16 %v2164
    %v3709 = vunpack.c.l.b16 %v2165
    %v3710 = vunpack.c.h.b16 %v2165
    %v3711 = vunpack.c.l.b16 %v2166
    %v3712 = vunpack.c.h.b16 %v2166
    %v3713 = vunpack.c.l.b16 %v2167
    %v3714 = vunpack.c.h.b16 %v2167
    %v3715 = vunpack.c.l.b16 %v2168
    %v3716 = vunpack.c.h.b16 %v2168
    %v3717 = vunpack.c.l.b16 %v2169
    %v3718 = vunpack.c.h.b16 %v2169
    %v3719 = vunpack.c.l.b16 %v2170
    %v3720 = vunpack.c.h.b16 %v2170
    %v3721 = vunpack.c.l.b16 %v2171
    %v3722 = vunpack.c.h.b16 %v2171
    %v3723 = vunpack.c.l.b16 %v2172
    %v3724 = vunpack.c.h.b16 %v2172
    %v3725 = vunpack.c.l.b16 %v2173
    %v3726 = vunpack.c.h.b16 %v2173
    %v3727 = vunpack.c.l.b16 %v2174
    %v3728 = vunpack.c.h.b16 %v2174
    %v3729 = vunpack.c.l.b16 %v2175
    %v3730 = vunpack.c.h.b16 %v2175
    %v3731 = vunpack.c.l.b16 %v2176
    %v3732 = vunpack.c.h.b16 %v2176
    %v3733 = vunpack.c.l.b16 %v2177
    %v3734 = vunpack.c.h.b16 %v2177
    %v3735 = vunpack.c.l.b16 %v2178
    %v3736 = vunpack.c.h.b16 %v2178
    %v3737 = vunpack.c.l.b16 %v2179
    %v3738 = vunpack.c.h.b16 %v2179
    %v3739 = vunpack.c.l.b16 %v2180
    %v3740 = vunpack.c.h.b16 %v2180
    %v3741 = vunpack.c.l.b16 %v2181
    %v3742 = vunpack.c.h.b16 %v2181
    %v3743 = vunpack.c.l.b16 %v2182
    %v3744 = vunpack.c.h.b16 %v2182
    %v3745 = vunpack.c.l.b16 %v2183
    %v3746 = vunpack.c.h.b16 %v2183
    %v3747 = vunpack.c.l.b16 %v2184
    %v3748 = vunpack.c.h.b16 %v2184
    %v3749 = vunpack.c.l.b16 %v2185
    %v3750 = vunpack.c.h.b16 %v2185
    %v3751 = vunpack.c.l.b16 %v2186
    %v3752 = vunpack.c.h.b16 %v2186
    %v3753 = vunpack.c.l.b16 %v2187
    %v3754 = vunpack.c.h.b16 %v2187
    %v3755 = vunpack.c.l.b16 %v2188
    %v3756 = vunpack.c.h.b16 %v2188
    %v3757 = vunpack.c.l.b16 %v2189
    %v3758 = vunpack.c.h.b16 %v2189
    %v3759 = vunpack.c.l.b16 %v2190
    %v3760 = vunpack.c.h.b16 %v2190
    %v3761 = vunpack.c.l.b16 %v2191
    %v3762 = vunpack.c.h.b16 %v2191
    %v3763 = vunpack.c.l.b16 %v2192
    %v3764 = vunpack.c.h.b16 %v2192
    %v3765 = vunpack.c.l.b16 %v2193
    %v3766 = vunpack.c.h.b16 %v2193
    %v3767 = vunpack.c.l.b16 %v2194
    %v3768 = vunpack.c.h.b16 %v2194
    %v3769 = vunpack.c.l.b16 %v2195
    %v3770 = vunpack.c.h.b16 %v2195
    %v3771 = vunpack.c.l.b16 %v2196
    %v3772 = vunpack.c.h.b16 %v2196
    %v3773 = vunpack.c.l.b16 %v2197
    %v3774 = vunpack.c.h.b16 %v2197
    %v3775 = vunpack.c.l.b16 %v2198
    %v3776 = vunpack.c.h.b16 %v2198
    %v3777 = vpack.c.b16 %v2761, %v2753
    %v3778 = vpack.c.b16 %v2762, %v2754
    %v3779 = vpack.c.b16 %v2763, %v2755
    %v3780 = vpack.c.b16 %v2764, %v2756
    %v3781 = vpack.c.b16 %v2765, %v2757
    %v3782 = vpack.c.b16 %v2766, %v2758
    %v3783 = vpack.c.b16 %v2767, %v2759
    %v3784 = vpack.c.b16 %v2768, %v2760
    %v3785 = vpack.c.b16 %v2777, %v2769
    %v3786 = vpack.c.b16 %v2778, %v2770
    %v3787 = vpack.c.b16 %v2779, %v2771
    %v3788 = vpack.c.b16 %v2780, %v2772
    %v3789 = vpack.c.b16 %v2781, %v2773
    %v3790 = vpack.c.b16 %v2782, %v2774
    %v3791 = vpack.c.b16 %v2783, %v2775
    %v3792 = vpack.c.b16 %v2784, %v2776
    %v3793 = vpack.c.b16 %v2793, %v2785
    %v3794 = vpack.c.b16 %v2794, %v2786
    %v3795 = vpack.c.b16 %v2795, %v2787
    %v3796 = vpack.c.b16 %v2796, %v2788
    %v3797 = vpack.c.b16 %v2797, %v2789
    %v3798 = vpack.c.b16 %v2798, %v2790
    %v3799 = vpack.c.b16 %v2799, %v2791
    %v3800 = vpack.c.b16 %v2800, %v2792
    %v3801 = vpack.c.b16 %v2809, %v2801
    %v3802 = vpack.c.b16 %v2810, %v2802
    %v3803 = vpack.c.b16 %v2811, %v2803
    %v3804 = vpack.c.b16 %v2812, %v2804
    %v3805 = vpack.c.b16 %v2813, %v2805
    %v3806 = vpack.c.b16 %v2814, %v2806
    %v3807 = vpack.c.b16 %v2815, %v2807
    %v3808 = vpack.c.b16 %v2816, %v2808
    %v3809 = vpack.c.b16 %v2825, %v2817
    %v3810 = vpack.c.b16 %v2826, %v2818
    %v3811 = vpack.c.b16 %v2827, %v2819
    %v3812 = vpack.c.b16 %v2828, %v2820
    %v3813 = vpack.c.b16 %v2829, %v2821
    %v3814 = vpack.c.b16 %v2830, %v2822
    %v3815 = vpack.c.b16 %v2831, %v2823
    %v3816 = vpack.c.b16 %v2832, %v2824
    %v3817 = vpack.c.b16 %v2841, %v2833
    %v3818 = vpack.c.b16 %v2842, %v2834
    %v3819 = vpack.c.b16 %v2843, %v2835
    %v3820 = vpack.c.b16 %v2844, %v2836
    %v3821 = vpack.c.b16 %v2845, %v2837
    %v3822 = vpack.c.b16 %v2846, %v2838
    %v3823 = vpack.c.b16 %v2847, %v2839
    %v3824 = vpack.c.b16 %v2848, %v2840
    %v3825 = vpack.c.b16 %v2857, %v2849
    %v3826 = vpack.c.b16 %v2858, %v2850
    %v3827 = vpack.c.b16 %v2859, %v2851
    %v3828 = vpack.c.b16 %v2860, %v2852
    %v3829 = vpack.c.b16 %v2861, %v2853
    %v3830 = vpack.c.b16 %v2862, %v2854
    %v3831 = vpack.c.b16 %v2863, %v2855
    %v3832 = vpack.c.b16 %v2864, %v2856
    %v3833 = vpack.c.b16 %v2873, %v2865
    %v3834 = vpack.c.b16 %v2874, %v2866
    %v3835 = vpack.c.b16 %v2875, %v2867
    %v3836 = vpack.c.b16 %v2876, %v2868
    %v3837 = vpack.c.b16 %v2877, %v2869
    %v3838 = vpack.c.b16 %v2878, %v2870
    %v3839 = vpack.c.b16 %v2879, %v2871
    %v3840 = vpack.c.b16 %v2880, %v2872
    %v3841 = vpack.c.b16 %v2889, %v2881
    %v3842 = vpack.c.b16 %v2890, %v2882
    %v3843 = vpack.c.b16 %v2891, %v2883
    %v3844 = vpack.c.b16 %v2892, %v2884
    %v3845 = vpack.c.b16 %v2893, %v2885
    %v3846 = vpack.c.b16 %v2894, %v2886
    %v3847 = vpack.c.b16 %v2895, %v2887
    %v3848 = vpack.c.b16 %v2896, %v2888
    %v3849 = vpack.c.b16 %v2905, %v2897
    %v3850 = vpack.c.b16 %v2906, %v2898
    %v3851 = vpack.c.b16 %v2907, %v2899
    %v3852 = vpack.c.b16 %v2908, %v2900
    %v3853 = vpack.c.b16 %v2909, %v2901
    %v3854 = vpack.c.b16 %v2910, %v2902
    %v3855 = vpack.c.b16 %v2911, %v2903
    %v3856 = vpack.c.b16 %v2912, %v2904
    %v3857 = vpack.c.b16 %v2921, %v2913
    %v3858 = vpack.c.b16 %v2922, %v2914
    %v3859 = vpack.c.b16 %v2923, %v2915
    %v3860 = vpack.c.b16 %v2924, %v2916
    %v3861 = vpack.c.b16 %v2925, %v2917
    %v3862 = vpack.c.b16 %v2926, %v2918
    %v3863 = vpack.c.b16 %v2927, %v2919
    %v3864 = vpack.c.b16 %v2928, %v2920
    %v3865 = vpack.c.b16 %v2937, %v2929
    %v3866 = vpack.c.b16 %v2938, %v2930
    %v3867 = vpack.c.b16 %v2939, %v2931
    %v3868 = vpack.c.b16 %v2940, %v2932
    %v3869 = vpack.c.b16 %v2941, %v2933
    %v3870 = vpack.c.b16 %v2942, %v2934
    %v3871 = vpack.c.b16 %v2943, %v2935
    %v3872 = vpack.c.b16 %v2944, %v2936
    %v3873 = vpack.c.b16 %v2953, %v2945
    %v3874 = vpack.c.b16 %v2954, %v2946
    %v3875 = vpack.c.b16 %v2955, %v2947
    %v3876 = vpack.c.b16 %v2956, %v2948
    %v3877 = vpack.c.b16 %v2957, %v2949
    %v3878 = vpack.c.b16 %v2958, %v2950
    %v3879 = vpack.c.b16 %v2959, %v2951
    %v3880 = vpack.c.b16 %v2960, %v2952
    %v3881 = vpack.c.b16 %v2969, %v2961
    %v3882 = vpack.c.b16 %v2970, %v2962
    %v3883 = vpack.c.b16 %v2971, %v2963
    %v3884 = vpack.c.b16 %v2972, %v2964
    %v3885 = vpack.c.b16 %v2973, %v2965
    %v3886 = vpack.c.b16 %v2974, %v2966
    %v3887 = vpack.c.b16 %v2975, %v2967
    %v3888 = vpack.c.b16 %v2976, %v2968
    %v3889 = vpack.c.b16 %v2985, %v2977
    %v3890 = vpack.c.b16 %v2986, %v2978
    %v3891 = vpack.c.b16 %v2987, %v2979
    %v3892 = vpack.c.b16 %v2988, %v2980
    %v3893 = vpack.c.b16 %v2989, %v2981
    %v3894 = vpack.c.b16 %v2990, %v2982
    %v3895 = vpack.c.b16 %v2991, %v2983
    %v3896 = vpack.c.b16 %v2992, %v2984
    %v3897 = vpack.c.b16 %v3001, %v2993
    %v3898 = vpack.c.b16 %v3002, %v2994
    %v3899 = vpack.c.b16 %v3003, %v2995
    %v3900 = vpack.c.b16 %v3004, %v2996
    %v3901 = vpack.c.b16 %v3005, %v2997
    %v3902 = vpack.c.b16 %v3006, %v2998
    %v3903 = vpack.c.b16 %v3007, %v2999
    %v3904 = vpack.c.b16 %v3008, %v3000
    %v3905 = vpack.c.b16 %v3017, %v3009
    %v3906 = vpack.c.b16 %v3018, %v3010
    %v3907 = vpack.c.b16 %v3019, %v3011
    %v3908 = vpack.c.b16 %v3020, %v3012
    %v3909 = vpack.c.b16 %v3021, %v3013
    %v3910 = vpack.c.b16 %v3022, %v3014
    %v3911 = vpack.c.b16 %v3023, %v3015
    %v3912 = vpack.c.b16 %v3024, %v3016
    %v3913 = vpack.c.b16 %v3033, %v3025
    %v3914 = vpack.c.b16 %v3034, %v3026
    %v3915 = vpack.c.b16 %v3035, %v3027
    %v3916 = vpack.c.b16 %v3036, %v3028
    %v3917 = vpack.c.b16 %v3037, %v3029
    %v3918 = vpack.c.b16 %v3038, %v3030
    %v3919 = vpack.c.b16 %v3039, %v3031
    %v3920 = vpack.c.b16 %v3040, %v3032
    %v3921 = vpack.c.b16 %v3049, %v3041
    %v3922 = vpack.c.b16 %v3050, %v3042
    %v3923 = vpack.c.b16 %v3051, %v3043
    %v3924 = vpack.c.b16 %v3052, %v3044
    %v3925 = vpack.c.b16 %v3053, %v3045
    %v3926 = vpack.c.b16 %v3054, %v3046
    %v3927 = vpack.c.b16 %v3055, %v3047
    %v3928 = vpack.c.b16 %v3056, %v3048
    %v3929 = vpack.c.b16 %v3065, %v3057
    %v3930 = vpack.c.b16 %v3066, %v3058
    %v3931 = vpack.c.b16 %v3067, %v3059
    %v3932 = vpack.c.b16 %v3068, %v3060
    %v3933 = vpack.c.b16 %v3069, %v3061
    %v3934 = vpack.c.b16 %v3070, %v3062
    %v3935 = vpack.c.b16 %v3071, %v3063
    %v3936 = vpack.c.b16 %v3072, %v3064
    %v3937 = vpack.c.b16 %v3081, %v3073
    %v3938 = vpack.c.b16 %v3082, %v3074
    %v3939 = vpack.c.b16 %v3083, %v3075
    %v3940 = vpack.c.b16 %v3084, %v3076
    %v3941 = vpack.c.b16 %v3085, %v3077
    %v3942 = vpack.c.b16 %v3086, %v3078
    %v3943 = vpack.c.b16 %v3087, %v3079
    %v3944 = vpack.c.b16 %v3088, %v3080
    %v3945 = vpack.c.b16 %v3097, %v3089
    %v3946 = vpack.c.b16 %v3098, %v3090
    %v3947 = vpack.c.b16 %v3099, %v3091
    %v3948 = vpack.c.b16 %v3100, %v3092
    %v3949 = vpack.c.b16 %v3101, %v3093
    %v3950 = vpack.c.b16 %v3102, %v3094
    %v3951 = vpack.c.b16 %v3103, %v3095
    %v3952 = vpack.c.b16 %v3104, %v3096
    %v3953 = vpack.c.b16 %v3113, %v3105
    %v3954 = vpack.c.b16 %v3114, %v3106
    %v3955 = vpack.c.b16 %v3115, %v3107
    %v3956 = vpack.c.b16 %v3116, %v3108
    %v3957 = vpack.c.b16 %v3117, %v3109
    %v3958 = vpack.c.b16 %v3118, %v3110
    %v3959 = vpack.c.b16 %v3119, %v3111
    %v3960 = vpack.c.b16 %v3120, %v3112
    %v3961 = vpack.c.b16 %v3129, %v3121
    %v3962 = vpack.c.b16 %v3130, %v3122
    %v3963 = vpack.c.b16 %v3131, %v3123
    %v3964 = vpack.c.b16 %v3132, %v3124
    %v3965 = vpack.c.b16 %v3133, %v3125
    %v3966 = vpack.c.b16 %v3134, %v3126
    %v3967 = vpack.c.b16 %v3135, %v3127
    %v3968 = vpack.c.b16 %v3136, %v3128
    %v3969 = vpack.c.b16 %v3145, %v3137
    %v3970 = vpack.c.b16 %v3146, %v3138
    %v3971 = vpack.c.b16 %v3147, %v3139
    %v3972 = vpack.c.b16 %v3148, %v3140
    %v3973 = vpack.c.b16 %v3149, %v3141
    %v3974 = vpack.c.b16 %v3150, %v3142
    %v3975 = vpack.c.b16 %v3151, %v3143
    %v3976 = vpack.c.b16 %v3152, %v3144
    %v3977 = vpack.c.b16 %v3161, %v3153
    %v3978 = vpack.c.b16 %v3162, %v3154
    %v3979 = vpack.c.b16 %v3163, %v3155
    %v3980 = vpack.c.b16 %v3164, %v3156
    %v3981 = vpack.c.b16 %v3165, %v3157
    %v3982 = vpack.c.b16 %v3166, %v3158
    %v3983 = vpack.c.b16 %v3167, %v3159
    %v3984 = vpack.c.b16 %v3168, %v3160
    %v3985 = vpack.c.b16 %v3177, %v3169
    %v3986 = vpack.c.b16 %v3178, %v3170
    %v3987 = vpack.c.b16 %v3179, %v3171
    %v3988 = vpack.c.b16 %v3180, %v3172
    %v3989 = vpack.c.b16 %v3181, %v3173
    %v3990 = vpack.c.b16 %v3182, %v3174
    %v3991 = vpack.c.b16 %v3183, %v3175
    %v3992 = vpack.c.b16 %v3184, %v3176
    %v3993 = vpack.c.b16 %v3193, %v3185
    %v3994 = vpack.c.b16 %v3194, %v3186
    %v3995 = vpack.c.b16 %v3195, %v3187
    %v3996 = vpack.c.b16 %v3196, %v3188
    %v3997 = vpack.c.b16 %v3197, %v3189
    %v3998 = vpack.c.b16 %v3198, %v3190
    %v3999 = vpack.c.b16 %v3199, %v3191
    %v4000 = vpack.c.b16 %v3200, %v3192
    %v4001 = vpack.c.b16 %v3209, %v3201
    %v4002 = vpack.c.b16 %v3210, %v3202
    %v4003 = vpack.c.b16 %v3211, %v3203
    %v4004 = vpack.c.b16 %v3212, %v3204
    %v4005 = vpack.c.b16 %v3213, %v3205
    %v4006 = vpack.c.b16 %v3214, %v3206
    %v4007 = vpack.c.b16 %v3215, %v3207
    %v4008 = vpack.c.b16 %v3216, %v3208
    %v4009 = vpack.c.b16 %v3225, %v3217
    %v4010 = vpack.c.b16 %v3226, %v3218
    %v4011 = vpack.c.b16 %v3227, %v3219
    %v4012 = vpack.c.b16 %v3228, %v3220
    %v4013 = vpack.c.b16 %v3229, %v3221
    %v4014 = vpack.c.b16 %v3230, %v3222
    %v4015 = vpack.c.b16 %v3231, %v3223
    %v4016 = vpack.c.b16 %v3232, %v3224
    %v4017 = vpack.c.b16 %v3241, %v3233
    %v4018 = vpack.c.b16 %v3242, %v3234
    %v4019 = vpack.c.b16 %v3243, %v3235
    %v4020 = vpack.c.b16 %v3244, %v3236
    %v4021 = vpack.c.b16 %v3245, %v3237
    %v4022 = vpack.c.b16 %v3246, %v3238
    %v4023 = vpack.c.b16 %v3247, %v3239
    %v4024 = vpack.c.b16 %v3248, %v3240
    %v4025 = vpack.c.b16 %v3257, %v3249
    %v4026 = vpack.c.b16 %v3258, %v3250
    %v4027 = vpack.c.b16 %v3259, %v3251
    %v4028 = vpack.c.b16 %v3260, %v3252
    %v4029 = vpack.c.b16 %v3261, %v3253
    %v4030 = vpack.c.b16 %v3262, %v3254
    %v4031 = vpack.c.b16 %v3263, %v3255
    %v4032 = vpack.c.b16 %v3264, %v3256
    %v4033 = vpack.c.b16 %v3273, %v3265
    %v4034 = vpack.c.b16 %v3274, %v3266
    %v4035 = vpack.c.b16 %v3275, %v3267
    %v4036 = vpack.c.b16 %v3276, %v3268
    %v4037 = vpack.c.b16 %v3277, %v3269
    %v4038 = vpack.c.b16 %v3278, %v3270
    %v4039 = vpack.c.b16 %v3279, %v3271
    %v4040 = vpack.c.b16 %v3280, %v3272
    %v4041 = vpack.c.b16 %v3289, %v3281
    %v4042 = vpack.c.b16 %v3290, %v3282
    %v4043 = vpack.c.b16 %v3291, %v3283
    %v4044 = vpack.c.b16 %v3292, %v3284
    %v4045 = vpack.c.b16 %v3293, %v3285
    %v4046 = vpack.c.b16 %v3294, %v3286
    %v4047 = vpack.c.b16 %v3295, %v3287
    %v4048 = vpack.c.b16 %v3296, %v3288
    %v4049 = vpack.c.b16 %v3305, %v3297
    %v4050 = vpack.c.b16 %v3306, %v3298
    %v4051 = vpack.c.b16 %v3307, %v3299
    %v4052 = vpack.c.b16 %v3308, %v3300
    %v4053 = vpack.c.b16 %v3309, %v3301
    %v4054 = vpack.c.b16 %v3310, %v3302
    %v4055 = vpack.c.b16 %v3311, %v3303
    %v4056 = vpack.c.b16 %v3312, %v3304
    %v4057 = vpack.c.b16 %v3321, %v3313
    %v4058 = vpack.c.b16 %v3322, %v3314
    %v4059 = vpack.c.b16 %v3323, %v3315
    %v4060 = vpack.c.b16 %v3324, %v3316
    %v4061 = vpack.c.b16 %v3325, %v3317
    %v4062 = vpack.c.b16 %v3326, %v3318
    %v4063 = vpack.c.b16 %v3327, %v3319
    %v4064 = vpack.c.b16 %v3328, %v3320
    %v4065 = vpack.c.b16 %v3337, %v3329
    %v4066 = vpack.c.b16 %v3338, %v3330
    %v4067 = vpack.c.b16 %v3339, %v3331
    %v4068 = vpack.c.b16 %v3340, %v3332
    %v4069 = vpack.c.b16 %v3341, %v3333
    %v4070 = vpack.c.b16 %v3342, %v3334
    %v4071 = vpack.c.b16 %v3343, %v3335
    %v4072 = vpack.c.b16 %v3344, %v3336
    %v4073 = vpack.c.b16 %v3353, %v3345
    %v4074 = vpack.c.b16 %v3354, %v3346
    %v4075 = vpack.c.b16 %v3355, %v3347
    %v4076 = vpack.c.b16 %v3356, %v3348
    %v4077 = vpack.c.b16 %v3357, %v3349
    %v4078 = vpack.c.b16 %v3358, %v3350
    %v4079 = vpack.c.b16 %v3359, %v3351
    %v4080 = vpack.c.b16 %v3360, %v3352
    %v4081 = vpack.c.b16 %v3369, %v3361
    %v4082 = vpack.c.b16 %v3370, %v3362
    %v4083 = vpack.c.b16 %v3371, %v3363
    %v4084 = vpack.c.b16 %v3372, %v3364
    %v4085 = vpack.c.b16 %v3373, %v3365
    %v4086 = vpack.c.b16 %v3374, %v3366
    %v4087 = vpack.c.b16 %v3375, %v3367
    %v4088 = vpack.c.b16 %v3376, %v3368
    %v4089 = vpack.c.b16 %v3385, %v3377
    %v4090 = vpack.c.b16 %v3386, %v3378
    %v4091 = vpack.c.b16 %v3387, %v3379
    %v4092 = vpack.c.b16 %v3388, %v3380
    %v4093 = vpack.c.b16 %v3389, %v3381
    %v4094 = vpack.c.b16 %v3390, %v3382
    %v4095 = vpack.c.b16 %v3391, %v3383
    %v4096 = vpack.c.b16 %v3392, %v3384
    %v4097 = vpack.c.b16 %v3401, %v3393
    %v4098 = vpack.c.b16 %v3402, %v3394
    %v4099 = vpack.c.b16 %v3403, %v3395
    %v4100 = vpack.c.b16 %v3404, %v3396
    %v4101 = vpack.c.b16 %v3405, %v3397
    %v4102 = vpack.c.b16 %v3406, %v3398
    %v4103 = vpack.c.b16 %v3407, %v3399
    %v4104 = vpack.c.b16 %v3408, %v3400
    %v4105 = vpack.c.b16 %v3417, %v3409
    %v4106 = vpack.c.b16 %v3418, %v3410
    %v4107 = vpack.c.b16 %v3419, %v3411
    %v4108 = vpack.c.b16 %v3420, %v3412
    %v4109 = vpack.c.b16 %v3421, %v3413
    %v4110 = vpack.c.b16 %v3422, %v3414
    %v4111 = vpack.c.b16 %v3423, %v3415
    %v4112 = vpack.c.b16 %v3424, %v3416
    %v4113 = vpack.c.b16 %v3433, %v3425
    %v4114 = vpack.c.b16 %v3434, %v3426
    %v4115 = vpack.c.b16 %v3435, %v3427
    %v4116 = vpack.c.b16 %v3436, %v3428
    %v4117 = vpack.c.b16 %v3437, %v3429
    %v4118 = vpack.c.b16 %v3438, %v3430
    %v4119 = vpack.c.b16 %v3439, %v3431
    %v4120 = vpack.c.b16 %v3440, %v3432
    %v4121 = vpack.c.b16 %v3449, %v3441
    %v4122 = vpack.c.b16 %v3450, %v3442
    %v4123 = vpack.c.b16 %v3451, %v3443
    %v4124 = vpack.c.b16 %v3452, %v3444
    %v4125 = vpack.c.b16 %v3453, %v3445
    %v4126 = vpack.c.b16 %v3454, %v3446
    %v4127 = vpack.c.b16 %v3455, %v3447
    %v4128 = vpack.c.b16 %v3456, %v3448
    %v4129 = vpack.c.b16 %v3465, %v3457
    %v4130 = vpack.c.b16 %v3466, %v3458
    %v4131 = vpack.c.b16 %v3467, %v3459
    %v4132 = vpack.c.b16 %v3468, %v3460
    %v4133 = vpack.c.b16 %v3469, %v3461
    %v4134 = vpack.c.b16 %v3470, %v3462
    %v4135 = vpack.c.b16 %v3471, %v3463
    %v4136 = vpack.c.b16 %v3472, %v3464
    %v4137 = vpack.c.b16 %v3481, %v3473
    %v4138 = vpack.c.b16 %v3482, %v3474
    %v4139 = vpack.c.b16 %v3483, %v3475
    %v4140 = vpack.c.b16 %v3484, %v3476
    %v4141 = vpack.c.b16 %v3485, %v3477
    %v4142 = vpack.c.b16 %v3486, %v3478
    %v4143 = vpack.c.b16 %v3487, %v3479
    %v4144 = vpack.c.b16 %v3488, %v3480
    %v4145 = vpack.c.b16 %v3497, %v3489
    %v4146 = vpack.c.b16 %v3498, %v3490
    %v4147 = vpack.c.b16 %v3499, %v3491
    %v4148 = vpack.c.b16 %v3500, %v3492
    %v4149 = vpack.c.b16 %v3501, %v3493
    %v4150 = vpack.c.b16 %v3502, %v3494
    %v4151 = vpack.c.b16 %v3503, %v3495
    %v4152 = vpack.c.b16 %v3504, %v3496
    %v4153 = vpack.c.b16 %v3513, %v3505
    %v4154 = vpack.c.b16 %v3514, %v3506
    %v4155 = vpack.c.b16 %v3515, %v3507
    %v4156 = vpack.c.b16 %v3516, %v3508
    %v4157 = vpack.c.b16 %v3517, %v3509
    %v4158 = vpack.c.b16 %v3518, %v3510
    %v4159 = vpack.c.b16 %v3519, %v3511
    %v4160 = vpack.c.b16 %v3520, %v3512
    %v4161 = vpack.c.b16 %v3529, %v3521
    %v4162 = vpack.c.b16 %v3530, %v3522
    %v4163 = vpack.c.b16 %v3531, %v3523
    %v4164 = vpack.c.b16 %v3532, %v3524
    %v4165 = vpack.c.b16 %v3533, %v3525
    %v4166 = vpack.c.b16 %v3534, %v3526
    %v4167 = vpack.c.b16 %v3535, %v3527
    %v4168 = vpack.c.b16 %v3536, %v3528
    %v4169 = vpack.c.b16 %v3545, %v3537
    %v4170 = vpack.c.b16 %v3546, %v3538
    %v4171 = vpack.c.b16 %v3547, %v3539
    %v4172 = vpack.c.b16 %v3548, %v3540
    %v4173 = vpack.c.b16 %v3549, %v3541
    %v4174 = vpack.c.b16 %v3550, %v3542
    %v4175 = vpack.c.b16 %v3551, %v3543
    %v4176 = vpack.c.b16 %v3552, %v3544
    %v4177 = vpack.c.b16 %v3561, %v3553
    %v4178 = vpack.c.b16 %v3562, %v3554
    %v4179 = vpack.c.b16 %v3563, %v3555
    %v4180 = vpack.c.b16 %v3564, %v3556
    %v4181 = vpack.c.b16 %v3565, %v3557
    %v4182 = vpack.c.b16 %v3566, %v3558
    %v4183 = vpack.c.b16 %v3567, %v3559
    %v4184 = vpack.c.b16 %v3568, %v3560
    %v4185 = vpack.c.b16 %v3577, %v3569
    %v4186 = vpack.c.b16 %v3578, %v3570
    %v4187 = vpack.c.b16 %v3579, %v3571
    %v4188 = vpack.c.b16 %v3580, %v3572
    %v4189 = vpack.c.b16 %v3581, %v3573
    %v4190 = vpack.c.b16 %v3582, %v3574
    %v4191 = vpack.c.b16 %v3583, %v3575
    %v4192 = vpack.c.b16 %v3584, %v3576
    %v4193 = vpack.c.b16 %v3593, %v3585
    %v4194 = vpack.c.b16 %v3594, %v3586
    %v4195 = vpack.c.b16 %v3595, %v3587
    %v4196 = vpack.c.b16 %v3596, %v3588
    %v4197 = vpack.c.b16 %v3597, %v3589
    %v4198 = vpack.c.b16 %v3598, %v3590
    %v4199 = vpack.c.b16 %v3599, %v3591
    %v4200 = vpack.c.b16 %v3600, %v3592
    %v4201 = vpack.c.b16 %v3609, %v3601
    %v4202 = vpack.c.b16 %v3610, %v3602
    %v4203 = vpack.c.b16 %v3611, %v3603
    %v4204 = vpack.c.b16 %v3612, %v3604
    %v4205 = vpack.c.b16 %v3613, %v3605
    %v4206 = vpack.c.b16 %v3614, %v3606
    %v4207 = vpack.c.b16 %v3615, %v3607
    %v4208 = vpack.c.b16 %v3616, %v3608
    %v4209 = vpack.c.b16 %v3625, %v3617
    %v4210 = vpack.c.b16 %v3626, %v3618
    %v4211 = vpack.c.b16 %v3627, %v3619
    %v4212 = vpack.c.b16 %v3628, %v3620
    %v4213 = vpack.c.b16 %v3629, %v3621
    %v4214 = vpack.c.b16 %v3630, %v3622
    %v4215 = vpack.c.b16 %v3631, %v3623
    %v4216 = vpack.c.b16 %v3632, %v3624
    %v4217 = vpack.c.b16 %v3641, %v3633
    %v4218 = vpack.c.b16 %v3642, %v3634
    %v4219 = vpack.c.b16 %v3643, %v3635
    %v4220 = vpack.c.b16 %v3644, %v3636
    %v4221 = vpack.c.b16 %v3645, %v3637
    %v4222 = vpack.c.b16 %v3646, %v3638
    %v4223 = vpack.c.b16 %v3647, %v3639
    %v4224 = vpack.c.b16 %v3648, %v3640
    %v4225 = vpack.c.b16 %v3657, %v3649
    %v4226 = vpack.c.b16 %v3658, %v3650
    %v4227 = vpack.c.b16 %v3659, %v3651
    %v4228 = vpack.c.b16 %v3660, %v3652
    %v4229 = vpack.c.b16 %v3661, %v3653
    %v4230 = vpack.c.b16 %v3662, %v3654
    %v4231 = vpack.c.b16 %v3663, %v3655
    %v4232 = vpack.c.b16 %v3664, %v3656
    %v4233 = vpack.c.b16 %v3673, %v3665
    %v4234 = vpack.c.b16 %v3674, %v3666
    %v4235 = vpack.c.b16 %v3675, %v3667
    %v4236 = vpack.c.b16 %v3676, %v3668
    %v4237 = vpack.c.b16 %v3677, %v3669
    %v4238 = vpack.c.b16 %v3678, %v3670
    %v4239 = vpack.c.b16 %v3679, %v3671
    %v4240 = vpack.c.b16 %v3680, %v3672
    %v4241 = vpack.c.b16 %v3689, %v3681
    %v4242 = vpack.c.b16 %v3690, %v3682
    %v4243 = vpack.c.b16 %v3691, %v3683
    %v4244 = vpack.c.b16 %v3692, %v3684
    %v4245 = vpack.c.b16 %v3693, %v3685
    %v4246 = vpack.c.b16 %v3694, %v3686
    %v4247 = vpack.c.b16 %v3695, %v3687
    %v4248 = vpack.c.b16 %v3696, %v3688
    %v4249 = vpack.c.b16 %v3705, %v3697
    %v4250 = vpack.c.b16 %v3706, %v3698
    %v4251 = vpack.c.b16 %v3707, %v3699
    %v4252 = vpack.c.b16 %v3708, %v3700
    %v4253 = vpack.c.b16 %v3709, %v3701
    %v4254 = vpack.c.b16 %v3710, %v3702
    %v4255 = vpack.c.b16 %v3711, %v3703
    %v4256 = vpack.c.b16 %v3712, %v3704
    %v4257 = vpack.c.b16 %v3721, %v3713
    %v4258 = vpack.c.b16 %v3722, %v3714
    %v4259 = vpack.c.b16 %v3723, %v3715
    %v4260 = vpack.c.b16 %v3724, %v3716
    %v4261 = vpack.c.b16 %v3725, %v3717
    %v4262 = vpack.c.b16 %v3726, %v3718
    %v4263 = vpack.c.b16 %v3727, %v3719
    %v4264 = vpack.c.b16 %v3728, %v3720
    %v4265 = vpack.c.b16 %v3737, %v3729
    %v4266 = vpack.c.b16 %v3738, %v3730
    %v4267 = vpack.c.b16 %v3739, %v3731
    %v4268 = vpack.c.b16 %v3740, %v3732
    %v4269 = vpack.c.b16 %v3741, %v3733
    %v4270 = vpack.c.b16 %v3742, %v3734
    %v4271 = vpack.c.b16 %v3743, %v3735
    %v4272 = vpack.c.b16 %v3744, %v3736
    %v4273 = vpack.c.b16 %v3753, %v3745
    %v4274 = vpack.c.b16 %v3754, %v3746
    %v4275 = vpack.c.b16 %v3755, %v3747
    %v4276 = vpack.c.b16 %v3756, %v3748
    %v4277 = vpack.c.b16 %v3757, %v3749
    %v4278 = vpack.c.b16 %v3758, %v3750
    %v4279 = vpack.c.b16 %v3759, %v3751
    %v4280 = vpack.c.b16 %v3760, %v3752
    %v4281 = vpack.c.b16 %v3769, %v3761
    %v4282 = vpack.c.b16 %v3770, %v3762
    %v4283 = vpack.c.b16 %v3771, %v3763
    %v4284 = vpack.c.b16 %v3772, %v3764
    %v4285 = vpack.c.b16 %v3773, %v3765
    %v4286 = vpack.c.b16 %v3774, %v3766
    %v4287 = vpack.c.b16 %v3775, %v3767
    %v4288 = vpack.c.b16 %v3776, %v3768
    %4801 = vmatprep.subr.bf16.mxu0 %v3834
    %4802 = vmatpush1.bf16.msra.mxu0 %v3833
    %4803 = vmatprep.subr.bf16.mxu0 %v3826
    %4804 = vmatpush1.bf16.msra.mxu0 %v3825
    %4805 = vmatprep.subr.bf16.mxu0 %v3818
    %4806 = vmatpush1.bf16.msra.mxu0 %v3817
    %4807 = vmatprep.subr.bf16.mxu0 %v3810
    %4808 = vmatpush1.bf16.msra.mxu0 %v3809
    %4809 = vmatprep.subr.bf16.mxu0 %v3802
    %4810 = vmatpush1.bf16.msra.mxu0 %v3801
    %4811 = vmatprep.subr.bf16.mxu0 %v3794
    %4812 = vmatpush1.bf16.msra.mxu0 %v3793
    %4813 = vmatprep.subr.bf16.mxu0 %v3786
    %4814 = vmatpush1.bf16.msra.mxu0 %v3785
    %4815 = vmatprep.subr.bf16.mxu0 %v3778
    %4816 = vmatpush1.bf16.msra.mxu0 %v3777
    %4817 = vmatprep.subr.bf16.mxu0 %v3898
    %4818 = vmatpush2.bf16.msra.mxu0 %v3897
    %4819 = vmatprep.subr.bf16.mxu0 %v3890
    %4820 = vmatpush2.bf16.msra.mxu0 %v3889
    %4821 = vmatprep.subr.bf16.mxu0 %v3882
    %4822 = vmatpush2.bf16.msra.mxu0 %v3881
    %4823 = vmatprep.subr.bf16.mxu0 %v3874
    %4824 = vmatpush2.bf16.msra.mxu0 %v3873
    %4825 = vmatprep.subr.bf16.mxu0 %v3866
    %4826 = vmatpush2.bf16.msra.mxu0 %v3865
    %4827 = vmatprep.subr.bf16.mxu0 %v3858
    %4828 = vmatpush2.bf16.msra.mxu0 %v3857
    %4829 = vmatprep.subr.bf16.mxu0 %v3850
    %4830 = vmatpush2.bf16.msra.mxu0 %v3849
    %4831 = vmatprep.subr.bf16.mxu0 %v3842
    %4832 = vmatpush2.bf16.msra.mxu0 %v3841
    %4833 = vmatprep.mubr.bf16.mxu0 %v1680
    %4834 = vmatmul.mubr.bf16.gmra.mxu0 %v1679
    %v4835 = vpop.f32.mrf.mxu0
    %v4836 = vadd.f32 %v2204, %v4835
    %v4837 = vpop.f32.mrf.mxu0
    %v4838 = vadd.f32 %v2208, %v4837
    %v4839 = vpop.f32.mrf.mxu0
    %v4840 = vpop.f32.mrf.mxu0
    %4841 = vdwg.mxu0
    %4842 = vmatprep.subr.bf16.mxu0 %v3962
    %4843 = vmatpush1.bf16.msra.mxu0 %v3961
    %4844 = vmatprep.subr.bf16.mxu0 %v3954
    %4845 = vmatpush1.bf16.msra.mxu0 %v3953
    %4846 = vmatprep.subr.bf16.mxu0 %v3946
    %4847 = vmatpush1.bf16.msra.mxu0 %v3945
    %4848 = vmatprep.subr.bf16.mxu0 %v3938
    %4849 = vmatpush1.bf16.msra.mxu0 %v3937
    %4850 = vmatprep.subr.bf16.mxu0 %v3930
    %4851 = vmatpush1.bf16.msra.mxu0 %v3929
    %4852 = vmatprep.subr.bf16.mxu0 %v3922
    %4853 = vmatpush1.bf16.msra.mxu0 %v3921
    %4854 = vmatprep.subr.bf16.mxu0 %v3914
    %4855 = vmatpush1.bf16.msra.mxu0 %v3913
    %4856 = vmatprep.subr.bf16.mxu0 %v3906
    %4857 = vmatpush1.bf16.msra.mxu0 %v3905
    %4858 = vmatprep.subr.bf16.mxu0 %v4026
    %4859 = vmatpush2.bf16.msra.mxu0 %v4025
    %4860 = vmatprep.subr.bf16.mxu0 %v4018
    %4861 = vmatpush2.bf16.msra.mxu0 %v4017
    %4862 = vmatprep.subr.bf16.mxu0 %v4010
    %4863 = vmatpush2.bf16.msra.mxu0 %v4009
    %4864 = vmatprep.subr.bf16.mxu0 %v4002
    %4865 = vmatpush2.bf16.msra.mxu0 %v4001
    %4866 = vmatprep.subr.bf16.mxu0 %v3994
    %4867 = vmatpush2.bf16.msra.mxu0 %v3993
    %4868 = vmatprep.subr.bf16.mxu0 %v3986
    %4869 = vmatpush2.bf16.msra.mxu0 %v3985
    %4870 = vmatprep.subr.bf16.mxu0 %v3978
    %4871 = vmatpush2.bf16.msra.mxu0 %v3977
    %4872 = vmatprep.subr.bf16.mxu0 %v3970
    %4873 = vmatpush2.bf16.msra.mxu0 %v3969
    %4874 = vmatprep.mubr.bf16.mxu0 %v1682
    %4875 = vmatmul.mubr.bf16.gmra.mxu0 %v1681
    %v4876 = vpop.f32.mrf.mxu0
    %v4877 = vadd.f32 %v4836, %v4876
    %v4878 = vpop.f32.mrf.mxu0
    %v4879 = vadd.f32 %v4838, %v4878
    %v4880 = vpop.f32.mrf.mxu0
    %v4881 = vpop.f32.mrf.mxu0
    %4882 = vdwg.mxu0
    %4883 = vmatprep.subr.bf16.mxu0 %v4090
    %4884 = vmatpush1.bf16.msra.mxu0 %v4089
    %4885 = vmatprep.subr.bf16.mxu0 %v4082
    %4886 = vmatpush1.bf16.msra.mxu0 %v4081
    %4887 = vmatprep.subr.bf16.mxu0 %v4074
    %4888 = vmatpush1.bf16.msra.mxu0 %v4073
    %4889 = vmatprep.subr.bf16.mxu0 %v4066
    %4890 = vmatpush1.bf16.msra.mxu0 %v4065
    %4891 = vmatprep.subr.bf16.mxu0 %v4058
    %4892 = vmatpush1.bf16.msra.mxu0 %v4057
    %4893 = vmatprep.subr.bf16.mxu0 %v4050
    %4894 = vmatpush1.bf16.msra.mxu0 %v4049
    %4895 = vmatprep.subr.bf16.mxu0 %v4042
    %4896 = vmatpush1.bf16.msra.mxu0 %v4041
    %4897 = vmatprep.subr.bf16.mxu0 %v4034
    %4898 = vmatpush1.bf16.msra.mxu0 %v4033
    %4899 = vmatprep.subr.bf16.mxu0 %v4154
    %4900 = vmatpush2.bf16.msra.mxu0 %v4153
    %4901 = vmatprep.subr.bf16.mxu0 %v4146
    %4902 = vmatpush2.bf16.msra.mxu0 %v4145
    %4903 = vmatprep.subr.bf16.mxu0 %v4138
    %4904 = vmatpush2.bf16.msra.mxu0 %v4137
    %4905 = vmatprep.subr.bf16.mxu0 %v4130
    %4906 = vmatpush2.bf16.msra.mxu0 %v4129
    %4907 = vmatprep.subr.bf16.mxu0 %v4122
    %4908 = vmatpush2.bf16.msra.mxu0 %v4121
    %4909 = vmatprep.subr.bf16.mxu0 %v4114
    %4910 = vmatpush2.bf16.msra.mxu0 %v4113
    %4911 = vmatprep.subr.bf16.mxu0 %v4106
    %4912 = vmatpush2.bf16.msra.mxu0 %v4105
    %4913 = vmatprep.subr.bf16.mxu0 %v4098
    %4914 = vmatpush2.bf16.msra.mxu0 %v4097
    %4915 = vmatprep.mubr.bf16.mxu0 %v1684
    %4916 = vmatmul.mubr.bf16.gmra.mxu0 %v1683
    %v4917 = vpop.f32.mrf.mxu0
    %v4918 = vadd.f32 %v4877, %v4917
    %v4919 = vpop.f32.mrf.mxu0
    %v4920 = vadd.f32 %v4879, %v4919
    %v4921 = vpop.f32.mrf.mxu0
    %v4922 = vpop.f32.mrf.mxu0
    %4923 = vdwg.mxu0
    %4924 = vmatprep.subr.bf16.mxu0 %v4218
    %4925 = vmatpush1.bf16.msra.mxu0 %v4217
    %4926 = vmatprep.subr.bf16.mxu0 %v4210
    %4927 = vmatpush1.bf16.msra.mxu0 %v4209
    %4928 = vmatprep.subr.bf16.mxu0 %v4202
    %4929 = vmatpush1.bf16.msra.mxu0 %v4201
    %4930 = vmatprep.subr.bf16.mxu0 %v4194
    %4931 = vmatpush1.bf16.msra.mxu0 %v4193
    %4932 = vmatprep.subr.bf16.mxu0 %v4186
    %4933 = vmatpush1.bf16.msra.mxu0 %v4185
    %4934 = vmatprep.subr.bf16.mxu0 %v4178
    %4935 = vmatpush1.bf16.msra.mxu0 %v4177
    %4936 = vmatprep.subr.bf16.mxu0 %v4170
    %4937 = vmatpush1.bf16.msra.mxu0 %v4169
    %4938 = vmatprep.subr.bf16.mxu0 %v4162
    %4939 = vmatpush1.bf16.msra.mxu0 %v4161
    %4940 = vmatprep.subr.bf16.mxu0 %v4282
    %4941 = vmatpush2.bf16.msra.mxu0 %v4281
    %4942 = vmatprep.subr.bf16.mxu0 %v4274
    %4943 = vmatpush2.bf16.msra.mxu0 %v4273
    %4944 = vmatprep.subr.bf16.mxu0 %v4266
    %4945 = vmatpush2.bf16.msra.mxu0 %v4265
    %4946 = vmatprep.subr.bf16.mxu0 %v4258
    %4947 = vmatpush2.bf16.msra.mxu0 %v4257
    %4948 = vmatprep.subr.bf16.mxu0 %v4250
    %4949 = vmatpush2.bf16.msra.mxu0 %v4249
    %4950 = vmatprep.subr.bf16.mxu0 %v4242
    %4951 = vmatpush2.bf16.msra.mxu0 %v4241
    %4952 = vmatprep.subr.bf16.mxu0 %v4234
    %4953 = vmatpush2.bf16.msra.mxu0 %v4233
    %4954 = vmatprep.subr.bf16.mxu0 %v4226
    %4955 = vmatpush2.bf16.msra.mxu0 %v4225
    %4956 = vmatprep.mubr.bf16.mxu0 %v1686
    %4957 = vmatmul.mubr.bf16.gmra.mxu0 %v1685
    %v4958 = vpop.f32.mrf.mxu0
    %v4959 = vadd.f32 %v4918, %v4958
    %v4960 = vpop.f32.mrf.mxu0
    %v4961 = vadd.f32 %v4920, %v4960
    %v4962 = vpop.f32.mrf.mxu0
    %v4963 = vpop.f32.mrf.mxu0
    %4964 = vdwg.mxu0
    %4965 = vmatprep.subr.bf16.mxu0 %v3836
    %4966 = vmatpush1.bf16.msra.mxu0 %v3835
    %4967 = vmatprep.subr.bf16.mxu0 %v3828
    %4968 = vmatpush1.bf16.msra.mxu0 %v3827
    %4969 = vmatprep.subr.bf16.mxu0 %v3820
    %4970 = vmatpush1.bf16.msra.mxu0 %v3819
    %4971 = vmatprep.subr.bf16.mxu0 %v3812
    %4972 = vmatpush1.bf16.msra.mxu0 %v3811
    %4973 = vmatprep.subr.bf16.mxu0 %v3804
    %4974 = vmatpush1.bf16.msra.mxu0 %v3803
    %4975 = vmatprep.subr.bf16.mxu0 %v3796
    %4976 = vmatpush1.bf16.msra.mxu0 %v3795
    %4977 = vmatprep.subr.bf16.mxu0 %v3788
    %4978 = vmatpush1.bf16.msra.mxu0 %v3787
    %4979 = vmatprep.subr.bf16.mxu0 %v3780
    %4980 = vmatpush1.bf16.msra.mxu0 %v3779
    %4981 = vmatprep.subr.bf16.mxu0 %v3900
    %4982 = vmatpush2.bf16.msra.mxu0 %v3899
    %4983 = vmatprep.subr.bf16.mxu0 %v3892
    %4984 = vmatpush2.bf16.msra.mxu0 %v3891
    %4985 = vmatprep.subr.bf16.mxu0 %v3884
    %4986 = vmatpush2.bf16.msra.mxu0 %v3883
    %4987 = vmatprep.subr.bf16.mxu0 %v3876
    %4988 = vmatpush2.bf16.msra.mxu0 %v3875
    %4989 = vmatprep.subr.bf16.mxu0 %v3868
    %4990 = vmatpush2.bf16.msra.mxu0 %v3867
    %4991 = vmatprep.subr.bf16.mxu0 %v3860
    %4992 = vmatpush2.bf16.msra.mxu0 %v3859
    %4993 = vmatprep.subr.bf16.mxu0 %v3852
    %4994 = vmatpush2.bf16.msra.mxu0 %v3851
    %4995 = vmatprep.subr.bf16.mxu0 %v3844
    %4996 = vmatpush2.bf16.msra.mxu0 %v3843
    %4997 = vmatprep.mubr.bf16.mxu0 %v1680
    %4998 = vmatmul.mubr.bf16.gmra.mxu0 %v1679
    %v4999 = vpop.f32.mrf.mxu0
    %v5000 = vadd.f32 %v2212, %v4999
    %v5001 = vpop.f32.mrf.mxu0
    %v5002 = vadd.f32 %v2216, %v5001
    %v5003 = vpop.f32.mrf.mxu0
    %v5004 = vpop.f32.mrf.mxu0
    %5005 = vdwg.mxu0
    %5006 = vmatprep.subr.bf16.mxu0 %v3964
    %5007 = vmatpush1.bf16.msra.mxu0 %v3963
    %5008 = vmatprep.subr.bf16.mxu0 %v3956
    %5009 = vmatpush1.bf16.msra.mxu0 %v3955
    %5010 = vmatprep.subr.bf16.mxu0 %v3948
    %5011 = vmatpush1.bf16.msra.mxu0 %v3947
    %5012 = vmatprep.subr.bf16.mxu0 %v3940
    %5013 = vmatpush1.bf16.msra.mxu0 %v3939
    %5014 = vmatprep.subr.bf16.mxu0 %v3932
    %5015 = vmatpush1.bf16.msra.mxu0 %v3931
    %5016 = vmatprep.subr.bf16.mxu0 %v3924
    %5017 = vmatpush1.bf16.msra.mxu0 %v3923
    %5018 = vmatprep.subr.bf16.mxu0 %v3916
    %5019 = vmatpush1.bf16.msra.mxu0 %v3915
    %5020 = vmatprep.subr.bf16.mxu0 %v3908
    %5021 = vmatpush1.bf16.msra.mxu0 %v3907
    %5022 = vmatprep.subr.bf16.mxu0 %v4028
    %5023 = vmatpush2.bf16.msra.mxu0 %v4027
    %5024 = vmatprep.subr.bf16.mxu0 %v4020
    %5025 = vmatpush2.bf16.msra.mxu0 %v4019
    %5026 = vmatprep.subr.bf16.mxu0 %v4012
    %5027 = vmatpush2.bf16.msra.mxu0 %v4011
    %5028 = vmatprep.subr.bf16.mxu0 %v4004
    %5029 = vmatpush2.bf16.msra.mxu0 %v4003
    %5030 = vmatprep.subr.bf16.mxu0 %v3996
    %5031 = vmatpush2.bf16.msra.mxu0 %v3995
    %5032 = vmatprep.subr.bf16.mxu0 %v3988
    %5033 = vmatpush2.bf16.msra.mxu0 %v3987
    %5034 = vmatprep.subr.bf16.mxu0 %v3980
    %5035 = vmatpush2.bf16.msra.mxu0 %v3979
    %5036 = vmatprep.subr.bf16.mxu0 %v3972
    %5037 = vmatpush2.bf16.msra.mxu0 %v3971
    %5038 = vmatprep.mubr.bf16.mxu0 %v1682
    %5039 = vmatmul.mubr.bf16.gmra.mxu0 %v1681
    %v5040 = vpop.f32.mrf.mxu0
    %v5041 = vadd.f32 %v5000, %v5040
    %v5042 = vpop.f32.mrf.mxu0
    %v5043 = vadd.f32 %v5002, %v5042
    %v5044 = vpop.f32.mrf.mxu0
    %v5045 = vpop.f32.mrf.mxu0
    %5046 = vdwg.mxu0
    %5047 = vmatprep.subr.bf16.mxu0 %v4092
    %5048 = vmatpush1.bf16.msra.mxu0 %v4091
    %5049 = vmatprep.subr.bf16.mxu0 %v4084
    %5050 = vmatpush1.bf16.msra.mxu0 %v4083
    %5051 = vmatprep.subr.bf16.mxu0 %v4076
    %5052 = vmatpush1.bf16.msra.mxu0 %v4075
    %5053 = vmatprep.subr.bf16.mxu0 %v4068
    %5054 = vmatpush1.bf16.msra.mxu0 %v4067
    %5055 = vmatprep.subr.bf16.mxu0 %v4060
    %5056 = vmatpush1.bf16.msra.mxu0 %v4059
    %5057 = vmatprep.subr.bf16.mxu0 %v4052
    %5058 = vmatpush1.bf16.msra.mxu0 %v4051
    %5059 = vmatprep.subr.bf16.mxu0 %v4044
    %5060 = vmatpush1.bf16.msra.mxu0 %v4043
    %5061 = vmatprep.subr.bf16.mxu0 %v4036
    %5062 = vmatpush1.bf16.msra.mxu0 %v4035
    %5063 = vmatprep.subr.bf16.mxu0 %v4156
    %5064 = vmatpush2.bf16.msra.mxu0 %v4155
    %5065 = vmatprep.subr.bf16.mxu0 %v4148
    %5066 = vmatpush2.bf16.msra.mxu0 %v4147
    %5067 = vmatprep.subr.bf16.mxu0 %v4140
    %5068 = vmatpush2.bf16.msra.mxu0 %v4139
    %5069 = vmatprep.subr.bf16.mxu0 %v4132
    %5070 = vmatpush2.bf16.msra.mxu0 %v4131
    %5071 = vmatprep.subr.bf16.mxu0 %v4124
    %5072 = vmatpush2.bf16.msra.mxu0 %v4123
    %5073 = vmatprep.subr.bf16.mxu0 %v4116
    %5074 = vmatpush2.bf16.msra.mxu0 %v4115
    %5075 = vmatprep.subr.bf16.mxu0 %v4108
    %5076 = vmatpush2.bf16.msra.mxu0 %v4107
    %5077 = vmatprep.subr.bf16.mxu0 %v4100
    %5078 = vmatpush2.bf16.msra.mxu0 %v4099
    %5079 = vmatprep.mubr.bf16.mxu0 %v1684
    %5080 = vmatmul.mubr.bf16.gmra.mxu0 %v1683
    %v5081 = vpop.f32.mrf.mxu0
    %v5082 = vadd.f32 %v5041, %v5081
    %v5083 = vpop.f32.mrf.mxu0
    %v5084 = vadd.f32 %v5043, %v5083
    %v5085 = vpop.f32.mrf.mxu0
    %v5086 = vpop.f32.mrf.mxu0
    %5087 = vdwg.mxu0
    %5088 = vmatprep.subr.bf16.mxu0 %v4220
    %5089 = vmatpush1.bf16.msra.mxu0 %v4219
    %5090 = vmatprep.subr.bf16.mxu0 %v4212
    %5091 = vmatpush1.bf16.msra.mxu0 %v4211
    %5092 = vmatprep.subr.bf16.mxu0 %v4204
    %5093 = vmatpush1.bf16.msra.mxu0 %v4203
    %5094 = vmatprep.subr.bf16.mxu0 %v4196
    %5095 = vmatpush1.bf16.msra.mxu0 %v4195
    %5096 = vmatprep.subr.bf16.mxu0 %v4188
    %5097 = vmatpush1.bf16.msra.mxu0 %v4187
    %5098 = vmatprep.subr.bf16.mxu0 %v4180
    %5099 = vmatpush1.bf16.msra.mxu0 %v4179
    %5100 = vmatprep.subr.bf16.mxu0 %v4172
    %5101 = vmatpush1.bf16.msra.mxu0 %v4171
    %5102 = vmatprep.subr.bf16.mxu0 %v4164
    %5103 = vmatpush1.bf16.msra.mxu0 %v4163
    %5104 = vmatprep.subr.bf16.mxu0 %v4284
    %5105 = vmatpush2.bf16.msra.mxu0 %v4283
    %5106 = vmatprep.subr.bf16.mxu0 %v4276
    %5107 = vmatpush2.bf16.msra.mxu0 %v4275
    %5108 = vmatprep.subr.bf16.mxu0 %v4268
    %5109 = vmatpush2.bf16.msra.mxu0 %v4267
    %5110 = vmatprep.subr.bf16.mxu0 %v4260
    %5111 = vmatpush2.bf16.msra.mxu0 %v4259
    %5112 = vmatprep.subr.bf16.mxu0 %v4252
    %5113 = vmatpush2.bf16.msra.mxu0 %v4251
    %5114 = vmatprep.subr.bf16.mxu0 %v4244
    %5115 = vmatpush2.bf16.msra.mxu0 %v4243
    %5116 = vmatprep.subr.bf16.mxu0 %v4236
    %5117 = vmatpush2.bf16.msra.mxu0 %v4235
    %5118 = vmatprep.subr.bf16.mxu0 %v4228
    %5119 = vmatpush2.bf16.msra.mxu0 %v4227
    %5120 = vmatprep.mubr.bf16.mxu0 %v1686
    %5121 = vmatmul.mubr.bf16.gmra.mxu0 %v1685
    %v5122 = vpop.f32.mrf.mxu0
    %v5123 = vadd.f32 %v5082, %v5122
    %v5124 = vpop.f32.mrf.mxu0
    %v5125 = vadd.f32 %v5084, %v5124
    %v5126 = vpop.f32.mrf.mxu0
    %v5127 = vpop.f32.mrf.mxu0
    %5128 = vdwg.mxu0
    %5129 = vmatprep.subr.bf16.mxu0 %v3838
    %5130 = vmatpush1.bf16.msra.mxu0 %v3837
    %5131 = vmatprep.subr.bf16.mxu0 %v3830
    %5132 = vmatpush1.bf16.msra.mxu0 %v3829
    %5133 = vmatprep.subr.bf16.mxu0 %v3822
    %5134 = vmatpush1.bf16.msra.mxu0 %v3821
    %5135 = vmatprep.subr.bf16.mxu0 %v3814
    %5136 = vmatpush1.bf16.msra.mxu0 %v3813
    %5137 = vmatprep.subr.bf16.mxu0 %v3806
    %5138 = vmatpush1.bf16.msra.mxu0 %v3805
    %5139 = vmatprep.subr.bf16.mxu0 %v3798
    %5140 = vmatpush1.bf16.msra.mxu0 %v3797
    %5141 = vmatprep.subr.bf16.mxu0 %v3790
    %5142 = vmatpush1.bf16.msra.mxu0 %v3789
    %5143 = vmatprep.subr.bf16.mxu0 %v3782
    %5144 = vmatpush1.bf16.msra.mxu0 %v3781
    %5145 = vmatprep.subr.bf16.mxu0 %v3902
    %5146 = vmatpush2.bf16.msra.mxu0 %v3901
    %5147 = vmatprep.subr.bf16.mxu0 %v3894
    %5148 = vmatpush2.bf16.msra.mxu0 %v3893
    %5149 = vmatprep.subr.bf16.mxu0 %v3886
    %5150 = vmatpush2.bf16.msra.mxu0 %v3885
    %5151 = vmatprep.subr.bf16.mxu0 %v3878
    %5152 = vmatpush2.bf16.msra.mxu0 %v3877
    %5153 = vmatprep.subr.bf16.mxu0 %v3870
    %5154 = vmatpush2.bf16.msra.mxu0 %v3869
    %5155 = vmatprep.subr.bf16.mxu0 %v3862
    %5156 = vmatpush2.bf16.msra.mxu0 %v3861
    %5157 = vmatprep.subr.bf16.mxu0 %v3854
    %5158 = vmatpush2.bf16.msra.mxu0 %v3853
    %5159 = vmatprep.subr.bf16.mxu0 %v3846
    %5160 = vmatpush2.bf16.msra.mxu0 %v3845
    %5161 = vmatprep.mubr.bf16.mxu0 %v1680
    %5162 = vmatmul.mubr.bf16.gmra.mxu0 %v1679
    %v5163 = vpop.f32.mrf.mxu0
    %v5164 = vadd.f32 %v2220, %v5163
    %v5165 = vpop.f32.mrf.mxu0
    %v5166 = vadd.f32 %v2224, %v5165
    %v5167 = vpop.f32.mrf.mxu0
    %v5168 = vpop.f32.mrf.mxu0
    %5169 = vdwg.mxu0
    %5170 = vmatprep.subr.bf16.mxu0 %v3966
    %5171 = vmatpush1.bf16.msra.mxu0 %v3965
    %5172 = vmatprep.subr.bf16.mxu0 %v3958
    %5173 = vmatpush1.bf16.msra.mxu0 %v3957
    %5174 = vmatprep.subr.bf16.mxu0 %v3950
    %5175 = vmatpush1.bf16.msra.mxu0 %v3949
    %5176 = vmatprep.subr.bf16.mxu0 %v3942
    %5177 = vmatpush1.bf16.msra.mxu0 %v3941
    %5178 = vmatprep.subr.bf16.mxu0 %v3934
    %5179 = vmatpush1.bf16.msra.mxu0 %v3933
    %5180 = vmatprep.subr.bf16.mxu0 %v3926
    %5181 = vmatpush1.bf16.msra.mxu0 %v3925
    %5182 = vmatprep.subr.bf16.mxu0 %v3918
    %5183 = vmatpush1.bf16.msra.mxu0 %v3917
    %5184 = vmatprep.subr.bf16.mxu0 %v3910
    %5185 = vmatpush1.bf16.msra.mxu0 %v3909
    %5186 = vmatprep.subr.bf16.mxu0 %v4030
    %5187 = vmatpush2.bf16.msra.mxu0 %v4029
    %5188 = vmatprep.subr.bf16.mxu0 %v4022
    %5189 = vmatpush2.bf16.msra.mxu0 %v4021
    %5190 = vmatprep.subr.bf16.mxu0 %v4014
    %5191 = vmatpush2.bf16.msra.mxu0 %v4013
    %5192 = vmatprep.subr.bf16.mxu0 %v4006
    %5193 = vmatpush2.bf16.msra.mxu0 %v4005
    %5194 = vmatprep.subr.bf16.mxu0 %v3998
    %5195 = vmatpush2.bf16.msra.mxu0 %v3997
    %5196 = vmatprep.subr.bf16.mxu0 %v3990
    %5197 = vmatpush2.bf16.msra.mxu0 %v3989
    %5198 = vmatprep.subr.bf16.mxu0 %v3982
    %5199 = vmatpush2.bf16.msra.mxu0 %v3981
    %5200 = vmatprep.subr.bf16.mxu0 %v3974
    %5201 = vmatpush2.bf16.msra.mxu0 %v3973
    %5202 = vmatprep.mubr.bf16.mxu0 %v1682
    %5203 = vmatmul.mubr.bf16.gmra.mxu0 %v1681
    %v5204 = vpop.f32.mrf.mxu0
    %v5205 = vadd.f32 %v5164, %v5204
    %v5206 = vpop.f32.mrf.mxu0
    %v5207 = vadd.f32 %v5166, %v5206
    %v5208 = vpop.f32.mrf.mxu0
    %v5209 = vpop.f32.mrf.mxu0
    %5210 = vdwg.mxu0
    %5211 = vmatprep.subr.bf16.mxu0 %v4094
    %5212 = vmatpush1.bf16.msra.mxu0 %v4093
    %5213 = vmatprep.subr.bf16.mxu0 %v4086
    %5214 = vmatpush1.bf16.msra.mxu0 %v4085
    %5215 = vmatprep.subr.bf16.mxu0 %v4078
    %5216 = vmatpush1.bf16.msra.mxu0 %v4077
    %5217 = vmatprep.subr.bf16.mxu0 %v4070
    %5218 = vmatpush1.bf16.msra.mxu0 %v4069
    %5219 = vmatprep.subr.bf16.mxu0 %v4062
    %5220 = vmatpush1.bf16.msra.mxu0 %v4061
    %5221 = vmatprep.subr.bf16.mxu0 %v4054
    %5222 = vmatpush1.bf16.msra.mxu0 %v4053
    %5223 = vmatprep.subr.bf16.mxu0 %v4046
    %5224 = vmatpush1.bf16.msra.mxu0 %v4045
    %5225 = vmatprep.subr.bf16.mxu0 %v4038
    %5226 = vmatpush1.bf16.msra.mxu0 %v4037
    %5227 = vmatprep.subr.bf16.mxu0 %v4158
    %5228 = vmatpush2.bf16.msra.mxu0 %v4157
    %5229 = vmatprep.subr.bf16.mxu0 %v4150
    %5230 = vmatpush2.bf16.msra.mxu0 %v4149
    %5231 = vmatprep.subr.bf16.mxu0 %v4142
    %5232 = vmatpush2.bf16.msra.mxu0 %v4141
    %5233 = vmatprep.subr.bf16.mxu0 %v4134
    %5234 = vmatpush2.bf16.msra.mxu0 %v4133
    %5235 = vmatprep.subr.bf16.mxu0 %v4126
    %5236 = vmatpush2.bf16.msra.mxu0 %v4125
    %5237 = vmatprep.subr.bf16.mxu0 %v4118
    %5238 = vmatpush2.bf16.msra.mxu0 %v4117
    %5239 = vmatprep.subr.bf16.mxu0 %v4110
    %5240 = vmatpush2.bf16.msra.mxu0 %v4109
    %5241 = vmatprep.subr.bf16.mxu0 %v4102
    %5242 = vmatpush2.bf16.msra.mxu0 %v4101
    %5243 = vmatprep.mubr.bf16.mxu0 %v1684
    %5244 = vmatmul.mubr.bf16.gmra.mxu0 %v1683
    %v5245 = vpop.f32.mrf.mxu0
    %v5246 = vadd.f32 %v5205, %v5245
    %v5247 = vpop.f32.mrf.mxu0
    %v5248 = vadd.f32 %v5207, %v5247
    %v5249 = vpop.f32.mrf.mxu0
    %v5250 = vpop.f32.mrf.mxu0
    %5251 = vdwg.mxu0
    %5252 = vmatprep.subr.bf16.mxu0 %v4222
    %5253 = vmatpush1.bf16.msra.mxu0 %v4221
    %5254 = vmatprep.subr.bf16.mxu0 %v4214
    %5255 = vmatpush1.bf16.msra.mxu0 %v4213
    %5256 = vmatprep.subr.bf16.mxu0 %v4206
    %5257 = vmatpush1.bf16.msra.mxu0 %v4205
    %5258 = vmatprep.subr.bf16.mxu0 %v4198
    %5259 = vmatpush1.bf16.msra.mxu0 %v4197
    %5260 = vmatprep.subr.bf16.mxu0 %v4190
    %5261 = vmatpush1.bf16.msra.mxu0 %v4189
    %5262 = vmatprep.subr.bf16.mxu0 %v4182
    %5263 = vmatpush1.bf16.msra.mxu0 %v4181
    %5264 = vmatprep.subr.bf16.mxu0 %v4174
    %5265 = vmatpush1.bf16.msra.mxu0 %v4173
    %5266 = vmatprep.subr.bf16.mxu0 %v4166
    %5267 = vmatpush1.bf16.msra.mxu0 %v4165
    %5268 = vmatprep.subr.bf16.mxu0 %v4286
    %5269 = vmatpush2.bf16.msra.mxu0 %v4285
    %5270 = vmatprep.subr.bf16.mxu0 %v4278
    %5271 = vmatpush2.bf16.msra.mxu0 %v4277
    %5272 = vmatprep.subr.bf16.mxu0 %v4270
    %5273 = vmatpush2.bf16.msra.mxu0 %v4269
    %5274 = vmatprep.subr.bf16.mxu0 %v4262
    %5275 = vmatpush2.bf16.msra.mxu0 %v4261
    %5276 = vmatprep.subr.bf16.mxu0 %v4254
    %5277 = vmatpush2.bf16.msra.mxu0 %v4253
    %5278 = vmatprep.subr.bf16.mxu0 %v4246
    %5279 = vmatpush2.bf16.msra.mxu0 %v4245
    %5280 = vmatprep.subr.bf16.mxu0 %v4238
    %5281 = vmatpush2.bf16.msra.mxu0 %v4237
    %5282 = vmatprep.subr.bf16.mxu0 %v4230
    %5283 = vmatpush2.bf16.msra.mxu0 %v4229
    %5284 = vmatprep.mubr.bf16.mxu0 %v1686
    %5285 = vmatmul.mubr.bf16.gmra.mxu0 %v1685
    %v5286 = vpop.f32.mrf.mxu0
    %v5287 = vadd.f32 %v5246, %v5286
    %v5288 = vpop.f32.mrf.mxu0
    %v5289 = vadd.f32 %v5248, %v5288
    %v5290 = vpop.f32.mrf.mxu0
    %v5291 = vpop.f32.mrf.mxu0
    %5292 = vdwg.mxu0
    %5293 = vmatprep.subr.bf16.mxu0 %v3840
    %5294 = vmatpush1.bf16.msra.mxu0 %v3839
    %5295 = vmatprep.subr.bf16.mxu0 %v3832
    %5296 = vmatpush1.bf16.msra.mxu0 %v3831
    %5297 = vmatprep.subr.bf16.mxu0 %v3824
    %5298 = vmatpush1.bf16.msra.mxu0 %v3823
    %5299 = vmatprep.subr.bf16.mxu0 %v3816
    %5300 = vmatpush1.bf16.msra.mxu0 %v3815
    %5301 = vmatprep.subr.bf16.mxu0 %v3808
    %5302 = vmatpush1.bf16.msra.mxu0 %v3807
    %5303 = vmatprep.subr.bf16.mxu0 %v3800
    %5304 = vmatpush1.bf16.msra.mxu0 %v3799
    %5305 = vmatprep.subr.bf16.mxu0 %v3792
    %5306 = vmatpush1.bf16.msra.mxu0 %v3791
    %5307 = vmatprep.subr.bf16.mxu0 %v3784
    %5308 = vmatpush1.bf16.msra.mxu0 %v3783
    %5309 = vmatprep.subr.bf16.mxu0 %v3904
    %5310 = vmatpush2.bf16.msra.mxu0 %v3903
    %5311 = vmatprep.subr.bf16.mxu0 %v3896
    %5312 = vmatpush2.bf16.msra.mxu0 %v3895
    %5313 = vmatprep.subr.bf16.mxu0 %v3888
    %5314 = vmatpush2.bf16.msra.mxu0 %v3887
    %5315 = vmatprep.subr.bf16.mxu0 %v3880
    %5316 = vmatpush2.bf16.msra.mxu0 %v3879
    %5317 = vmatprep.subr.bf16.mxu0 %v3872
    %5318 = vmatpush2.bf16.msra.mxu0 %v3871
    %5319 = vmatprep.subr.bf16.mxu0 %v3864
    %5320 = vmatpush2.bf16.msra.mxu0 %v3863
    %5321 = vmatprep.subr.bf16.mxu0 %v3856
    %5322 = vmatpush2.bf16.msra.mxu0 %v3855
    %5323 = vmatprep.subr.bf16.mxu0 %v3848
    %5324 = vmatpush2.bf16.msra.mxu0 %v3847
    %5325 = vmatprep.mubr.bf16.mxu0 %v1680
    %5326 = vmatmul.mubr.bf16.gmra.mxu0 %v1679
    %v5327 = vpop.f32.mrf.mxu0
    %v5328 = vadd.f32 %v2228, %v5327
    %v5329 = vpop.f32.mrf.mxu0
    %v5330 = vadd.f32 %v2232, %v5329
    %v5331 = vpop.f32.mrf.mxu0
    %v5332 = vpop.f32.mrf.mxu0
    %5333 = vdwg.mxu0
    %5334 = vmatprep.subr.bf16.mxu0 %v3968
    %5335 = vmatpush1.bf16.msra.mxu0 %v3967
    %5336 = vmatprep.subr.bf16.mxu0 %v3960
    %5337 = vmatpush1.bf16.msra.mxu0 %v3959
    %5338 = vmatprep.subr.bf16.mxu0 %v3952
    %5339 = vmatpush1.bf16.msra.mxu0 %v3951
    %5340 = vmatprep.subr.bf16.mxu0 %v3944
    %5341 = vmatpush1.bf16.msra.mxu0 %v3943
    %5342 = vmatprep.subr.bf16.mxu0 %v3936
    %5343 = vmatpush1.bf16.msra.mxu0 %v3935
    %5344 = vmatprep.subr.bf16.mxu0 %v3928
    %5345 = vmatpush1.bf16.msra.mxu0 %v3927
    %5346 = vmatprep.subr.bf16.mxu0 %v3920
    %5347 = vmatpush1.bf16.msra.mxu0 %v3919
    %5348 = vmatprep.subr.bf16.mxu0 %v3912
    %5349 = vmatpush1.bf16.msra.mxu0 %v3911
    %5350 = vmatprep.subr.bf16.mxu0 %v4032
    %5351 = vmatpush2.bf16.msra.mxu0 %v4031
    %5352 = vmatprep.subr.bf16.mxu0 %v4024
    %5353 = vmatpush2.bf16.msra.mxu0 %v4023
    %5354 = vmatprep.subr.bf16.mxu0 %v4016
    %5355 = vmatpush2.bf16.msra.mxu0 %v4015
    %5356 = vmatprep.subr.bf16.mxu0 %v4008
    %5357 = vmatpush2.bf16.msra.mxu0 %v4007
    %5358 = vmatprep.subr.bf16.mxu0 %v4000
    %5359 = vmatpush2.bf16.msra.mxu0 %v3999
    %5360 = vmatprep.subr.bf16.mxu0 %v3992
    %5361 = vmatpush2.bf16.msra.mxu0 %v3991
    %5362 = vmatprep.subr.bf16.mxu0 %v3984
    %5363 = vmatpush2.bf16.msra.mxu0 %v3983
    %5364 = vmatprep.subr.bf16.mxu0 %v3976
    %5365 = vmatpush2.bf16.msra.mxu0 %v3975
    %5366 = vmatprep.mubr.bf16.mxu0 %v1682
    %5367 = vmatmul.mubr.bf16.gmra.mxu0 %v1681
    %v5368 = vpop.f32.mrf.mxu0
    %v5369 = vadd.f32 %v5328, %v5368
    %v5370 = vpop.f32.mrf.mxu0
    %v5371 = vadd.f32 %v5330, %v5370
    %v5372 = vpop.f32.mrf.mxu0
    %v5373 = vpop.f32.mrf.mxu0
    %5374 = vdwg.mxu0
    %5375 = vmatprep.subr.bf16.mxu0 %v4096
    %5376 = vmatpush1.bf16.msra.mxu0 %v4095
    %5377 = vmatprep.subr.bf16.mxu0 %v4088
    %5378 = vmatpush1.bf16.msra.mxu0 %v4087
    %5379 = vmatprep.subr.bf16.mxu0 %v4080
    %5380 = vmatpush1.bf16.msra.mxu0 %v4079
    %5381 = vmatprep.subr.bf16.mxu0 %v4072
    %5382 = vmatpush1.bf16.msra.mxu0 %v4071
    %5383 = vmatprep.subr.bf16.mxu0 %v4064
    %5384 = vmatpush1.bf16.msra.mxu0 %v4063
    %5385 = vmatprep.subr.bf16.mxu0 %v4056
    %5386 = vmatpush1.bf16.msra.mxu0 %v4055
    %5387 = vmatprep.subr.bf16.mxu0 %v4048
    %5388 = vmatpush1.bf16.msra.mxu0 %v4047
    %5389 = vmatprep.subr.bf16.mxu0 %v4040
    %5390 = vmatpush1.bf16.msra.mxu0 %v4039
    %5391 = vmatprep.subr.bf16.mxu0 %v4160
    %5392 = vmatpush2.bf16.msra.mxu0 %v4159
    %5393 = vmatprep.subr.bf16.mxu0 %v4152
    %5394 = vmatpush2.bf16.msra.mxu0 %v4151
    %5395 = vmatprep.subr.bf16.mxu0 %v4144
    %5396 = vmatpush2.bf16.msra.mxu0 %v4143
    %5397 = vmatprep.subr.bf16.mxu0 %v4136
    %5398 = vmatpush2.bf16.msra.mxu0 %v4135
    %5399 = vmatprep.subr.bf16.mxu0 %v4128
    %5400 = vmatpush2.bf16.msra.mxu0 %v4127
    %5401 = vmatprep.subr.bf16.mxu0 %v4120
    %5402 = vmatpush2.bf16.msra.mxu0 %v4119
    %5403 = vmatprep.subr.bf16.mxu0 %v4112
    %5404 = vmatpush2.bf16.msra.mxu0 %v4111
    %5405 = vmatprep.subr.bf16.mxu0 %v4104
    %5406 = vmatpush2.bf16.msra.mxu0 %v4103
    %5407 = vmatprep.mubr.bf16.mxu0 %v1684
    %5408 = vmatmul.mubr.bf16.gmra.mxu0 %v1683
    %v5409 = vpop.f32.mrf.mxu0
    %v5410 = vadd.f32 %v5369, %v5409
    %v5411 = vpop.f32.mrf.mxu0
    %v5412 = vadd.f32 %v5371, %v5411
    %v5413 = vpop.f32.mrf.mxu0
    %v5414 = vpop.f32.mrf.mxu0
    %5415 = vdwg.mxu0
    %5416 = vmatprep.subr.bf16.mxu0 %v4224
    %5417 = vmatpush1.bf16.msra.mxu0 %v4223
    %5418 = vmatprep.subr.bf16.mxu0 %v4216
    %5419 = vmatpush1.bf16.msra.mxu0 %v4215
    %5420 = vmatprep.subr.bf16.mxu0 %v4208
    %5421 = vmatpush1.bf16.msra.mxu0 %v4207
    %5422 = vmatprep.subr.bf16.mxu0 %v4200
    %5423 = vmatpush1.bf16.msra.mxu0 %v4199
    %5424 = vmatprep.subr.bf16.mxu0 %v4192
    %5425 = vmatpush1.bf16.msra.mxu0 %v4191
    %5426 = vmatprep.subr.bf16.mxu0 %v4184
    %5427 = vmatpush1.bf16.msra.mxu0 %v4183
    %5428 = vmatprep.subr.bf16.mxu0 %v4176
    %5429 = vmatpush1.bf16.msra.mxu0 %v4175
    %5430 = vmatprep.subr.bf16.mxu0 %v4168
    %5431 = vmatpush1.bf16.msra.mxu0 %v4167
    %5432 = vmatprep.subr.bf16.mxu0 %v4288
    %5433 = vmatpush2.bf16.msra.mxu0 %v4287
    %5434 = vmatprep.subr.bf16.mxu0 %v4280
    %5435 = vmatpush2.bf16.msra.mxu0 %v4279
    %5436 = vmatprep.subr.bf16.mxu0 %v4272
    %5437 = vmatpush2.bf16.msra.mxu0 %v4271
    %5438 = vmatprep.subr.bf16.mxu0 %v4264
    %5439 = vmatpush2.bf16.msra.mxu0 %v4263
    %5440 = vmatprep.subr.bf16.mxu0 %v4256
    %5441 = vmatpush2.bf16.msra.mxu0 %v4255
    %5442 = vmatprep.subr.bf16.mxu0 %v4248
    %5443 = vmatpush2.bf16.msra.mxu0 %v4247
    %5444 = vmatprep.subr.bf16.mxu0 %v4240
    %5445 = vmatpush2.bf16.msra.mxu0 %v4239
    %5446 = vmatprep.subr.bf16.mxu0 %v4232
    %5447 = vmatpush2.bf16.msra.mxu0 %v4231
    %5448 = vmatprep.mubr.bf16.mxu0 %v1686
    %5449 = vmatmul.mubr.bf16.gmra.mxu0 %v1685
    %v5450 = vpop.f32.mrf.mxu0
    %v5451 = vadd.f32 %v5410, %v5450
    %v5452 = vpop.f32.mrf.mxu0
    %v5453 = vadd.f32 %v5412, %v5452
    %v5454 = vpop.f32.mrf.mxu0
    %v5455 = vpop.f32.mrf.mxu0
    %5456 = vdwg.mxu0
    %v5457 = vtanh.pop %v4959
    %v5458 = vtanh.pop %v4961
    %v5459 = vtanh.pop %v5123
    %v5460 = vtanh.pop %v5125
    %v5461 = vtanh.pop %v5287
    %v5462 = vtanh.pop %v5289
    %v5463 = vtanh.pop %v5451
    %v5464 = vtanh.pop %v5453
    %v5465 = vpack.c.bf16 %v5457, %v5457
    %v5466 = vpack.c.bf16 %v5458, %v5458
    %v5467 = vpack.c.bf16 %v5459, %v5459
    %v5468 = vpack.c.bf16 %v5460, %v5460
    %v5469 = vpack.c.bf16 %v5461, %v5461
    %v5470 = vpack.c.bf16 %v5462, %v5462
    %v5471 = vpack.c.bf16 %v5463, %v5463
    %v5472 = vpack.c.bf16 %v5464, %v5464
    %v5473 = vld [vmem:[%s8] sm:$0xf]
    %v5474 = vld [vmem:[%s8 + $0x4] sm:$0xf]
    %v5475 = vld [vmem:[%s8 + $0x8] sm:$0xf]
    %v5476 = vld [vmem:[%s8 + $0xc] sm:$0xf]
    %v5477 = vld [vmem:[%s8 + $0x10] sm:$0xf]
    %v5478 = vld [vmem:[%s8 + $0x14] sm:$0xf]
    %v5479 = vld [vmem:[%s8 + $0x18] sm:$0xf]
    %v5480 = vld [vmem:[%s8 + $0x1c] sm:$0xf]
    %v5481 = vld [vmem:[%s8 + $0x20] sm:$0xf]
    %v5482 = vld [vmem:[%s8 + $0x24] sm:$0xf]
    %v5483 = vld [vmem:[%s8 + $0x28] sm:$0xf]
    %v5484 = vld [vmem:[%s8 + $0x2c] sm:$0xf]
    %v5485 = vld [vmem:[%s8 + $0x30] sm:$0xf]
    %v5486 = vld [vmem:[%s8 + $0x34] sm:$0xf]
    %v5487 = vld [vmem:[%s8 + $0x38] sm:$0xf]
    %v5488 = vld [vmem:[%s8 + $0x3c] sm:$0xf]
    %v5489 = vld [vmem:[%s8 + $0x40] sm:$0xf]
    %v5490 = vld [vmem:[%s8 + $0x44] sm:$0xf]
    %v5491 = vld [vmem:[%s8 + $0x48] sm:$0xf]
    %v5492 = vld [vmem:[%s8 + $0x4c] sm:$0xf]
    %v5493 = vld [vmem:[%s8 + $0x50] sm:$0xf]
    %v5494 = vld [vmem:[%s8 + $0x54] sm:$0xf]
    %v5495 = vld [vmem:[%s8 + $0x58] sm:$0xf]
    %v5496 = vld [vmem:[%s8 + $0x5c] sm:$0xf]
    %v5497 = vld [vmem:[%s8 + $0x60] sm:$0xf]
    %v5498 = vld [vmem:[%s8 + $0x64] sm:$0xf]
    %v5499 = vld [vmem:[%s8 + $0x68] sm:$0xf]
    %v5500 = vld [vmem:[%s8 + $0x6c] sm:$0xf]
    %v5501 = vld [vmem:[%s8 + $0x70] sm:$0xf]
    %v5502 = vld [vmem:[%s8 + $0x74] sm:$0xf]
    %v5503 = vld [vmem:[%s8 + $0x78] sm:$0xf]
    %v5504 = vld [vmem:[%s8 + $0x7c] sm:$0xf]
    %v5505 = vld [vmem:[%s8 + $0x80] sm:$0xf]
    %v5506 = vld [vmem:[%s8 + $0x84] sm:$0xf]
    %v5507 = vld [vmem:[%s8 + $0x88] sm:$0xf]
    %v5508 = vld [vmem:[%s8 + $0x8c] sm:$0xf]
    %v5509 = vld [vmem:[%s8 + $0x90] sm:$0xf]
    %v5510 = vld [vmem:[%s8 + $0x94] sm:$0xf]
    %v5511 = vld [vmem:[%s8 + $0x98] sm:$0xf]
    %v5512 = vld [vmem:[%s8 + $0x9c] sm:$0xf]
    %v5513 = vld [vmem:[%s8 + $0xa0] sm:$0xf]
    %v5514 = vld [vmem:[%s8 + $0xa4] sm:$0xf]
    %v5515 = vld [vmem:[%s8 + $0xa8] sm:$0xf]
    %v5516 = vld [vmem:[%s8 + $0xac] sm:$0xf]
    %v5517 = vld [vmem:[%s8 + $0xb0] sm:$0xf]
    %v5518 = vld [vmem:[%s8 + $0xb4] sm:$0xf]
    %v5519 = vld [vmem:[%s8 + $0xb8] sm:$0xf]
    %v5520 = vld [vmem:[%s8 + $0xbc] sm:$0xf]
    %v5521 = vld [vmem:[%s8 + $0xc0] sm:$0xf]
    %v5522 = vld [vmem:[%s8 + $0xc4] sm:$0xf]
    %v5523 = vld [vmem:[%s8 + $0xc8] sm:$0xf]
    %v5524 = vld [vmem:[%s8 + $0xcc] sm:$0xf]
    %v5525 = vld [vmem:[%s8 + $0xd0] sm:$0xf]
    %v5526 = vld [vmem:[%s8 + $0xd4] sm:$0xf]
    %v5527 = vld [vmem:[%s8 + $0xd8] sm:$0xf]
    %v5528 = vld [vmem:[%s8 + $0xdc] sm:$0xf]
    %v5529 = vld [vmem:[%s8 + $0xe0] sm:$0xf]
    %v5530 = vld [vmem:[%s8 + $0xe4] sm:$0xf]
    %v5531 = vld [vmem:[%s8 + $0xe8] sm:$0xf]
    %v5532 = vld [vmem:[%s8 + $0xec] sm:$0xf]
    %v5533 = vld [vmem:[%s8 + $0xf0] sm:$0xf]
    %v5534 = vld [vmem:[%s8 + $0xf4] sm:$0xf]
    %v5535 = vld [vmem:[%s8 + $0xf8] sm:$0xf]
    %v5536 = vld [vmem:[%s8 + $0xfc] sm:$0xf]
    %v5537 = vld [vmem:[%s8 + $0x100] sm:$0xf]
    %v5538 = vld [vmem:[%s8 + $0x104] sm:$0xf]
    %v5539 = vld [vmem:[%s8 + $0x108] sm:$0xf]
    %v5540 = vld [vmem:[%s8 + $0x10c] sm:$0xf]
    %v5541 = vld [vmem:[%s8 + $0x110] sm:$0xf]
    %v5542 = vld [vmem:[%s8 + $0x114] sm:$0xf]
    %v5543 = vld [vmem:[%s8 + $0x118] sm:$0xf]
    %v5544 = vld [vmem:[%s8 + $0x11c] sm:$0xf]
    %v5545 = vld [vmem:[%s8 + $0x120] sm:$0xf]
    %v5546 = vld [vmem:[%s8 + $0x124] sm:$0xf]
    %v5547 = vld [vmem:[%s8 + $0x128] sm:$0xf]
    %v5548 = vld [vmem:[%s8 + $0x12c] sm:$0xf]
    %v5549 = vld [vmem:[%s8 + $0x130] sm:$0xf]
    %v5550 = vld [vmem:[%s8 + $0x134] sm:$0xf]
    %v5551 = vld [vmem:[%s8 + $0x138] sm:$0xf]
    %v5552 = vld [vmem:[%s8 + $0x13c] sm:$0xf]
    %v5553 = vld [vmem:[%s8 + $0x140] sm:$0xf]
    %v5554 = vld [vmem:[%s8 + $0x144] sm:$0xf]
    %v5555 = vld [vmem:[%s8 + $0x148] sm:$0xf]
    %v5556 = vld [vmem:[%s8 + $0x14c] sm:$0xf]
    %v5557 = vld [vmem:[%s8 + $0x150] sm:$0xf]
    %v5558 = vld [vmem:[%s8 + $0x154] sm:$0xf]
    %v5559 = vld [vmem:[%s8 + $0x158] sm:$0xf]
    %v5560 = vld [vmem:[%s8 + $0x15c] sm:$0xf]
    %v5561 = vld [vmem:[%s8 + $0x160] sm:$0xf]
    %v5562 = vld [vmem:[%s8 + $0x164] sm:$0xf]
    %v5563 = vld [vmem:[%s8 + $0x168] sm:$0xf]
    %v5564 = vld [vmem:[%s8 + $0x16c] sm:$0xf]
    %v5565 = vld [vmem:[%s8 + $0x170] sm:$0xf]
    %v5566 = vld [vmem:[%s8 + $0x174] sm:$0xf]
    %v5567 = vld [vmem:[%s8 + $0x178] sm:$0xf]
    %v5568 = vld [vmem:[%s8 + $0x17c] sm:$0xf]
    %v5569 = vld [vmem:[%s8 + $0x180] sm:$0xf]
    %v5570 = vld [vmem:[%s8 + $0x184] sm:$0xf]
    %v5571 = vld [vmem:[%s8 + $0x188] sm:$0xf]
    %v5572 = vld [vmem:[%s8 + $0x18c] sm:$0xf]
    %v5573 = vld [vmem:[%s8 + $0x190] sm:$0xf]
    %v5574 = vld [vmem:[%s8 + $0x194] sm:$0xf]
    %v5575 = vld [vmem:[%s8 + $0x198] sm:$0xf]
    %v5576 = vld [vmem:[%s8 + $0x19c] sm:$0xf]
    %v5577 = vld [vmem:[%s8 + $0x1a0] sm:$0xf]
    %v5578 = vld [vmem:[%s8 + $0x1a4] sm:$0xf]
    %v5579 = vld [vmem:[%s8 + $0x1a8] sm:$0xf]
    %v5580 = vld [vmem:[%s8 + $0x1ac] sm:$0xf]
    %v5581 = vld [vmem:[%s8 + $0x1b0] sm:$0xf]
    %v5582 = vld [vmem:[%s8 + $0x1b4] sm:$0xf]
    %v5583 = vld [vmem:[%s8 + $0x1b8] sm:$0xf]
    %v5584 = vld [vmem:[%s8 + $0x1bc] sm:$0xf]
    %v5585 = vld [vmem:[%s8 + $0x1c0] sm:$0xf]
    %v5586 = vld [vmem:[%s8 + $0x1c4] sm:$0xf]
    %v5587 = vld [vmem:[%s8 + $0x1c8] sm:$0xf]
    %v5588 = vld [vmem:[%s8 + $0x1cc] sm:$0xf]
    %v5589 = vld [vmem:[%s8 + $0x1d0] sm:$0xf]
    %v5590 = vld [vmem:[%s8 + $0x1d4] sm:$0xf]
    %v5591 = vld [vmem:[%s8 + $0x1d8] sm:$0xf]
    %v5592 = vld [vmem:[%s8 + $0x1dc] sm:$0xf]
    %v5593 = vld [vmem:[%s8 + $0x1e0] sm:$0xf]
    %v5594 = vld [vmem:[%s8 + $0x1e4] sm:$0xf]
    %v5595 = vld [vmem:[%s8 + $0x1e8] sm:$0xf]
    %v5596 = vld [vmem:[%s8 + $0x1ec] sm:$0xf]
    %v5597 = vld [vmem:[%s8 + $0x1f0] sm:$0xf]
    %v5598 = vld [vmem:[%s8 + $0x1f4] sm:$0xf]
    %v5599 = vld [vmem:[%s8 + $0x1f8] sm:$0xf]
    %v5600 = vld [vmem:[%s8 + $0x1fc] sm:$0xf]
    %v5601 = vld [vmem:[#allocation16] sm:$0x1]
    %v5603 = vlaneseq
    %v5604 = vshrl.u32 %v5603, 7
    %v5605 = vsub.s32 0, %v5604
    %v5606 = vrot.slane %v5601, %v5605
    %v5736 = vunpack.c.l.b16 %v5473
    %v5737 = vunpack.c.l.b16 %v5474
    %v5738 = vunpack.c.l.b16 %v5475
    %v5739 = vunpack.c.l.b16 %v5476
    %v5740 = vunpack.c.l.b16 %v5477
    %v5741 = vunpack.c.l.b16 %v5478
    %v5742 = vunpack.c.l.b16 %v5479
    %v5743 = vunpack.c.l.b16 %v5480
    %v5744 = vunpack.c.l.b16 %v5481
    %v5745 = vunpack.c.l.b16 %v5482
    %v5746 = vunpack.c.l.b16 %v5483
    %v5747 = vunpack.c.l.b16 %v5484
    %v5748 = vunpack.c.l.b16 %v5485
    %v5749 = vunpack.c.l.b16 %v5486
    %v5750 = vunpack.c.l.b16 %v5487
    %v5751 = vunpack.c.l.b16 %v5488
    %v5752 = vunpack.c.l.b16 %v5489
    %v5753 = vunpack.c.l.b16 %v5490
    %v5754 = vunpack.c.l.b16 %v5491
    %v5755 = vunpack.c.l.b16 %v5492
    %v5756 = vunpack.c.l.b16 %v5493
    %v5757 = vunpack.c.l.b16 %v5494
    %v5758 = vunpack.c.l.b16 %v5495
    %v5759 = vunpack.c.l.b16 %v5496
    %v5760 = vunpack.c.l.b16 %v5497
    %v5761 = vunpack.c.l.b16 %v5498
    %v5762 = vunpack.c.l.b16 %v5499
    %v5763 = vunpack.c.l.b16 %v5500
    %v5764 = vunpack.c.l.b16 %v5501
    %v5765 = vunpack.c.l.b16 %v5502
    %v5766 = vunpack.c.l.b16 %v5503
    %v5767 = vunpack.c.l.b16 %v5504
    %v5768 = vunpack.c.l.b16 %v5505
    %v5769 = vunpack.c.l.b16 %v5506
    %v5770 = vunpack.c.l.b16 %v5507
    %v5771 = vunpack.c.l.b16 %v5508
    %v5772 = vunpack.c.l.b16 %v5509
    %v5773 = vunpack.c.l.b16 %v5510
    %v5774 = vunpack.c.l.b16 %v5511
    %v5775 = vunpack.c.l.b16 %v5512
    %v5776 = vunpack.c.l.b16 %v5513
    %v5777 = vunpack.c.l.b16 %v5514
    %v5778 = vunpack.c.l.b16 %v5515
    %v5779 = vunpack.c.l.b16 %v5516
    %v5780 = vunpack.c.l.b16 %v5517
    %v5781 = vunpack.c.l.b16 %v5518
    %v5782 = vunpack.c.l.b16 %v5519
    %v5783 = vunpack.c.l.b16 %v5520
    %v5784 = vunpack.c.l.b16 %v5521
    %v5785 = vunpack.c.l.b16 %v5522
    %v5786 = vunpack.c.l.b16 %v5523
    %v5787 = vunpack.c.l.b16 %v5524
    %v5788 = vunpack.c.l.b16 %v5525
    %v5789 = vunpack.c.l.b16 %v5526
    %v5790 = vunpack.c.l.b16 %v5527
    %v5791 = vunpack.c.l.b16 %v5528
    %v5792 = vunpack.c.l.b16 %v5529
    %v5793 = vunpack.c.l.b16 %v5530
    %v5794 = vunpack.c.l.b16 %v5531
    %v5795 = vunpack.c.l.b16 %v5532
    %v5796 = vunpack.c.l.b16 %v5533
    %v5797 = vunpack.c.l.b16 %v5534
    %v5798 = vunpack.c.l.b16 %v5535
    %v5799 = vunpack.c.l.b16 %v5536
    %v5800 = vunpack.c.l.b16 %v5537
    %v5801 = vunpack.c.l.b16 %v5538
    %v5802 = vunpack.c.l.b16 %v5539
    %v5803 = vunpack.c.l.b16 %v5540
    %v5804 = vunpack.c.l.b16 %v5541
    %v5805 = vunpack.c.l.b16 %v5542
    %v5806 = vunpack.c.l.b16 %v5543
    %v5807 = vunpack.c.l.b16 %v5544
    %v5808 = vunpack.c.l.b16 %v5545
    %v5809 = vunpack.c.l.b16 %v5546
    %v5810 = vunpack.c.l.b16 %v5547
    %v5811 = vunpack.c.l.b16 %v5548
    %v5812 = vunpack.c.l.b16 %v5549
    %v5813 = vunpack.c.l.b16 %v5550
    %v5814 = vunpack.c.l.b16 %v5551
    %v5815 = vunpack.c.l.b16 %v5552
    %v5816 = vunpack.c.l.b16 %v5553
    %v5817 = vunpack.c.l.b16 %v5554
    %v5818 = vunpack.c.l.b16 %v5555
    %v5819 = vunpack.c.l.b16 %v5556
    %v5820 = vunpack.c.l.b16 %v5557
    %v5821 = vunpack.c.l.b16 %v5558
    %v5822 = vunpack.c.l.b16 %v5559
    %v5823 = vunpack.c.l.b16 %v5560
    %v5824 = vunpack.c.l.b16 %v5561
    %v5825 = vunpack.c.l.b16 %v5562
    %v5826 = vunpack.c.l.b16 %v5563
    %v5827 = vunpack.c.l.b16 %v5564
    %v5828 = vunpack.c.l.b16 %v5565
    %v5829 = vunpack.c.l.b16 %v5566
    %v5830 = vunpack.c.l.b16 %v5567
    %v5831 = vunpack.c.l.b16 %v5568
    %v5832 = vunpack.c.l.b16 %v5569
    %v5833 = vunpack.c.l.b16 %v5570
    %v5834 = vunpack.c.l.b16 %v5571
    %v5835 = vunpack.c.l.b16 %v5572
    %v5836 = vunpack.c.l.b16 %v5573
    %v5837 = vunpack.c.l.b16 %v5574
    %v5838 = vunpack.c.l.b16 %v5575
    %v5839 = vunpack.c.l.b16 %v5576
    %v5840 = vunpack.c.l.b16 %v5577
    %v5841 = vunpack.c.l.b16 %v5578
    %v5842 = vunpack.c.l.b16 %v5579
    %v5843 = vunpack.c.l.b16 %v5580
    %v5844 = vunpack.c.l.b16 %v5581
    %v5845 = vunpack.c.l.b16 %v5582
    %v5846 = vunpack.c.l.b16 %v5583
    %v5847 = vunpack.c.l.b16 %v5584
    %v5848 = vunpack.c.l.b16 %v5585
    %v5849 = vunpack.c.l.b16 %v5586
    %v5850 = vunpack.c.l.b16 %v5587
    %v5851 = vunpack.c.l.b16 %v5588
    %v5852 = vunpack.c.l.b16 %v5589
    %v5853 = vunpack.c.l.b16 %v5590
    %v5854 = vunpack.c.l.b16 %v5591
    %v5855 = vunpack.c.l.b16 %v5592
    %v5856 = vunpack.c.l.b16 %v5593
    %v5857 = vunpack.c.l.b16 %v5594
    %v5858 = vunpack.c.l.b16 %v5595
    %v5859 = vunpack.c.l.b16 %v5596
    %v5860 = vunpack.c.l.b16 %v5597
    %v5861 = vunpack.c.l.b16 %v5598
    %v5862 = vunpack.c.l.b16 %v5599
    %v5863 = vunpack.c.l.b16 %v5600
    %v5864 = vpack.c.b16 %v5737, %v5736
    %v5865 = vpack.c.b16 %v5739, %v5738
    %v5866 = vpack.c.b16 %v5741, %v5740
    %v5867 = vpack.c.b16 %v5743, %v5742
    %v5868 = vpack.c.b16 %v5745, %v5744
    %v5869 = vpack.c.b16 %v5747, %v5746
    %v5870 = vpack.c.b16 %v5749, %v5748
    %v5871 = vpack.c.b16 %v5751, %v5750
    %v5872 = vpack.c.b16 %v5753, %v5752
    %v5873 = vpack.c.b16 %v5755, %v5754
    %v5874 = vpack.c.b16 %v5757, %v5756
    %v5875 = vpack.c.b16 %v5759, %v5758
    %v5876 = vpack.c.b16 %v5761, %v5760
    %v5877 = vpack.c.b16 %v5763, %v5762
    %v5878 = vpack.c.b16 %v5765, %v5764
    %v5879 = vpack.c.b16 %v5767, %v5766
    %v5880 = vpack.c.b16 %v5769, %v5768
    %v5881 = vpack.c.b16 %v5771, %v5770
    %v5882 = vpack.c.b16 %v5773, %v5772
    %v5883 = vpack.c.b16 %v5775, %v5774
    %v5884 = vpack.c.b16 %v5777, %v5776
    %v5885 = vpack.c.b16 %v5779, %v5778
    %v5886 = vpack.c.b16 %v5781, %v5780
    %v5887 = vpack.c.b16 %v5783, %v5782
    %v5888 = vpack.c.b16 %v5785, %v5784
    %v5889 = vpack.c.b16 %v5787, %v5786
    %v5890 = vpack.c.b16 %v5789, %v5788
    %v5891 = vpack.c.b16 %v5791, %v5790
    %v5892 = vpack.c.b16 %v5793, %v5792
    %v5893 = vpack.c.b16 %v5795, %v5794
    %v5894 = vpack.c.b16 %v5797, %v5796
    %v5895 = vpack.c.b16 %v5799, %v5798
    %v5896 = vpack.c.b16 %v5801, %v5800
    %v5897 = vpack.c.b16 %v5803, %v5802
    %v5898 = vpack.c.b16 %v5805, %v5804
    %v5899 = vpack.c.b16 %v5807, %v5806
    %v5900 = vpack.c.b16 %v5809, %v5808
    %v5901 = vpack.c.b16 %v5811, %v5810
    %v5902 = vpack.c.b16 %v5813, %v5812
    %v5903 = vpack.c.b16 %v5815, %v5814
    %v5904 = vpack.c.b16 %v5817, %v5816
    %v5905 = vpack.c.b16 %v5819, %v5818
    %v5906 = vpack.c.b16 %v5821, %v5820
    %v5907 = vpack.c.b16 %v5823, %v5822
    %v5908 = vpack.c.b16 %v5825, %v5824
    %v5909 = vpack.c.b16 %v5827, %v5826
    %v5910 = vpack.c.b16 %v5829, %v5828
    %v5911 = vpack.c.b16 %v5831, %v5830
    %v5912 = vpack.c.b16 %v5833, %v5832
    %v5913 = vpack.c.b16 %v5835, %v5834
    %v5914 = vpack.c.b16 %v5837, %v5836
    %v5915 = vpack.c.b16 %v5839, %v5838
    %v5916 = vpack.c.b16 %v5841, %v5840
    %v5917 = vpack.c.b16 %v5843, %v5842
    %v5918 = vpack.c.b16 %v5845, %v5844
    %v5919 = vpack.c.b16 %v5847, %v5846
    %v5920 = vpack.c.b16 %v5849, %v5848
    %v5921 = vpack.c.b16 %v5851, %v5850
    %v5922 = vpack.c.b16 %v5853, %v5852
    %v5923 = vpack.c.b16 %v5855, %v5854
    %v5924 = vpack.c.b16 %v5857, %v5856
    %v5925 = vpack.c.b16 %v5859, %v5858
    %v5926 = vpack.c.b16 %v5861, %v5860
    %v5927 = vpack.c.b16 %v5863, %v5862
    %5992 = vmatprep.subr.bf16.mxu0 0
    %5993 = vmatpush1.bf16.msra.mxu0 %v5871
    %5994 = vmatprep.subr.bf16.mxu0 0
    %5995 = vmatpush1.bf16.msra.mxu0 %v5870
    %5996 = vmatprep.subr.bf16.mxu0 0
    %5997 = vmatpush1.bf16.msra.mxu0 %v5869
    %5998 = vmatprep.subr.bf16.mxu0 0
    %5999 = vmatpush1.bf16.msra.mxu0 %v5868
    %6000 = vmatprep.subr.bf16.mxu0 0
    %6001 = vmatpush1.bf16.msra.mxu0 %v5867
    %6002 = vmatprep.subr.bf16.mxu0 0
    %6003 = vmatpush1.bf16.msra.mxu0 %v5866
    %6004 = vmatprep.subr.bf16.mxu0 0
    %6005 = vmatpush1.bf16.msra.mxu0 %v5865
    %6006 = vmatprep.subr.bf16.mxu0 0
    %6007 = vmatpush1.bf16.msra.mxu0 %v5864
    %6008 = vmatprep.subr.bf16.mxu0 0
    %6009 = vmatpush2.bf16.msra.mxu0 %v5879
    %6010 = vmatprep.subr.bf16.mxu0 0
    %6011 = vmatpush2.bf16.msra.mxu0 %v5878
    %6012 = vmatprep.subr.bf16.mxu0 0
    %6013 = vmatpush2.bf16.msra.mxu0 %v5877
    %6014 = vmatprep.subr.bf16.mxu0 0
    %6015 = vmatpush2.bf16.msra.mxu0 %v5876
    %6016 = vmatprep.subr.bf16.mxu0 0
    %6017 = vmatpush2.bf16.msra.mxu0 %v5875
    %6018 = vmatprep.subr.bf16.mxu0 0
    %6019 = vmatpush2.bf16.msra.mxu0 %v5874
    %6020 = vmatprep.subr.bf16.mxu0 0
    %6021 = vmatpush2.bf16.msra.mxu0 %v5873
    %6022 = vmatprep.subr.bf16.mxu0 0
    %6023 = vmatpush2.bf16.msra.mxu0 %v5872
    %6024 = vmatprep.mubr.bf16.mxu0 %v5466
    %6025 = vmatmul.mubr.bf16.gmra.mxu0 %v5465
    %v6026 = vpop.f32.mrf.mxu0
    %v6027 = vadd.f32 %v5606, %v6026
    %v6028 = vpop.f32.mrf.mxu0
    %v6029 = vpop.f32.mrf.mxu0
    %v6030 = vpop.f32.mrf.mxu0
    %6031 = vdwg.mxu0
    %6032 = vmatprep.subr.bf16.mxu0 0
    %6033 = vmatpush1.bf16.msra.mxu0 %v5887
    %6034 = vmatprep.subr.bf16.mxu0 0
    %6035 = vmatpush1.bf16.msra.mxu0 %v5886
    %6036 = vmatprep.subr.bf16.mxu0 0
    %6037 = vmatpush1.bf16.msra.mxu0 %v5885
    %6038 = vmatprep.subr.bf16.mxu0 0
    %6039 = vmatpush1.bf16.msra.mxu0 %v5884
    %6040 = vmatprep.subr.bf16.mxu0 0
    %6041 = vmatpush1.bf16.msra.mxu0 %v5883
    %6042 = vmatprep.subr.bf16.mxu0 0
    %6043 = vmatpush1.bf16.msra.mxu0 %v5882
    %6044 = vmatprep.subr.bf16.mxu0 0
    %6045 = vmatpush1.bf16.msra.mxu0 %v5881
    %6046 = vmatprep.subr.bf16.mxu0 0
    %6047 = vmatpush1.bf16.msra.mxu0 %v5880
    %6048 = vmatprep.subr.bf16.mxu0 0
    %6049 = vmatpush2.bf16.msra.mxu0 %v5895
    %6050 = vmatprep.subr.bf16.mxu0 0
    %6051 = vmatpush2.bf16.msra.mxu0 %v5894
    %6052 = vmatprep.subr.bf16.mxu0 0
    %6053 = vmatpush2.bf16.msra.mxu0 %v5893
    %6054 = vmatprep.subr.bf16.mxu0 0
    %6055 = vmatpush2.bf16.msra.mxu0 %v5892
    %6056 = vmatprep.subr.bf16.mxu0 0
    %6057 = vmatpush2.bf16.msra.mxu0 %v5891
    %6058 = vmatprep.subr.bf16.mxu0 0
    %6059 = vmatpush2.bf16.msra.mxu0 %v5890
    %6060 = vmatprep.subr.bf16.mxu0 0
    %6061 = vmatpush2.bf16.msra.mxu0 %v5889
    %6062 = vmatprep.subr.bf16.mxu0 0
    %6063 = vmatpush2.bf16.msra.mxu0 %v5888
    %6064 = vmatprep.mubr.bf16.mxu0 %v5468
    %6065 = vmatmul.mubr.bf16.gmra.mxu0 %v5467
    %v6066 = vpop.f32.mrf.mxu0
    %v6067 = vadd.f32 %v6027, %v6066
    %v6068 = vpop.f32.mrf.mxu0
    %v6069 = vpop.f32.mrf.mxu0
    %v6070 = vpop.f32.mrf.mxu0
    %6071 = vdwg.mxu0
    %6072 = vmatprep.subr.bf16.mxu0 0
    %6073 = vmatpush1.bf16.msra.mxu0 %v5903
    %6074 = vmatprep.subr.bf16.mxu0 0
    %6075 = vmatpush1.bf16.msra.mxu0 %v5902
    %6076 = vmatprep.subr.bf16.mxu0 0
    %6077 = vmatpush1.bf16.msra.mxu0 %v5901
    %6078 = vmatprep.subr.bf16.mxu0 0
    %6079 = vmatpush1.bf16.msra.mxu0 %v5900
    %6080 = vmatprep.subr.bf16.mxu0 0
    %6081 = vmatpush1.bf16.msra.mxu0 %v5899
    %6082 = vmatprep.subr.bf16.mxu0 0
    %6083 = vmatpush1.bf16.msra.mxu0 %v5898
    %6084 = vmatprep.subr.bf16.mxu0 0
    %6085 = vmatpush1.bf16.msra.mxu0 %v5897
    %6086 = vmatprep.subr.bf16.mxu0 0
    %6087 = vmatpush1.bf16.msra.mxu0 %v5896
    %6088 = vmatprep.subr.bf16.mxu0 0
    %6089 = vmatpush2.bf16.msra.mxu0 %v5911
    %6090 = vmatprep.subr.bf16.mxu0 0
    %6091 = vmatpush2.bf16.msra.mxu0 %v5910
    %6092 = vmatprep.subr.bf16.mxu0 0
    %6093 = vmatpush2.bf16.msra.mxu0 %v5909
    %6094 = vmatprep.subr.bf16.mxu0 0
    %6095 = vmatpush2.bf16.msra.mxu0 %v5908
    %6096 = vmatprep.subr.bf16.mxu0 0
    %6097 = vmatpush2.bf16.msra.mxu0 %v5907
    %6098 = vmatprep.subr.bf16.mxu0 0
    %6099 = vmatpush2.bf16.msra.mxu0 %v5906
    %6100 = vmatprep.subr.bf16.mxu0 0
    %6101 = vmatpush2.bf16.msra.mxu0 %v5905
    %6102 = vmatprep.subr.bf16.mxu0 0
    %6103 = vmatpush2.bf16.msra.mxu0 %v5904
    %6104 = vmatprep.mubr.bf16.mxu0 %v5470
    %6105 = vmatmul.mubr.bf16.gmra.mxu0 %v5469
    %v6106 = vpop.f32.mrf.mxu0
    %v6107 = vadd.f32 %v6067, %v6106
    %v6108 = vpop.f32.mrf.mxu0
    %v6109 = vpop.f32.mrf.mxu0
    %v6110 = vpop.f32.mrf.mxu0
    %6111 = vdwg.mxu0
    %6112 = vmatprep.subr.bf16.mxu0 0
    %6113 = vmatpush1.bf16.msra.mxu0 %v5919
    %6114 = vmatprep.subr.bf16.mxu0 0
    %6115 = vmatpush1.bf16.msra.mxu0 %v5918
    %6116 = vmatprep.subr.bf16.mxu0 0
    %6117 = vmatpush1.bf16.msra.mxu0 %v5917
    %6118 = vmatprep.subr.bf16.mxu0 0
    %6119 = vmatpush1.bf16.msra.mxu0 %v5916
    %6120 = vmatprep.subr.bf16.mxu0 0
    %6121 = vmatpush1.bf16.msra.mxu0 %v5915
    %6122 = vmatprep.subr.bf16.mxu0 0
    %6123 = vmatpush1.bf16.msra.mxu0 %v5914
    %6124 = vmatprep.subr.bf16.mxu0 0
    %6125 = vmatpush1.bf16.msra.mxu0 %v5913
    %6126 = vmatprep.subr.bf16.mxu0 0
    %6127 = vmatpush1.bf16.msra.mxu0 %v5912
    %6128 = vmatprep.subr.bf16.mxu0 0
    %6129 = vmatpush2.bf16.msra.mxu0 %v5927
    %6130 = vmatprep.subr.bf16.mxu0 0
    %6131 = vmatpush2.bf16.msra.mxu0 %v5926
    %6132 = vmatprep.subr.bf16.mxu0 0
    %6133 = vmatpush2.bf16.msra.mxu0 %v5925
    %6134 = vmatprep.subr.bf16.mxu0 0
    %6135 = vmatpush2.bf16.msra.mxu0 %v5924
    %6136 = vmatprep.subr.bf16.mxu0 0
    %6137 = vmatpush2.bf16.msra.mxu0 %v5923
    %6138 = vmatprep.subr.bf16.mxu0 0
    %6139 = vmatpush2.bf16.msra.mxu0 %v5922
    %6140 = vmatprep.subr.bf16.mxu0 0
    %6141 = vmatpush2.bf16.msra.mxu0 %v5921
    %6142 = vmatprep.subr.bf16.mxu0 0
    %6143 = vmatpush2.bf16.msra.mxu0 %v5920
    %6144 = vmatprep.mubr.bf16.mxu0 %v5472
    %6145 = vmatmul.mubr.bf16.gmra.mxu0 %v5471
    %v6146 = vpop.f32.mrf.mxu0
    %v6147 = vadd.f32 %v6107, %v6146
    %v6148 = vpop.f32.mrf.mxu0
    %v6149 = vpop.f32.mrf.mxu0
    %v6150 = vpop.f32.mrf.mxu0
    %6151 = vdwg.mxu0
    %vm6152 = vcmask 25600
    %6153 = vst.msk [vmem:[#allocation17] sm:$0x3] %vm6152, %v6147
    // Predicated region
    $region78: #{lstm_mlp_forward.1} parent=1 // pred_check
      _
    $region79: #{lstm_mlp_forward.1} parent=1 // pred_check_branch
      %6155 = sbr.rel (0) target = $region81
    $region80: #{lstm_mlp_forward.1} parent=1 // pred_region
      %s6157 = ssub.s32 32, 32
      %6158 = vsyncadd [#allocation4], %s6157
      %s6160 = sshll.u32 [#allocation17], 4
      %s6161 = int_to_ptr.vmem [resolvable:$true] %s6160
      %6163 = dma.vmem_to_hbm [thread:$0]  %s6161, 32, %s10, [#allocation4]
    $region81: #{lstm_mlp_forward.1} parent=1 // pred_fallthru
      _
    // Predicated region
    $region82: #{lstm_mlp_forward.1} parent=1 // pred_check
      _
    $region83: #{lstm_mlp_forward.1} parent=1 // pred_check_branch
      %6165 = sbr.rel (0) target = $region85
    $region84: #{lstm_mlp_forward.1} parent=1 // pred_region
      %6166 = dma.done [#allocation4], 32
    $region85: #{lstm_mlp_forward.1} parent=1 // pred_fallthru
      _
    %6167 = vsyncpa [#allocation3], 1
    %6168 = vsyncpa [#allocation6], 1
    %6169 = vsyncpa [#allocation9], 1
    %6170 = vsyncpa [#allocation12], 1
    %6171 = vsyncpa [#allocation15], 1
    %6172 = vsyncpa [#allocation4], 1

</llo_original>
